<compile_context>
chip_gen: v6e
topology: v6e:2x2x1
jax: 0.10.0
libtpu: 0.0.40
codegen_flags: <defaults>
</compile_context>

<pallas_src>
import functools
import math

import jax
import jax.numpy as jnp
from jax.experimental import pallas as pl
from jax.experimental.pallas import tpu as pltpu

BUCKET_NUMBER = 100       # forced by the einsum against Meta_emb (100, n_embd)
PADDED_BUCKETS = 128      # bucket dim zero-padded to one full vreg lane width
NEG_SLOPE = 0.01          # nn.LeakyReLU default negative_slope
DEFAULT_TILE_B = 256      # (n, c) groups per grid step (review: 256-512)


def reward_embedding_kernel(x_ref, wret_t_ref, wres_t_ref, meta_ref, out_ref,
                            *, tile_b, d, fold_output):
    """One grid step = tile_b whole (n, c) groups (tile_b * d rows).

    x_ref:      (tile_b*d, 2)      f32
    wret_t_ref: (2, 128)           ret_emb_score Linear(2, B) weight.T, zero-padded
    wres_t_ref: (128, 128)         res Linear(B, B) weight.T, zero-padded (f32 or bf16)
    meta_ref:   (128, n_embd)      precomputed Meta_emb, zero rows for padded buckets
    out_ref:    (tile_b*d, n_embd) or, when fold_output, (tile_b, d*n_embd)
    """
    bp = wret_t_ref.shape[1]                                    # 128

    x = x_ref[...]                                              # (rows, 2)
    w = wret_t_ref[...]                                         # (2, 128)

    # ret_emb_score: Linear(2, B, bias=False) -- K=2 contraction on the VPU as
    # two broadcast multiply-adds (a K=2 matmul wastes the MXU).
    h = x[:, 0:1] * w[0:1, :] + x[:, 1:2] * w[1:2, :]           # (rows, 128)
    h = jnp.where(h >= 0.0, h, NEG_SLOPE * h)                   # LeakyReLU

    # x = x + res(x): (rows,128)@(128,128) on the MXU.  Operands may be bf16
    # (pre-cast weights); accumulation is always f32.
    wres = wres_t_ref[...]
    h = h + jnp.dot(h.astype(wres.dtype), wres,
                    preferred_element_type=jnp.float32)

    # softmax over dim=2 of the original 4-D tensor, i.e. over the D rows of
    # each (n, c) group.  With D a multiple of 8 the group stays on sublanes.
    h3 = h.reshape(tile_b, d, bp)
    m = jnp.max(h3, axis=1, keepdims=True)
    e = jnp.exp(h3 - m)
    s = jnp.sum(e, axis=1, keepdims=True)
    inv = 1.0 / s                       # D x fewer divides than e / s
    p3 = e * inv                        # (tile_b, d, 128)

    meta = meta_ref[...]                # padded bucket rows are exactly zero
    if fold_output:
        # Lane-dense output slab (tile_b, D*n_embd): D small dots + lane concat.
        pieces = [
            jnp.dot(p3[:, j, :].astype(meta.dtype), meta,
                    preferred_element_type=jnp.float32)
            for j in range(d)
        ]
        out_ref[...] = jnp.concatenate(pieces, axis=-1).astype(out_ref.dtype)
    else:
        p = p3.reshape(tile_b * d, bp)
        out_ref[...] = jnp.dot(p.astype(meta.dtype), meta,
                               preferred_element_type=jnp.float32
                               ).astype(out_ref.dtype)


def _choose_tile_b(requested, nc, d, n_embd, fold_output, out_itemsize):
    """Pick tile_b: big enough to amortize per-step overhead, small enough for
    VMEM, grid >= 2 when possible (v7x has 2 TCs), sublane-aligned blocks."""
    tile_b = max(1, min(int(requested), nc))
    if nc >= 2:
        tile_b = min(tile_b, pl.cdiv(nc, 2))          # keep >= 2 parallel blocks
    # Per-group VMEM estimate: x in (2 bufs), out (2 bufs), ~6 live (rows,128)
    # f32 intermediates.  Budget 24 MiB (< 32 MiB scoped limit everywhere).
    per_group = d * (2 * 2 * 4 + 6 * 128 * 4 + 2 * n_embd * out_itemsize)
    tile_b = min(tile_b, max(1, (24 * 1024 * 1024) // per_group))
    sub = 8 if out_itemsize >= 4 else 16              # sublane tile of out dtype
    if fold_output:
        # out block leading dim = tile_b: multiple of `sub`, or the full axis.
        if tile_b < nc:
            tile_b = (tile_b // sub) * sub
            if tile_b < sub:
                tile_b = nc                           # tiny problem: one block
    else:
        # x / out block leading dim = tile_b*d: multiple of `sub`, or full.
        if tile_b < nc:
            align = sub // math.gcd(d, sub)
            tile_b = max(align, (tile_b // align) * align)
            if tile_b > nc:
                tile_b = nc
    return tile_b


def reward_embedding(x, params, *, tile_b=DEFAULT_TILE_B,
                     matmul_dtype=jnp.bfloat16, out_dtype=jnp.float32):
    """x: (N, C, D, 2) float32 -> (N, C, D, n_embd) out_dtype."""
    N, C, D, two = x.shape
    assert two == 2, "RewardEmbedding expects last input dim == 2"
    n_embd = params["w_bucket"].shape[0]
    B, BP = BUCKET_NUMBER, PADDED_BUCKETS
    f32 = jnp.float32

    # ---- grid-invariant weight prep (done once, outside the kernel) ----
    wret_t = jnp.zeros((2, BP), f32).at[:, :B].set(params["w_ret"].T.astype(f32))
    wres_t = jnp.zeros((BP, BP), f32).at[:B, :B].set(params["w_res"].T.astype(f32))
    bucket_value = jnp.arange(0, 1400, 7, dtype=f32).reshape(B, 2)
    meta = bucket_value @ params["w_bucket"].T.astype(f32) + params["b_bucket"].astype(f32)
    meta_p = jnp.zeros((BP, n_embd), f32).at[:B, :].set(meta)   # padded rows zero

    # Pre-cast MXU operands once (f32 accumulation happens inside the kernel).
    wres_t = wres_t.astype(matmul_dtype)
    meta_p = meta_p.astype(matmul_dtype)

    NC = N * C
    fold_output = (n_embd % 128 != 0)     # lane-dense out slab when n_embd < 128
    out_itemsize = jnp.dtype(out_dtype).itemsize
    tb = _choose_tile_b(tile_b, NC, D, n_embd, fold_output, out_itemsize)
    rows = tb * D
    grid = (pl.cdiv(NC, tb),)             # non-divisible last block is masked

    x2 = x.astype(f32).reshape(NC * D, 2)

    if fold_output:
        out_shape = jax.ShapeDtypeStruct((NC, D * n_embd), out_dtype)
        out_spec = pl.BlockSpec((tb, D * n_embd), lambda i: (i, 0))
    else:
        out_shape = jax.ShapeDtypeStruct((NC * D, n_embd), out_dtype)
        out_spec = pl.BlockSpec((rows, n_embd), lambda i: (i, 0))

    kernel = functools.partial(reward_embedding_kernel, tile_b=tb, d=D,
                               fold_output=fold_output)

    out = pl.pallas_call(
        kernel,
        out_shape=out_shape,
        grid_spec=pltpu.PrefetchScalarGridSpec(
            num_scalar_prefetch=0,
            grid=grid,
            in_specs=[
                pl.BlockSpec((rows, 2), lambda i: (i, 0)),
                pl.BlockSpec((2, BP), lambda i: (0, 0)),
                pl.BlockSpec((BP, BP), lambda i: (0, 0)),
                pl.BlockSpec((BP, n_embd), lambda i: (0, 0)),
            ],
            out_specs=out_spec,
        ),
        compiler_params=pltpu.CompilerParams(
            dimension_semantics=("parallel",),
            vmem_limit_bytes=32 * 1024 * 1024,   # v5e scoped default is only 16 MiB
        ),
    )(x2, wret_t, wres_t, meta_p)

    return out.reshape(N, C, D, n_embd)


def reference(x, params):
    """Pure-JAX replica of the PyTorch forward (for verification)."""
    bucket_value = jnp.arange(0, 1400, 7, dtype=jnp.float32).reshape(100, 2)
    meta = bucket_value @ params["w_bucket"].T + params["b_bucket"]
    h = x @ params["w_ret"].T
    h = jnp.where(h >= 0.0, h, NEG_SLOPE * h)
    h = h + h @ params["w_res"].T
    m = jnp.max(h, axis=2, keepdims=True)
    e = jnp.exp(h - m)
    s = jnp.sum(e, axis=2, keepdims=True)
    p = e / s
    return jnp.einsum("ncdk,km->ncdm", p, meta)


def init_params(key, n_embd):
    """Deterministic synthetic parameters matching the module's __init__ shapes."""
    B = BUCKET_NUMBER
    k1, k2, k3, k4 = jax.random.split(key, 4)
    return {
        # self.bucket = Linear(2, n_embd)
        "w_bucket": jax.random.uniform(k1, (n_embd, 2), jnp.float32, -0.7, 0.7),
        "b_bucket": jax.random.uniform(k2, (n_embd,), jnp.float32, -0.7, 0.7),
        # self.ret_emb_score = Linear(2, B, bias=False)
        "w_ret": jax.random.uniform(k3, (B, 2), jnp.float32, -0.7, 0.7),
        # self.res = Linear(B, B, bias=False)
        "w_res": jax.random.uniform(k4, (B, B), jnp.float32, -0.1, 0.1),
        # TODO(synk): self.temp(x) is computed in the PyTorch forward but its
        # result is never used; the dead branch (and its weights) are omitted.
    }


if __name__ == "__main__":
    key = jax.random.PRNGKey(0)

    configs = [
        # (N, C, D, n_embd, tile_b, matmul_dtype, rel_tol_vs_max)
        (2, 128, 8, 128, 512, jnp.bfloat16, 2e-2),  # lane-dense, bf16 MXU, grid=2
        (2, 39, 8, 128, 16, jnp.float32, None),     # masked non-divisible tail, exact f32
        (3, 7, 8, 64, 256, jnp.float32, None),      # folded lane-dense out + masked tail
        (2, 3, 8, 32, 256, jnp.float32, None),      # tiny original-style config (grid=1)
    ]
    for idx, (N, C, D, n_embd, tb, mdt, rel_tol) in enumerate(configs):
        k_x, k_p, key = jax.random.split(key, 3)
        x = jax.random.normal(k_x, (N, C, D, 2), dtype=jnp.float32)
        params = init_params(k_p, n_embd)

        out = jax.block_until_ready(
            reward_embedding(x, params, tile_b=tb, matmul_dtype=mdt))
        ref = jax.block_until_ready(reference(x, params))

        assert out.shape == (N, C, D, n_embd), (idx, out.shape)
        max_err = float(jnp.max(jnp.abs(out - ref)))
        if rel_tol is None:
            ok = bool(jnp.allclose(out, ref, rtol=1e-4, atol=1e-2))
        else:
            scale = float(jnp.max(jnp.abs(ref)))
            ok = max_err <= rel_tol * scale
        if not ok:
            raise AssertionError(
                f"config {idx}: Pallas kernel mismatch, max abs err {max_err}")

    print("KERNEL_OK")
</pallas_src>

<mosaic_0001>
module attributes {stable_mosaic.version = 11 : i64} {
  func.func @reward_embedding_kernel(%arg0: i32, %arg1: memref<1024x2xf32, #tpu.memory_space<vmem>>, %arg2: memref<2x128xf32, #tpu.memory_space<vmem>>, %arg3: memref<128x128xbf16, #tpu.memory_space<vmem>>, %arg4: memref<128x128xbf16, #tpu.memory_space<vmem>>, %arg5: memref<1024x128xf32, #tpu.memory_space<vmem>>) attributes {dimension_semantics = [#tpu.dimension_semantics<parallel>], iteration_bounds = array<i64: 2>, scalar_prefetch = 0 : i64, scratch_operands = 0 : i64, tpu.core_type = #tpu.core_type<tc>, window_params = [{transform_indices = @transform_0, window_bounds = array<i64: 1024, 2>}, {pipeline_mode = #tpu.pipeline_mode<synchronous>, transform_indices = @transform_1, window_bounds = array<i64: 2, 128>}, {pipeline_mode = #tpu.pipeline_mode<synchronous>, transform_indices = @transform_2, window_bounds = array<i64: 128, 128>}, {pipeline_mode = #tpu.pipeline_mode<synchronous>, transform_indices = @transform_3, window_bounds = array<i64: 128, 128>}, {transform_indices = @transform_4, window_bounds = array<i64: 1024, 128>}]} {
    %c0 = arith.constant 0 : index
    %c0_0 = arith.constant 0 : index
    %0 = vector.load %arg1[%c0, %c0_0] : memref<1024x2xf32, #tpu.memory_space<vmem>>, vector<1024x2xf32>
    %c0_1 = arith.constant 0 : index
    %c0_2 = arith.constant 0 : index
    %1 = vector.load %arg2[%c0_1, %c0_2] : memref<2x128xf32, #tpu.memory_space<vmem>>, vector<2x128xf32>
    %2 = vector.extract_strided_slice %0 {offsets = [0, 0], sizes = [1024, 1], strides = [1, 1]} : vector<1024x2xf32> to vector<1024x1xf32>
    %3 = vector.extract_strided_slice %1 {offsets = [0, 0], sizes = [1, 128], strides = [1, 1]} : vector<2x128xf32> to vector<1x128xf32>
    %4 = vector.broadcast %2 : vector<1024x1xf32> to vector<1024x128xf32>
    %5 = vector.broadcast %3 : vector<1x128xf32> to vector<1024x128xf32>
    %6 = arith.mulf %4, %5 : vector<1024x128xf32>
    %7 = vector.extract_strided_slice %0 {offsets = [0, 1], sizes = [1024, 1], strides = [1, 1]} : vector<1024x2xf32> to vector<1024x1xf32>
    %8 = vector.extract_strided_slice %1 {offsets = [1, 0], sizes = [1, 128], strides = [1, 1]} : vector<2x128xf32> to vector<1x128xf32>
    %9 = vector.broadcast %7 : vector<1024x1xf32> to vector<1024x128xf32>
    %10 = vector.broadcast %8 : vector<1x128xf32> to vector<1024x128xf32>
    %11 = arith.mulf %9, %10 : vector<1024x128xf32>
    %12 = arith.addf %6, %11 : vector<1024x128xf32>
    %cst = arith.constant 0.000000e+00 : f32
    %13 = vector.broadcast %cst : f32 to vector<1024x128xf32>
    %14 = arith.cmpf oge, %12, %13 : vector<1024x128xf32>
    %cst_3 = arith.constant 0.00999999977 : f32
    %15 = vector.broadcast %cst_3 : f32 to vector<1024x128xf32>
    %16 = arith.mulf %15, %12 : vector<1024x128xf32>
    %17 = arith.select %14, %12, %16 : vector<1024x128xi1>, vector<1024x128xf32>
    %c0_4 = arith.constant 0 : index
    %c0_5 = arith.constant 0 : index
    %18 = vector.load %arg3[%c0_4, %c0_5] : memref<128x128xbf16, #tpu.memory_space<vmem>>, vector<128x128xbf16>
    %19 = arith.truncf %17 : vector<1024x128xf32> to vector<1024x128xbf16>
    %cst_6 = arith.constant dense<0.000000e+00> : vector<1024x128xf32>
    %20 = tpu.matmul %19, %18, %cst_6 {dimension_numbers = #tpu.dot_dimension_numbers<[1], [0], [0], [1], [0, 0, 1, 1], [], []>} : vector<1024x128xbf16>, vector<128x128xbf16>, vector<1024x128xf32> -> vector<1024x128xf32>
    %21 = arith.addf %17, %20 : vector<1024x128xf32>
    %22 = vector.shape_cast %21 : vector<1024x128xf32> to vector<128x8x128xf32>
    %cst_7 = arith.constant dense<0xFF800000> : vector<128x128xf32>
    %23 = vector.multi_reduction <maximumf>, %22, %cst_7 [1] : vector<128x8x128xf32> to vector<128x128xf32>
    %24 = vector.shape_cast %23 : vector<128x128xf32> to vector<128x1x128xf32>
    %25 = vector.broadcast %24 : vector<128x1x128xf32> to vector<128x8x128xf32>
    %26 = arith.subf %22, %25 : vector<128x8x128xf32>
    %27 = math.exp %26 : vector<128x8x128xf32>
    %cst_8 = arith.constant dense<0.000000e+00> : vector<128x128xf32>
    %28 = vector.multi_reduction <add>, %27, %cst_8 [1] : vector<128x8x128xf32> to vector<128x128xf32>
    %29 = vector.shape_cast %28 : vector<128x128xf32> to vector<128x1x128xf32>
    %cst_9 = arith.constant 1.000000e+00 : f32
    %30 = vector.broadcast %cst_9 : f32 to vector<128x1x128xf32>
    %31 = arith.divf %30, %29 : vector<128x1x128xf32>
    %32 = vector.broadcast %31 : vector<128x1x128xf32> to vector<128x8x128xf32>
    %33 = arith.mulf %27, %32 : vector<128x8x128xf32>
    %c0_10 = arith.constant 0 : index
    %c0_11 = arith.constant 0 : index
    %34 = vector.load %arg4[%c0_10, %c0_11] : memref<128x128xbf16, #tpu.memory_space<vmem>>, vector<128x128xbf16>
    %35 = vector.shape_cast %33 : vector<128x8x128xf32> to vector<1024x128xf32>
    %36 = arith.truncf %35 : vector<1024x128xf32> to vector<1024x128xbf16>
    %cst_12 = arith.constant dense<0.000000e+00> : vector<1024x128xf32>
    %37 = tpu.matmul %36, %34, %cst_12 {dimension_numbers = #tpu.dot_dimension_numbers<[1], [0], [0], [1], [0, 0, 1, 1], [], []>} : vector<1024x128xbf16>, vector<128x128xbf16>, vector<1024x128xf32> -> vector<1024x128xf32>
    %c0_13 = arith.constant 0 : index
    %c0_14 = arith.constant 0 : index
    %38 = vector.load %arg5[%c0_13, %c0_14] : memref<1024x128xf32, #tpu.memory_space<vmem>>, vector<1024x128xf32>
    tpu.vector_store %arg5[%c0_13, %c0_14], %37 {strides = array<i32>} : memref<1024x128xf32, #tpu.memory_space<vmem>>, vector<1024x128xf32>,
    return
  }
  func.func @transform_0(%arg0: i32) -> (i32, i32) {
    %c0_i32 = arith.constant 0 : i32
    %c0_i32_0 = arith.constant 0 : i32
    return %arg0, %c0_i32 : i32, i32
  }
  func.func @transform_1(%arg0: i32) -> (i32, i32) {
    %c0_i32 = arith.constant 0 : i32
    %c0_i32_0 = arith.constant 0 : i32
    %c0_i32_1 = arith.constant 0 : i32
    return %c0_i32, %c0_i32_0 : i32, i32
  }
  func.func @transform_2(%arg0: i32) -> (i32, i32) {
    %c0_i32 = arith.constant 0 : i32
    %c0_i32_0 = arith.constant 0 : i32
    %c0_i32_1 = arith.constant 0 : i32
    return %c0_i32, %c0_i32_0 : i32, i32
  }
  func.func @transform_3(%arg0: i32) -> (i32, i32) {
    %c0_i32 = arith.constant 0 : i32
    %c0_i32_0 = arith.constant 0 : i32
    %c0_i32_1 = arith.constant 0 : i32
    return %c0_i32, %c0_i32_0 : i32, i32
  }
  func.func @transform_4(%arg0: i32) -> (i32, i32) {
    %c0_i32 = arith.constant 0 : i32
    %c0_i32_0 = arith.constant 0 : i32
    return %arg0, %c0_i32 : i32, i32
  }
}

</mosaic_0001>

<llo_original>
// kernel: tpu_custom_call.1
$region0: #{tpu_custom_call.1}
  #allocation0 [shape = 'u32[]', space=smem, size = 0x4, offset = 0x4, fixed_abs, tag = 'smem constant byte address 0x4 - core index']
  #allocation1 [shape = 'u32[144,128]{1,0:T(1,128)}', space=vmem, size = 0x12000, scoped, tag = 'internal scratch']
  %s0 = inlined_call_operand.vmem [shape: f32[2048,2], index: 0, kind: input, shape index: {}]
  %s1 = inlined_call_operand.vmem [shape: f32[2,128], index: 1, kind: input, shape index: {}]
  %s2 = inlined_call_operand.vmem [shape: bf16[128,128], index: 2, kind: input, shape index: {}]
  %s3 = inlined_call_operand.vmem [shape: bf16[128,128], index: 3, kind: input, shape index: {}]
  %s4 = inlined_call_operand.hbm [shape: f32[2048,128], index: 4, kind: output, shape index: {}]
  %s5 = sld [smem:[#allocation0]]
  $region49: #{tpu_custom_call.1} parent=0
    _
  %s7 = ssub.s32 1, %s5
  %s8 = scalar_select 0, %s7, %s5
  $region1: #{tpu_custom_call.1} parent=0
    #allocation2 [shape = 'u8[1048576]{0}', space=vmem, size = 0x100000, scoped, tag = 'output window, operand 0']
    #allocation3 [shape = 's32[2]{0}', space=sflag, size = 0x8, scoped, tag = 'scoped memory for tpu_custom_call.1']
    %9 = vsyncpa [#allocation3], 0
    %s10 = scalar_lea.sflag [#allocation3], 1
    %11 = vsyncpa %s10, 0
    loop: start=0, step=1, limit=4
    $region2: #{tpu_custom_call.1} parent=1 // loop_pre_header
      _
    $region3: #{tpu_custom_call.1} parent=1 // loop_header
      %s13 = sphi 0, %s17
      %p14 = scmp.ge.s32.totalorder %s13, 4
      %s23 = sphi 0, %s25
      %s26 = sphi 0, %s23
      %s27 = sphi 0, %s26
      %s43 = sphi 0, %s27
      %s47 = sphi 0, %s47
      %s49 = sphi 0, %s47
      %s50 = sphi 0, %s49
      %s64 = sphi 0, %s50
      %s68 = sphi 0, %s68
      %s70 = sphi 0, %s68
      %s71 = sphi 0, %s70
      %s85 = sphi 0, %s71
      %s89 = sphi 0, %s89
      %s91 = sphi 0, %s89
      %s92 = sphi 0, %s91
      %s106 = sphi 0, %s92
      %s112 = sphi 0, %s114
      %s115 = sphi 0, %s112
      %s116 = sphi 0, %s115
      %s132 = sphi 0, %s116
    $region4: #{tpu_custom_call.1} parent=1 // loop_header_branch
      %16 = sbr.rel (%p14) target = $region8
    $region5: #{tpu_custom_call.1} parent=1 // loop_body
      %s18 = ssub.s32 %s13, 1
      %s19 = ssub.s32 %s13, 2
      %s20 = sadd.s32 %s13, 1
      %s21 = ssub.s32 %s13, %s20
      %p22 = scmp.eq.s32.totalorder %s21, 0
      %s24 = sadd.s32 %s23, 1
      %s25 = scalar_select %p22, %s23, %s24
      %p28 = pneg %p22
      %p29 = scmp.eq.s32.totalorder %s13, 1
      %p30 = por %p28, %p29
      %p31 = scmp.ne.s32.totalorder %s23, %s26
      %p32 = scmp.eq.s32.totalorder %s13, 0
      %p33 = por %p31, %p32
      %p34 = scmp.ne.s32.totalorder %s23, %s26
      %p35 = scmp.eq.s32.totalorder %s18, 1
      %p36 = por %p34, %p35
      %p37 = scmp.ne.s32.totalorder %s26, %s27
      %p38 = scmp.eq.s32.totalorder %s18, 0
      %p39 = por %p37, %p38
      %p40 = scmp.ne.s32.totalorder %s26, %s27
      %p41 = scmp.eq.s32.totalorder %s19, 1
      %p42 = por %p40, %p41
      %p44 = scmp.ne.s32.totalorder %s27, %s43
      %p45 = scmp.eq.s32.totalorder %s19, 0
      %p46 = por %p44, %p45
      %s48 = sadd.s32 %s47, 1
      %p51 = scmp.eq.s32.totalorder %s13, 1
      %p52 = scmp.ne.s32.totalorder %s47, %s49
      %p53 = scmp.eq.s32.totalorder %s13, 0
      %p54 = por %p52, %p53
      %p55 = scmp.ne.s32.totalorder %s47, %s49
      %p56 = scmp.eq.s32.totalorder %s18, 1
      %p57 = por %p55, %p56
      %p58 = scmp.ne.s32.totalorder %s49, %s50
      %p59 = scmp.eq.s32.totalorder %s18, 0
      %p60 = por %p58, %p59
      %p61 = scmp.ne.s32.totalorder %s49, %s50
      %p62 = scmp.eq.s32.totalorder %s19, 1
      %p63 = por %p61, %p62
      %p65 = scmp.ne.s32.totalorder %s50, %s64
      %p66 = scmp.eq.s32.totalorder %s19, 0
      %p67 = por %p65, %p66
      %s69 = sadd.s32 %s68, 1
      %p72 = scmp.eq.s32.totalorder %s13, 1
      %p73 = scmp.ne.s32.totalorder %s68, %s70
      %p74 = scmp.eq.s32.totalorder %s13, 0
      %p75 = por %p73, %p74
      %p76 = scmp.ne.s32.totalorder %s68, %s70
      %p77 = scmp.eq.s32.totalorder %s18, 1
      %p78 = por %p76, %p77
      %p79 = scmp.ne.s32.totalorder %s70, %s71
      %p80 = scmp.eq.s32.totalorder %s18, 0
      %p81 = por %p79, %p80
      %p82 = scmp.ne.s32.totalorder %s70, %s71
      %p83 = scmp.eq.s32.totalorder %s19, 1
      %p84 = por %p82, %p83
      %p86 = scmp.ne.s32.totalorder %s71, %s85
      %p87 = scmp.eq.s32.totalorder %s19, 0
      %p88 = por %p86, %p87
      %s90 = sadd.s32 %s89, 1
      %p93 = scmp.eq.s32.totalorder %s13, 1
      %p94 = scmp.ne.s32.totalorder %s89, %s91
      %p95 = scmp.eq.s32.totalorder %s13, 0
      %p96 = por %p94, %p95
      %p97 = scmp.ne.s32.totalorder %s89, %s91
      %p98 = scmp.eq.s32.totalorder %s18, 1
      %p99 = por %p97, %p98
      %p100 = scmp.ne.s32.totalorder %s91, %s92
      %p101 = scmp.eq.s32.totalorder %s18, 0
      %p102 = por %p100, %p101
      %p103 = scmp.ne.s32.totalorder %s91, %s92
      %p104 = scmp.eq.s32.totalorder %s19, 1
      %p105 = por %p103, %p104
      %p107 = scmp.ne.s32.totalorder %s92, %s106
      %p108 = scmp.eq.s32.totalorder %s19, 0
      %p109 = por %p107, %p108
      %s110 = ssub.s32 %s13, %s20
      %p111 = scmp.eq.s32.totalorder %s110, 0
      %s113 = sadd.s32 %s112, 1
      %s114 = scalar_select %p111, %s112, %s113
      %p117 = pneg %p111
      %p118 = scmp.eq.s32.totalorder %s13, 1
      %p119 = por %p117, %p118
      %p120 = scmp.ne.s32.totalorder %s112, %s115
      %p121 = scmp.eq.s32.totalorder %s13, 0
      %p122 = por %p120, %p121
      %p123 = scmp.ne.s32.totalorder %s112, %s115
      %p124 = scmp.eq.s32.totalorder %s18, 1
      %p125 = por %p123, %p124
      %p126 = scmp.ne.s32.totalorder %s115, %s116
      %p127 = scmp.eq.s32.totalorder %s18, 0
      %p128 = por %p126, %p127
      %p129 = scmp.ne.s32.totalorder %s115, %s116
      %p130 = scmp.eq.s32.totalorder %s19, 1
      %p131 = por %p129, %p130
      %p133 = scmp.ne.s32.totalorder %s116, %s132
      %p134 = scmp.eq.s32.totalorder %s19, 0
      %p135 = por %p133, %p134
      %p136 = scmp.le.s32.totalorder 1, %s13
      %p137 = scmp.lt.s32.totalorder %s13, 3
      %p138 = pnand %p136, %p137
      %p139 = pneg %p138
      // Predicated region
      $region9: #{tpu_custom_call.1} parent=5 // pred_check
        _
      $region10: #{tpu_custom_call.1} parent=5 // pred_check_branch
        %141 = sbr.rel (%p138) target = $region12
      $region11: #{tpu_custom_call.1} parent=5 // pred_region
        %s142 = ssub.s32 %s13, 1
        // Predicated region
        $region13: #{tpu_custom_call.1} parent=11 // pred_check
          %p143 = pneg %p60
        $region14: #{tpu_custom_call.1} parent=11 // pred_check_branch
          %145 = sbr.rel (%p143) target = $region16
        $region15: #{tpu_custom_call.1} parent=11 // pred_region
          _
        $region16: #{tpu_custom_call.1} parent=11 // pred_fallthru
          _
        // Predicated region
        $region17: #{tpu_custom_call.1} parent=11 // pred_check
          %p146 = pneg %p81
        $region18: #{tpu_custom_call.1} parent=11 // pred_check_branch
          %148 = sbr.rel (%p146) target = $region20
        $region19: #{tpu_custom_call.1} parent=11 // pred_region
          _
        $region20: #{tpu_custom_call.1} parent=11 // pred_fallthru
          _
        // Predicated region
        $region21: #{tpu_custom_call.1} parent=11 // pred_check
          %p149 = pneg %p102
        $region22: #{tpu_custom_call.1} parent=11 // pred_check_branch
          %151 = sbr.rel (%p149) target = $region24
        $region23: #{tpu_custom_call.1} parent=11 // pred_region
          _
        $region24: #{tpu_custom_call.1} parent=11 // pred_fallthru
          _
      $region12: #{tpu_custom_call.1} parent=5 // pred_fallthru
        _
      %p152 = scmp.lt.s32.totalorder %s13, 2
      // Predicated region
      $region25: #{tpu_custom_call.1} parent=5 // pred_check
        %p153 = pneg %p152
      $region26: #{tpu_custom_call.1} parent=5 // pred_check_branch
        %155 = sbr.rel (%p153) target = $region28
      $region27: #{tpu_custom_call.1} parent=5 // pred_region
        // Predicated region
        $region29: #{tpu_custom_call.1} parent=27 // pred_check
          %p156 = pneg %p33
        $region30: #{tpu_custom_call.1} parent=27 // pred_check_branch
          %158 = sbr.rel (%p156) target = $region32
        $region31: #{tpu_custom_call.1} parent=27 // pred_region
          %s159 = smul.u32 128, %s13
          %p160 = scmp.lt.s32.totalorder %s159, 255
          %s161 = scalar_select %p160, %s159, 255
          %s162 = smul.addr %s161, 8
          %s163 = scalar_lea.vmem %s0, %s162
          %s164 = smul.u32 128, %s13
        $region32: #{tpu_custom_call.1} parent=27 // pred_fallthru
          _
      $region28: #{tpu_custom_call.1} parent=5 // pred_fallthru
        _
      %p165 = scmp.le.s32.totalorder 1, %s13
      %p166 = scmp.lt.s32.totalorder %s13, 3
      %p167 = pnand %p165, %p166
      %p168 = pneg %p167
      // Predicated region
      $region33: #{tpu_custom_call.1} parent=5 // pred_check
        _
      $region34: #{tpu_custom_call.1} parent=5 // pred_check_branch
        %170 = sbr.rel (%p167) target = $region36
      $region35: #{tpu_custom_call.1} parent=5 // pred_region
        %s171 = ssub.s32 %s13, 1
        %s172 = smul.u32 128, %s18
        %p173 = scmp.lt.s32.totalorder %s172, 255
        %s174 = scalar_select %p173, %s172, 255
        %s175 = smul.addr %s174, 8
        %s176 = scalar_lea.vmem %s0, %s175
        %p177 = pneg %p39
        %p178 = pneg %p36
        %p179 = pneg %p60
        %p180 = pneg %p57
        %p181 = pneg %p81
        %p182 = pneg %p78
        %p183 = pneg %p102
        %p184 = pneg %p99
        %p185 = pneg %p128
        %p186 = pneg %p125
        %s187 = sand.u32 %s115, 1
        %s188 = scalar_lea.sflag [#allocation3], %s187
        %s189 = sand.u32 %s115, 1
        %s190 = smul.addr %s189, 1024
        %s191 = scalar_lea.vmem [#allocation2], %s190
        %s192 = smul.u32 128, %s18
        %p193 = scmp.lt.s32.totalorder %s192, 255
        %s194 = scalar_select %p193, %s192, 255
        %s195 = smul.addr %s194, 8
        %s196 = scalar_lea.vmem %s0, %s195
        %s197 = smul.u32 128, %s18
        %s198 = smul.u32 128, %s18
        %v200 = vld [vmem:[%s196] sm:$0xff]
        %v201 = vld [vmem:[%s196 + $0x8] sm:$0xff]
        %v202 = vld [vmem:[%s196 + $0x10] sm:$0xff]
        %v203 = vld [vmem:[%s196 + $0x18] sm:$0xff]
        %v204 = vld [vmem:[%s196 + $0x20] sm:$0xff]
        %v205 = vld [vmem:[%s196 + $0x28] sm:$0xff]
        %v206 = vld [vmem:[%s196 + $0x30] sm:$0xff]
        %v207 = vld [vmem:[%s196 + $0x38] sm:$0xff]
        %v208 = vld [vmem:[%s196 + $0x40] sm:$0xff]
        %v209 = vld [vmem:[%s196 + $0x48] sm:$0xff]
        %v210 = vld [vmem:[%s196 + $0x50] sm:$0xff]
        %v211 = vld [vmem:[%s196 + $0x58] sm:$0xff]
        %v212 = vld [vmem:[%s196 + $0x60] sm:$0xff]
        %v213 = vld [vmem:[%s196 + $0x68] sm:$0xff]
        %v214 = vld [vmem:[%s196 + $0x70] sm:$0xff]
        %v215 = vld [vmem:[%s196 + $0x78] sm:$0xff]
        %v216 = vld [vmem:[%s196 + $0x80] sm:$0xff]
        %v217 = vld [vmem:[%s196 + $0x88] sm:$0xff]
        %v218 = vld [vmem:[%s196 + $0x90] sm:$0xff]
        %v219 = vld [vmem:[%s196 + $0x98] sm:$0xff]
        %v220 = vld [vmem:[%s196 + $0xa0] sm:$0xff]
        %v221 = vld [vmem:[%s196 + $0xa8] sm:$0xff]
        %v222 = vld [vmem:[%s196 + $0xb0] sm:$0xff]
        %v223 = vld [vmem:[%s196 + $0xb8] sm:$0xff]
        %v224 = vld [vmem:[%s196 + $0xc0] sm:$0xff]
        %v225 = vld [vmem:[%s196 + $0xc8] sm:$0xff]
        %v226 = vld [vmem:[%s196 + $0xd0] sm:$0xff]
        %v227 = vld [vmem:[%s196 + $0xd8] sm:$0xff]
        %v228 = vld [vmem:[%s196 + $0xe0] sm:$0xff]
        %v229 = vld [vmem:[%s196 + $0xe8] sm:$0xff]
        %v230 = vld [vmem:[%s196 + $0xf0] sm:$0xff]
        %v231 = vld [vmem:[%s196 + $0xf8] sm:$0xff]
        %v232 = vld [vmem:[%s196 + $0x100] sm:$0xff]
        %v233 = vld [vmem:[%s196 + $0x108] sm:$0xff]
        %v234 = vld [vmem:[%s196 + $0x110] sm:$0xff]
        %v235 = vld [vmem:[%s196 + $0x118] sm:$0xff]
        %v236 = vld [vmem:[%s196 + $0x120] sm:$0xff]
        %v237 = vld [vmem:[%s196 + $0x128] sm:$0xff]
        %v238 = vld [vmem:[%s196 + $0x130] sm:$0xff]
        %v239 = vld [vmem:[%s196 + $0x138] sm:$0xff]
        %v240 = vld [vmem:[%s196 + $0x140] sm:$0xff]
        %v241 = vld [vmem:[%s196 + $0x148] sm:$0xff]
        %v242 = vld [vmem:[%s196 + $0x150] sm:$0xff]
        %v243 = vld [vmem:[%s196 + $0x158] sm:$0xff]
        %v244 = vld [vmem:[%s196 + $0x160] sm:$0xff]
        %v245 = vld [vmem:[%s196 + $0x168] sm:$0xff]
        %v246 = vld [vmem:[%s196 + $0x170] sm:$0xff]
        %v247 = vld [vmem:[%s196 + $0x178] sm:$0xff]
        %v248 = vld [vmem:[%s196 + $0x180] sm:$0xff]
        %v249 = vld [vmem:[%s196 + $0x188] sm:$0xff]
        %v250 = vld [vmem:[%s196 + $0x190] sm:$0xff]
        %v251 = vld [vmem:[%s196 + $0x198] sm:$0xff]
        %v252 = vld [vmem:[%s196 + $0x1a0] sm:$0xff]
        %v253 = vld [vmem:[%s196 + $0x1a8] sm:$0xff]
        %v254 = vld [vmem:[%s196 + $0x1b0] sm:$0xff]
        %v255 = vld [vmem:[%s196 + $0x1b8] sm:$0xff]
        %v256 = vld [vmem:[%s196 + $0x1c0] sm:$0xff]
        %v257 = vld [vmem:[%s196 + $0x1c8] sm:$0xff]
        %v258 = vld [vmem:[%s196 + $0x1d0] sm:$0xff]
        %v259 = vld [vmem:[%s196 + $0x1d8] sm:$0xff]
        %v260 = vld [vmem:[%s196 + $0x1e0] sm:$0xff]
        %v261 = vld [vmem:[%s196 + $0x1e8] sm:$0xff]
        %v262 = vld [vmem:[%s196 + $0x1f0] sm:$0xff]
        %v263 = vld [vmem:[%s196 + $0x1f8] sm:$0xff]
        %v264 = vld [vmem:[%s196 + $0x200] sm:$0xff]
        %v265 = vld [vmem:[%s196 + $0x208] sm:$0xff]
        %v266 = vld [vmem:[%s196 + $0x210] sm:$0xff]
        %v267 = vld [vmem:[%s196 + $0x218] sm:$0xff]
        %v268 = vld [vmem:[%s196 + $0x220] sm:$0xff]
        %v269 = vld [vmem:[%s196 + $0x228] sm:$0xff]
        %v270 = vld [vmem:[%s196 + $0x230] sm:$0xff]
        %v271 = vld [vmem:[%s196 + $0x238] sm:$0xff]
        %v272 = vld [vmem:[%s196 + $0x240] sm:$0xff]
        %v273 = vld [vmem:[%s196 + $0x248] sm:$0xff]
        %v274 = vld [vmem:[%s196 + $0x250] sm:$0xff]
        %v275 = vld [vmem:[%s196 + $0x258] sm:$0xff]
        %v276 = vld [vmem:[%s196 + $0x260] sm:$0xff]
        %v277 = vld [vmem:[%s196 + $0x268] sm:$0xff]
        %v278 = vld [vmem:[%s196 + $0x270] sm:$0xff]
        %v279 = vld [vmem:[%s196 + $0x278] sm:$0xff]
        %v280 = vld [vmem:[%s196 + $0x280] sm:$0xff]
        %v281 = vld [vmem:[%s196 + $0x288] sm:$0xff]
        %v282 = vld [vmem:[%s196 + $0x290] sm:$0xff]
        %v283 = vld [vmem:[%s196 + $0x298] sm:$0xff]
        %v284 = vld [vmem:[%s196 + $0x2a0] sm:$0xff]
        %v285 = vld [vmem:[%s196 + $0x2a8] sm:$0xff]
        %v286 = vld [vmem:[%s196 + $0x2b0] sm:$0xff]
        %v287 = vld [vmem:[%s196 + $0x2b8] sm:$0xff]
        %v288 = vld [vmem:[%s196 + $0x2c0] sm:$0xff]
        %v289 = vld [vmem:[%s196 + $0x2c8] sm:$0xff]
        %v290 = vld [vmem:[%s196 + $0x2d0] sm:$0xff]
        %v291 = vld [vmem:[%s196 + $0x2d8] sm:$0xff]
        %v292 = vld [vmem:[%s196 + $0x2e0] sm:$0xff]
        %v293 = vld [vmem:[%s196 + $0x2e8] sm:$0xff]
        %v294 = vld [vmem:[%s196 + $0x2f0] sm:$0xff]
        %v295 = vld [vmem:[%s196 + $0x2f8] sm:$0xff]
        %v296 = vld [vmem:[%s196 + $0x300] sm:$0xff]
        %v297 = vld [vmem:[%s196 + $0x308] sm:$0xff]
        %v298 = vld [vmem:[%s196 + $0x310] sm:$0xff]
        %v299 = vld [vmem:[%s196 + $0x318] sm:$0xff]
        %v300 = vld [vmem:[%s196 + $0x320] sm:$0xff]
        %v301 = vld [vmem:[%s196 + $0x328] sm:$0xff]
        %v302 = vld [vmem:[%s196 + $0x330] sm:$0xff]
        %v303 = vld [vmem:[%s196 + $0x338] sm:$0xff]
        %v304 = vld [vmem:[%s196 + $0x340] sm:$0xff]
        %v305 = vld [vmem:[%s196 + $0x348] sm:$0xff]
        %v306 = vld [vmem:[%s196 + $0x350] sm:$0xff]
        %v307 = vld [vmem:[%s196 + $0x358] sm:$0xff]
        %v308 = vld [vmem:[%s196 + $0x360] sm:$0xff]
        %v309 = vld [vmem:[%s196 + $0x368] sm:$0xff]
        %v310 = vld [vmem:[%s196 + $0x370] sm:$0xff]
        %v311 = vld [vmem:[%s196 + $0x378] sm:$0xff]
        %v312 = vld [vmem:[%s196 + $0x380] sm:$0xff]
        %v313 = vld [vmem:[%s196 + $0x388] sm:$0xff]
        %v314 = vld [vmem:[%s196 + $0x390] sm:$0xff]
        %v315 = vld [vmem:[%s196 + $0x398] sm:$0xff]
        %v316 = vld [vmem:[%s196 + $0x3a0] sm:$0xff]
        %v317 = vld [vmem:[%s196 + $0x3a8] sm:$0xff]
        %v318 = vld [vmem:[%s196 + $0x3b0] sm:$0xff]
        %v319 = vld [vmem:[%s196 + $0x3b8] sm:$0xff]
        %v320 = vld [vmem:[%s196 + $0x3c0] sm:$0xff]
        %v321 = vld [vmem:[%s196 + $0x3c8] sm:$0xff]
        %v322 = vld [vmem:[%s196 + $0x3d0] sm:$0xff]
        %v323 = vld [vmem:[%s196 + $0x3d8] sm:$0xff]
        %v324 = vld [vmem:[%s196 + $0x3e0] sm:$0xff]
        %v325 = vld [vmem:[%s196 + $0x3e8] sm:$0xff]
        %v326 = vld [vmem:[%s196 + $0x3f0] sm:$0xff]
        %v327 = vld [vmem:[%s196 + $0x3f8] sm:$0xff]
        %v328 = vld [vmem:[%s1] sm:$0x3]
        %330 = vset.pattern.permute.xlu0 0
        %331 = vperm.xlu0 %330, %v200
        %v332 = vpop.permute.xlu0 %331
        %335 = vset.pattern.permute.xlu0 0
        %336 = vperm.xlu0 %335, %v201
        %v337 = vpop.permute.xlu0 %336
        %340 = vset.pattern.permute.xlu0 0
        %341 = vperm.xlu0 %340, %v202
        %v342 = vpop.permute.xlu0 %341
        %345 = vset.pattern.permute.xlu0 0
        %346 = vperm.xlu0 %345, %v203
        %v347 = vpop.permute.xlu0 %346
        %350 = vset.pattern.permute.xlu0 0
        %351 = vperm.xlu0 %350, %v204
        %v352 = vpop.permute.xlu0 %351
        %355 = vset.pattern.permute.xlu0 0
        %356 = vperm.xlu0 %355, %v205
        %v357 = vpop.permute.xlu0 %356
        %360 = vset.pattern.permute.xlu0 0
        %361 = vperm.xlu0 %360, %v206
        %v362 = vpop.permute.xlu0 %361
        %365 = vset.pattern.permute.xlu0 0
        %366 = vperm.xlu0 %365, %v207
        %v367 = vpop.permute.xlu0 %366
        %370 = vset.pattern.permute.xlu0 0
        %371 = vperm.xlu0 %370, %v208
        %v372 = vpop.permute.xlu0 %371
        %375 = vset.pattern.permute.xlu0 0
        %376 = vperm.xlu0 %375, %v209
        %v377 = vpop.permute.xlu0 %376
        %380 = vset.pattern.permute.xlu0 0
        %381 = vperm.xlu0 %380, %v210
        %v382 = vpop.permute.xlu0 %381
        %385 = vset.pattern.permute.xlu0 0
        %386 = vperm.xlu0 %385, %v211
        %v387 = vpop.permute.xlu0 %386
        %390 = vset.pattern.permute.xlu0 0
        %391 = vperm.xlu0 %390, %v212
        %v392 = vpop.permute.xlu0 %391
        %395 = vset.pattern.permute.xlu0 0
        %396 = vperm.xlu0 %395, %v213
        %v397 = vpop.permute.xlu0 %396
        %400 = vset.pattern.permute.xlu0 0
        %401 = vperm.xlu0 %400, %v214
        %v402 = vpop.permute.xlu0 %401
        %405 = vset.pattern.permute.xlu0 0
        %406 = vperm.xlu0 %405, %v215
        %v407 = vpop.permute.xlu0 %406
        %410 = vset.pattern.permute.xlu0 0
        %411 = vperm.xlu0 %410, %v216
        %v412 = vpop.permute.xlu0 %411
        %415 = vset.pattern.permute.xlu0 0
        %416 = vperm.xlu0 %415, %v217
        %v417 = vpop.permute.xlu0 %416
        %420 = vset.pattern.permute.xlu0 0
        %421 = vperm.xlu0 %420, %v218
        %v422 = vpop.permute.xlu0 %421
        %425 = vset.pattern.permute.xlu0 0
        %426 = vperm.xlu0 %425, %v219
        %v427 = vpop.permute.xlu0 %426
        %430 = vset.pattern.permute.xlu0 0
        %431 = vperm.xlu0 %430, %v220
        %v432 = vpop.permute.xlu0 %431
        %435 = vset.pattern.permute.xlu0 0
        %436 = vperm.xlu0 %435, %v221
        %v437 = vpop.permute.xlu0 %436
        %440 = vset.pattern.permute.xlu0 0
        %441 = vperm.xlu0 %440, %v222
        %v442 = vpop.permute.xlu0 %441
        %445 = vset.pattern.permute.xlu0 0
        %446 = vperm.xlu0 %445, %v223
        %v447 = vpop.permute.xlu0 %446
        %450 = vset.pattern.permute.xlu0 0
        %451 = vperm.xlu0 %450, %v224
        %v452 = vpop.permute.xlu0 %451
        %455 = vset.pattern.permute.xlu0 0
        %456 = vperm.xlu0 %455, %v225
        %v457 = vpop.permute.xlu0 %456
        %460 = vset.pattern.permute.xlu0 0
        %461 = vperm.xlu0 %460, %v226
        %v462 = vpop.permute.xlu0 %461
        %465 = vset.pattern.permute.xlu0 0
        %466 = vperm.xlu0 %465, %v227
        %v467 = vpop.permute.xlu0 %466
        %470 = vset.pattern.permute.xlu0 0
        %471 = vperm.xlu0 %470, %v228
        %v472 = vpop.permute.xlu0 %471
        %475 = vset.pattern.permute.xlu0 0
        %476 = vperm.xlu0 %475, %v229
        %v477 = vpop.permute.xlu0 %476
        %480 = vset.pattern.permute.xlu0 0
        %481 = vperm.xlu0 %480, %v230
        %v482 = vpop.permute.xlu0 %481
        %485 = vset.pattern.permute.xlu0 0
        %486 = vperm.xlu0 %485, %v231
        %v487 = vpop.permute.xlu0 %486
        %490 = vset.pattern.permute.xlu0 0
        %491 = vperm.xlu0 %490, %v232
        %v492 = vpop.permute.xlu0 %491
        %495 = vset.pattern.permute.xlu0 0
        %496 = vperm.xlu0 %495, %v233
        %v497 = vpop.permute.xlu0 %496
        %500 = vset.pattern.permute.xlu0 0
        %501 = vperm.xlu0 %500, %v234
        %v502 = vpop.permute.xlu0 %501
        %505 = vset.pattern.permute.xlu0 0
        %506 = vperm.xlu0 %505, %v235
        %v507 = vpop.permute.xlu0 %506
        %510 = vset.pattern.permute.xlu0 0
        %511 = vperm.xlu0 %510, %v236
        %v512 = vpop.permute.xlu0 %511
        %515 = vset.pattern.permute.xlu0 0
        %516 = vperm.xlu0 %515, %v237
        %v517 = vpop.permute.xlu0 %516
        %520 = vset.pattern.permute.xlu0 0
        %521 = vperm.xlu0 %520, %v238
        %v522 = vpop.permute.xlu0 %521
        %525 = vset.pattern.permute.xlu0 0
        %526 = vperm.xlu0 %525, %v239
        %v527 = vpop.permute.xlu0 %526
        %530 = vset.pattern.permute.xlu0 0
        %531 = vperm.xlu0 %530, %v240
        %v532 = vpop.permute.xlu0 %531
        %535 = vset.pattern.permute.xlu0 0
        %536 = vperm.xlu0 %535, %v241
        %v537 = vpop.permute.xlu0 %536
        %540 = vset.pattern.permute.xlu0 0
        %541 = vperm.xlu0 %540, %v242
        %v542 = vpop.permute.xlu0 %541
        %545 = vset.pattern.permute.xlu0 0
        %546 = vperm.xlu0 %545, %v243
        %v547 = vpop.permute.xlu0 %546
        %550 = vset.pattern.permute.xlu0 0
        %551 = vperm.xlu0 %550, %v244
        %v552 = vpop.permute.xlu0 %551
        %555 = vset.pattern.permute.xlu0 0
        %556 = vperm.xlu0 %555, %v245
        %v557 = vpop.permute.xlu0 %556
        %560 = vset.pattern.permute.xlu0 0
        %561 = vperm.xlu0 %560, %v246
        %v562 = vpop.permute.xlu0 %561
        %565 = vset.pattern.permute.xlu0 0
        %566 = vperm.xlu0 %565, %v247
        %v567 = vpop.permute.xlu0 %566
        %570 = vset.pattern.permute.xlu0 0
        %571 = vperm.xlu0 %570, %v248
        %v572 = vpop.permute.xlu0 %571
        %575 = vset.pattern.permute.xlu0 0
        %576 = vperm.xlu0 %575, %v249
        %v577 = vpop.permute.xlu0 %576
        %580 = vset.pattern.permute.xlu0 0
        %581 = vperm.xlu0 %580, %v250
        %v582 = vpop.permute.xlu0 %581
        %585 = vset.pattern.permute.xlu0 0
        %586 = vperm.xlu0 %585, %v251
        %v587 = vpop.permute.xlu0 %586
        %590 = vset.pattern.permute.xlu0 0
        %591 = vperm.xlu0 %590, %v252
        %v592 = vpop.permute.xlu0 %591
        %595 = vset.pattern.permute.xlu0 0
        %596 = vperm.xlu0 %595, %v253
        %v597 = vpop.permute.xlu0 %596
        %600 = vset.pattern.permute.xlu0 0
        %601 = vperm.xlu0 %600, %v254
        %v602 = vpop.permute.xlu0 %601
        %605 = vset.pattern.permute.xlu0 0
        %606 = vperm.xlu0 %605, %v255
        %v607 = vpop.permute.xlu0 %606
        %610 = vset.pattern.permute.xlu0 0
        %611 = vperm.xlu0 %610, %v256
        %v612 = vpop.permute.xlu0 %611
        %615 = vset.pattern.permute.xlu0 0
        %616 = vperm.xlu0 %615, %v257
        %v617 = vpop.permute.xlu0 %616
        %620 = vset.pattern.permute.xlu0 0
        %621 = vperm.xlu0 %620, %v258
        %v622 = vpop.permute.xlu0 %621
        %625 = vset.pattern.permute.xlu0 0
        %626 = vperm.xlu0 %625, %v259
        %v627 = vpop.permute.xlu0 %626
        %630 = vset.pattern.permute.xlu0 0
        %631 = vperm.xlu0 %630, %v260
        %v632 = vpop.permute.xlu0 %631
        %635 = vset.pattern.permute.xlu0 0
        %636 = vperm.xlu0 %635, %v261
        %v637 = vpop.permute.xlu0 %636
        %640 = vset.pattern.permute.xlu0 0
        %641 = vperm.xlu0 %640, %v262
        %v642 = vpop.permute.xlu0 %641
        %645 = vset.pattern.permute.xlu0 0
        %646 = vperm.xlu0 %645, %v263
        %v647 = vpop.permute.xlu0 %646
        %650 = vset.pattern.permute.xlu0 0
        %651 = vperm.xlu0 %650, %v264
        %v652 = vpop.permute.xlu0 %651
        %655 = vset.pattern.permute.xlu0 0
        %656 = vperm.xlu0 %655, %v265
        %v657 = vpop.permute.xlu0 %656
        %660 = vset.pattern.permute.xlu0 0
        %661 = vperm.xlu0 %660, %v266
        %v662 = vpop.permute.xlu0 %661
        %665 = vset.pattern.permute.xlu0 0
        %666 = vperm.xlu0 %665, %v267
        %v667 = vpop.permute.xlu0 %666
        %670 = vset.pattern.permute.xlu0 0
        %671 = vperm.xlu0 %670, %v268
        %v672 = vpop.permute.xlu0 %671
        %675 = vset.pattern.permute.xlu0 0
        %676 = vperm.xlu0 %675, %v269
        %v677 = vpop.permute.xlu0 %676
        %680 = vset.pattern.permute.xlu0 0
        %681 = vperm.xlu0 %680, %v270
        %v682 = vpop.permute.xlu0 %681
        %685 = vset.pattern.permute.xlu0 0
        %686 = vperm.xlu0 %685, %v271
        %v687 = vpop.permute.xlu0 %686
        %690 = vset.pattern.permute.xlu0 0
        %691 = vperm.xlu0 %690, %v272
        %v692 = vpop.permute.xlu0 %691
        %695 = vset.pattern.permute.xlu0 0
        %696 = vperm.xlu0 %695, %v273
        %v697 = vpop.permute.xlu0 %696
        %700 = vset.pattern.permute.xlu0 0
        %701 = vperm.xlu0 %700, %v274
        %v702 = vpop.permute.xlu0 %701
        %705 = vset.pattern.permute.xlu0 0
        %706 = vperm.xlu0 %705, %v275
        %v707 = vpop.permute.xlu0 %706
        %710 = vset.pattern.permute.xlu0 0
        %711 = vperm.xlu0 %710, %v276
        %v712 = vpop.permute.xlu0 %711
        %715 = vset.pattern.permute.xlu0 0
        %716 = vperm.xlu0 %715, %v277
        %v717 = vpop.permute.xlu0 %716
        %720 = vset.pattern.permute.xlu0 0
        %721 = vperm.xlu0 %720, %v278
        %v722 = vpop.permute.xlu0 %721
        %725 = vset.pattern.permute.xlu0 0
        %726 = vperm.xlu0 %725, %v279
        %v727 = vpop.permute.xlu0 %726
        %730 = vset.pattern.permute.xlu0 0
        %731 = vperm.xlu0 %730, %v280
        %v732 = vpop.permute.xlu0 %731
        %735 = vset.pattern.permute.xlu0 0
        %736 = vperm.xlu0 %735, %v281
        %v737 = vpop.permute.xlu0 %736
        %740 = vset.pattern.permute.xlu0 0
        %741 = vperm.xlu0 %740, %v282
        %v742 = vpop.permute.xlu0 %741
        %745 = vset.pattern.permute.xlu0 0
        %746 = vperm.xlu0 %745, %v283
        %v747 = vpop.permute.xlu0 %746
        %750 = vset.pattern.permute.xlu0 0
        %751 = vperm.xlu0 %750, %v284
        %v752 = vpop.permute.xlu0 %751
        %755 = vset.pattern.permute.xlu0 0
        %756 = vperm.xlu0 %755, %v285
        %v757 = vpop.permute.xlu0 %756
        %760 = vset.pattern.permute.xlu0 0
        %761 = vperm.xlu0 %760, %v286
        %v762 = vpop.permute.xlu0 %761
        %765 = vset.pattern.permute.xlu0 0
        %766 = vperm.xlu0 %765, %v287
        %v767 = vpop.permute.xlu0 %766
        %770 = vset.pattern.permute.xlu0 0
        %771 = vperm.xlu0 %770, %v288
        %v772 = vpop.permute.xlu0 %771
        %775 = vset.pattern.permute.xlu0 0
        %776 = vperm.xlu0 %775, %v289
        %v777 = vpop.permute.xlu0 %776
        %780 = vset.pattern.permute.xlu0 0
        %781 = vperm.xlu0 %780, %v290
        %v782 = vpop.permute.xlu0 %781
        %785 = vset.pattern.permute.xlu0 0
        %786 = vperm.xlu0 %785, %v291
        %v787 = vpop.permute.xlu0 %786
        %790 = vset.pattern.permute.xlu0 0
        %791 = vperm.xlu0 %790, %v292
        %v792 = vpop.permute.xlu0 %791
        %795 = vset.pattern.permute.xlu0 0
        %796 = vperm.xlu0 %795, %v293
        %v797 = vpop.permute.xlu0 %796
        %800 = vset.pattern.permute.xlu0 0
        %801 = vperm.xlu0 %800, %v294
        %v802 = vpop.permute.xlu0 %801
        %805 = vset.pattern.permute.xlu0 0
        %806 = vperm.xlu0 %805, %v295
        %v807 = vpop.permute.xlu0 %806
        %810 = vset.pattern.permute.xlu0 0
        %811 = vperm.xlu0 %810, %v296
        %v812 = vpop.permute.xlu0 %811
        %815 = vset.pattern.permute.xlu0 0
        %816 = vperm.xlu0 %815, %v297
        %v817 = vpop.permute.xlu0 %816
        %820 = vset.pattern.permute.xlu0 0
        %821 = vperm.xlu0 %820, %v298
        %v822 = vpop.permute.xlu0 %821
        %825 = vset.pattern.permute.xlu0 0
        %826 = vperm.xlu0 %825, %v299
        %v827 = vpop.permute.xlu0 %826
        %830 = vset.pattern.permute.xlu0 0
        %831 = vperm.xlu0 %830, %v300
        %v832 = vpop.permute.xlu0 %831
        %835 = vset.pattern.permute.xlu0 0
        %836 = vperm.xlu0 %835, %v301
        %v837 = vpop.permute.xlu0 %836
        %840 = vset.pattern.permute.xlu0 0
        %841 = vperm.xlu0 %840, %v302
        %v842 = vpop.permute.xlu0 %841
        %845 = vset.pattern.permute.xlu0 0
        %846 = vperm.xlu0 %845, %v303
        %v847 = vpop.permute.xlu0 %846
        %850 = vset.pattern.permute.xlu0 0
        %851 = vperm.xlu0 %850, %v304
        %v852 = vpop.permute.xlu0 %851
        %855 = vset.pattern.permute.xlu0 0
        %856 = vperm.xlu0 %855, %v305
        %v857 = vpop.permute.xlu0 %856
        %860 = vset.pattern.permute.xlu0 0
        %861 = vperm.xlu0 %860, %v306
        %v862 = vpop.permute.xlu0 %861
        %865 = vset.pattern.permute.xlu0 0
        %866 = vperm.xlu0 %865, %v307
        %v867 = vpop.permute.xlu0 %866
        %870 = vset.pattern.permute.xlu0 0
        %871 = vperm.xlu0 %870, %v308
        %v872 = vpop.permute.xlu0 %871
        %875 = vset.pattern.permute.xlu0 0
        %876 = vperm.xlu0 %875, %v309
        %v877 = vpop.permute.xlu0 %876
        %880 = vset.pattern.permute.xlu0 0
        %881 = vperm.xlu0 %880, %v310
        %v882 = vpop.permute.xlu0 %881
        %885 = vset.pattern.permute.xlu0 0
        %886 = vperm.xlu0 %885, %v311
        %v887 = vpop.permute.xlu0 %886
        %890 = vset.pattern.permute.xlu0 0
        %891 = vperm.xlu0 %890, %v312
        %v892 = vpop.permute.xlu0 %891
        %895 = vset.pattern.permute.xlu0 0
        %896 = vperm.xlu0 %895, %v313
        %v897 = vpop.permute.xlu0 %896
        %900 = vset.pattern.permute.xlu0 0
        %901 = vperm.xlu0 %900, %v314
        %v902 = vpop.permute.xlu0 %901
        %905 = vset.pattern.permute.xlu0 0
        %906 = vperm.xlu0 %905, %v315
        %v907 = vpop.permute.xlu0 %906
        %910 = vset.pattern.permute.xlu0 0
        %911 = vperm.xlu0 %910, %v316
        %v912 = vpop.permute.xlu0 %911
        %915 = vset.pattern.permute.xlu0 0
        %916 = vperm.xlu0 %915, %v317
        %v917 = vpop.permute.xlu0 %916
        %920 = vset.pattern.permute.xlu0 0
        %921 = vperm.xlu0 %920, %v318
        %v922 = vpop.permute.xlu0 %921
        %925 = vset.pattern.permute.xlu0 0
        %926 = vperm.xlu0 %925, %v319
        %v927 = vpop.permute.xlu0 %926
        %930 = vset.pattern.permute.xlu0 0
        %931 = vperm.xlu0 %930, %v320
        %v932 = vpop.permute.xlu0 %931
        %935 = vset.pattern.permute.xlu0 0
        %936 = vperm.xlu0 %935, %v321
        %v937 = vpop.permute.xlu0 %936
        %940 = vset.pattern.permute.xlu0 0
        %941 = vperm.xlu0 %940, %v322
        %v942 = vpop.permute.xlu0 %941
        %945 = vset.pattern.permute.xlu0 0
        %946 = vperm.xlu0 %945, %v323
        %v947 = vpop.permute.xlu0 %946
        %950 = vset.pattern.permute.xlu0 0
        %951 = vperm.xlu0 %950, %v324
        %v952 = vpop.permute.xlu0 %951
        %955 = vset.pattern.permute.xlu0 0
        %956 = vperm.xlu0 %955, %v325
        %v957 = vpop.permute.xlu0 %956
        %960 = vset.pattern.permute.xlu0 0
        %961 = vperm.xlu0 %960, %v326
        %v962 = vpop.permute.xlu0 %961
        %965 = vset.pattern.permute.xlu0 0
        %966 = vperm.xlu0 %965, %v327
        %v967 = vpop.permute.xlu0 %966
        %v969 = vlaneseq
        %v970 = vshrl.u32 %v969, 7
        %v971 = vsub.s32 0, %v970
        %v972 = vrot.slane %v328, %v971
        %v973 = vmul.f32 %v332, %v972
        %v974 = vmul.f32 %v337, %v972
        %v975 = vmul.f32 %v342, %v972
        %v976 = vmul.f32 %v347, %v972
        %v977 = vmul.f32 %v352, %v972
        %v978 = vmul.f32 %v357, %v972
        %v979 = vmul.f32 %v362, %v972
        %v980 = vmul.f32 %v367, %v972
        %v981 = vmul.f32 %v372, %v972
        %v982 = vmul.f32 %v377, %v972
        %v983 = vmul.f32 %v382, %v972
        %v984 = vmul.f32 %v387, %v972
        %v985 = vmul.f32 %v392, %v972
        %v986 = vmul.f32 %v397, %v972
        %v987 = vmul.f32 %v402, %v972
        %v988 = vmul.f32 %v407, %v972
        %v989 = vmul.f32 %v412, %v972
        %v990 = vmul.f32 %v417, %v972
        %v991 = vmul.f32 %v422, %v972
        %v992 = vmul.f32 %v427, %v972
        %v993 = vmul.f32 %v432, %v972
        %v994 = vmul.f32 %v437, %v972
        %v995 = vmul.f32 %v442, %v972
        %v996 = vmul.f32 %v447, %v972
        %v997 = vmul.f32 %v452, %v972
        %v998 = vmul.f32 %v457, %v972
        %v999 = vmul.f32 %v462, %v972
        %v1000 = vmul.f32 %v467, %v972
        %v1001 = vmul.f32 %v472, %v972
        %v1002 = vmul.f32 %v477, %v972
        %v1003 = vmul.f32 %v482, %v972
        %v1004 = vmul.f32 %v487, %v972
        %v1005 = vmul.f32 %v492, %v972
        %v1006 = vmul.f32 %v497, %v972
        %v1007 = vmul.f32 %v502, %v972
        %v1008 = vmul.f32 %v507, %v972
        %v1009 = vmul.f32 %v512, %v972
        %v1010 = vmul.f32 %v517, %v972
        %v1011 = vmul.f32 %v522, %v972
        %v1012 = vmul.f32 %v527, %v972
        %v1013 = vmul.f32 %v532, %v972
        %v1014 = vmul.f32 %v537, %v972
        %v1015 = vmul.f32 %v542, %v972
        %v1016 = vmul.f32 %v547, %v972
        %v1017 = vmul.f32 %v552, %v972
        %v1018 = vmul.f32 %v557, %v972
        %v1019 = vmul.f32 %v562, %v972
        %v1020 = vmul.f32 %v567, %v972
        %v1021 = vmul.f32 %v572, %v972
        %v1022 = vmul.f32 %v577, %v972
        %v1023 = vmul.f32 %v582, %v972
        %v1024 = vmul.f32 %v587, %v972
        %v1025 = vmul.f32 %v592, %v972
        %v1026 = vmul.f32 %v597, %v972
        %v1027 = vmul.f32 %v602, %v972
        %v1028 = vmul.f32 %v607, %v972
        %v1029 = vmul.f32 %v612, %v972
        %v1030 = vmul.f32 %v617, %v972
        %v1031 = vmul.f32 %v622, %v972
        %v1032 = vmul.f32 %v627, %v972
        %v1033 = vmul.f32 %v632, %v972
        %v1034 = vmul.f32 %v637, %v972
        %v1035 = vmul.f32 %v642, %v972
        %v1036 = vmul.f32 %v647, %v972
        %v1037 = vmul.f32 %v652, %v972
        %v1038 = vmul.f32 %v657, %v972
        %v1039 = vmul.f32 %v662, %v972
        %v1040 = vmul.f32 %v667, %v972
        %v1041 = vmul.f32 %v672, %v972
        %v1042 = vmul.f32 %v677, %v972
        %v1043 = vmul.f32 %v682, %v972
        %v1044 = vmul.f32 %v687, %v972
        %v1045 = vmul.f32 %v692, %v972
        %v1046 = vmul.f32 %v697, %v972
        %v1047 = vmul.f32 %v702, %v972
        %v1048 = vmul.f32 %v707, %v972
        %v1049 = vmul.f32 %v712, %v972
        %v1050 = vmul.f32 %v717, %v972
        %v1051 = vmul.f32 %v722, %v972
        %v1052 = vmul.f32 %v727, %v972
        %v1053 = vmul.f32 %v732, %v972
        %v1054 = vmul.f32 %v737, %v972
        %v1055 = vmul.f32 %v742, %v972
        %v1056 = vmul.f32 %v747, %v972
        %v1057 = vmul.f32 %v752, %v972
        %v1058 = vmul.f32 %v757, %v972
        %v1059 = vmul.f32 %v762, %v972
        %v1060 = vmul.f32 %v767, %v972
        %v1061 = vmul.f32 %v772, %v972
        %v1062 = vmul.f32 %v777, %v972
        %v1063 = vmul.f32 %v782, %v972
        %v1064 = vmul.f32 %v787, %v972
        %v1065 = vmul.f32 %v792, %v972
        %v1066 = vmul.f32 %v797, %v972
        %v1067 = vmul.f32 %v802, %v972
        %v1068 = vmul.f32 %v807, %v972
        %v1069 = vmul.f32 %v812, %v972
        %v1070 = vmul.f32 %v817, %v972
        %v1071 = vmul.f32 %v822, %v972
        %v1072 = vmul.f32 %v827, %v972
        %v1073 = vmul.f32 %v832, %v972
        %v1074 = vmul.f32 %v837, %v972
        %v1075 = vmul.f32 %v842, %v972
        %v1076 = vmul.f32 %v847, %v972
        %v1077 = vmul.f32 %v852, %v972
        %v1078 = vmul.f32 %v857, %v972
        %v1079 = vmul.f32 %v862, %v972
        %v1080 = vmul.f32 %v867, %v972
        %v1081 = vmul.f32 %v872, %v972
        %v1082 = vmul.f32 %v877, %v972
        %v1083 = vmul.f32 %v882, %v972
        %v1084 = vmul.f32 %v887, %v972
        %v1085 = vmul.f32 %v892, %v972
        %v1086 = vmul.f32 %v897, %v972
        %v1087 = vmul.f32 %v902, %v972
        %v1088 = vmul.f32 %v907, %v972
        %v1089 = vmul.f32 %v912, %v972
        %v1090 = vmul.f32 %v917, %v972
        %v1091 = vmul.f32 %v922, %v972
        %v1092 = vmul.f32 %v927, %v972
        %v1093 = vmul.f32 %v932, %v972
        %v1094 = vmul.f32 %v937, %v972
        %v1095 = vmul.f32 %v942, %v972
        %v1096 = vmul.f32 %v947, %v972
        %v1097 = vmul.f32 %v952, %v972
        %v1098 = vmul.f32 %v957, %v972
        %v1099 = vmul.f32 %v962, %v972
        %v1100 = vmul.f32 %v967, %v972
        %1101 = vset.pattern.permute.xlu0 1
        %1102 = vperm.xlu0 %1101, %v200
        %v1103 = vpop.permute.xlu0 %1102
        %1105 = vset.pattern.permute.xlu0 1
        %1106 = vperm.xlu0 %1105, %v201
        %v1107 = vpop.permute.xlu0 %1106
        %1109 = vset.pattern.permute.xlu0 1
        %1110 = vperm.xlu0 %1109, %v202
        %v1111 = vpop.permute.xlu0 %1110
        %1113 = vset.pattern.permute.xlu0 1
        %1114 = vperm.xlu0 %1113, %v203
        %v1115 = vpop.permute.xlu0 %1114
        %1117 = vset.pattern.permute.xlu0 1
        %1118 = vperm.xlu0 %1117, %v204
        %v1119 = vpop.permute.xlu0 %1118
        %1121 = vset.pattern.permute.xlu0 1
        %1122 = vperm.xlu0 %1121, %v205
        %v1123 = vpop.permute.xlu0 %1122
        %1125 = vset.pattern.permute.xlu0 1
        %1126 = vperm.xlu0 %1125, %v206
        %v1127 = vpop.permute.xlu0 %1126
        %1129 = vset.pattern.permute.xlu0 1
        %1130 = vperm.xlu0 %1129, %v207
        %v1131 = vpop.permute.xlu0 %1130
        %1133 = vset.pattern.permute.xlu0 1
        %1134 = vperm.xlu0 %1133, %v208
        %v1135 = vpop.permute.xlu0 %1134
        %1137 = vset.pattern.permute.xlu0 1
        %1138 = vperm.xlu0 %1137, %v209
        %v1139 = vpop.permute.xlu0 %1138
        %1141 = vset.pattern.permute.xlu0 1
        %1142 = vperm.xlu0 %1141, %v210
        %v1143 = vpop.permute.xlu0 %1142
        %1145 = vset.pattern.permute.xlu0 1
        %1146 = vperm.xlu0 %1145, %v211
        %v1147 = vpop.permute.xlu0 %1146
        %1149 = vset.pattern.permute.xlu0 1
        %1150 = vperm.xlu0 %1149, %v212
        %v1151 = vpop.permute.xlu0 %1150
        %1153 = vset.pattern.permute.xlu0 1
        %1154 = vperm.xlu0 %1153, %v213
        %v1155 = vpop.permute.xlu0 %1154
        %1157 = vset.pattern.permute.xlu0 1
        %1158 = vperm.xlu0 %1157, %v214
        %v1159 = vpop.permute.xlu0 %1158
        %1161 = vset.pattern.permute.xlu0 1
        %1162 = vperm.xlu0 %1161, %v215
        %v1163 = vpop.permute.xlu0 %1162
        %1165 = vset.pattern.permute.xlu0 1
        %1166 = vperm.xlu0 %1165, %v216
        %v1167 = vpop.permute.xlu0 %1166
        %1169 = vset.pattern.permute.xlu0 1
        %1170 = vperm.xlu0 %1169, %v217
        %v1171 = vpop.permute.xlu0 %1170
        %1173 = vset.pattern.permute.xlu0 1
        %1174 = vperm.xlu0 %1173, %v218
        %v1175 = vpop.permute.xlu0 %1174
        %1177 = vset.pattern.permute.xlu0 1
        %1178 = vperm.xlu0 %1177, %v219
        %v1179 = vpop.permute.xlu0 %1178
        %1181 = vset.pattern.permute.xlu0 1
        %1182 = vperm.xlu0 %1181, %v220
        %v1183 = vpop.permute.xlu0 %1182
        %1185 = vset.pattern.permute.xlu0 1
        %1186 = vperm.xlu0 %1185, %v221
        %v1187 = vpop.permute.xlu0 %1186
        %1189 = vset.pattern.permute.xlu0 1
        %1190 = vperm.xlu0 %1189, %v222
        %v1191 = vpop.permute.xlu0 %1190
        %1193 = vset.pattern.permute.xlu0 1
        %1194 = vperm.xlu0 %1193, %v223
        %v1195 = vpop.permute.xlu0 %1194
        %1197 = vset.pattern.permute.xlu0 1
        %1198 = vperm.xlu0 %1197, %v224
        %v1199 = vpop.permute.xlu0 %1198
        %1201 = vset.pattern.permute.xlu0 1
        %1202 = vperm.xlu0 %1201, %v225
        %v1203 = vpop.permute.xlu0 %1202
        %1205 = vset.pattern.permute.xlu0 1
        %1206 = vperm.xlu0 %1205, %v226
        %v1207 = vpop.permute.xlu0 %1206
        %1209 = vset.pattern.permute.xlu0 1
        %1210 = vperm.xlu0 %1209, %v227
        %v1211 = vpop.permute.xlu0 %1210
        %1213 = vset.pattern.permute.xlu0 1
        %1214 = vperm.xlu0 %1213, %v228
        %v1215 = vpop.permute.xlu0 %1214
        %1217 = vset.pattern.permute.xlu0 1
        %1218 = vperm.xlu0 %1217, %v229
        %v1219 = vpop.permute.xlu0 %1218
        %1221 = vset.pattern.permute.xlu0 1
        %1222 = vperm.xlu0 %1221, %v230
        %v1223 = vpop.permute.xlu0 %1222
        %1225 = vset.pattern.permute.xlu0 1
        %1226 = vperm.xlu0 %1225, %v231
        %v1227 = vpop.permute.xlu0 %1226
        %1229 = vset.pattern.permute.xlu0 1
        %1230 = vperm.xlu0 %1229, %v232
        %v1231 = vpop.permute.xlu0 %1230
        %1233 = vset.pattern.permute.xlu0 1
        %1234 = vperm.xlu0 %1233, %v233
        %v1235 = vpop.permute.xlu0 %1234
        %1237 = vset.pattern.permute.xlu0 1
        %1238 = vperm.xlu0 %1237, %v234
        %v1239 = vpop.permute.xlu0 %1238
        %1241 = vset.pattern.permute.xlu0 1
        %1242 = vperm.xlu0 %1241, %v235
        %v1243 = vpop.permute.xlu0 %1242
        %1245 = vset.pattern.permute.xlu0 1
        %1246 = vperm.xlu0 %1245, %v236
        %v1247 = vpop.permute.xlu0 %1246
        %1249 = vset.pattern.permute.xlu0 1
        %1250 = vperm.xlu0 %1249, %v237
        %v1251 = vpop.permute.xlu0 %1250
        %1253 = vset.pattern.permute.xlu0 1
        %1254 = vperm.xlu0 %1253, %v238
        %v1255 = vpop.permute.xlu0 %1254
        %1257 = vset.pattern.permute.xlu0 1
        %1258 = vperm.xlu0 %1257, %v239
        %v1259 = vpop.permute.xlu0 %1258
        %1261 = vset.pattern.permute.xlu0 1
        %1262 = vperm.xlu0 %1261, %v240
        %v1263 = vpop.permute.xlu0 %1262
        %1265 = vset.pattern.permute.xlu0 1
        %1266 = vperm.xlu0 %1265, %v241
        %v1267 = vpop.permute.xlu0 %1266
        %1269 = vset.pattern.permute.xlu0 1
        %1270 = vperm.xlu0 %1269, %v242
        %v1271 = vpop.permute.xlu0 %1270
        %1273 = vset.pattern.permute.xlu0 1
        %1274 = vperm.xlu0 %1273, %v243
        %v1275 = vpop.permute.xlu0 %1274
        %1277 = vset.pattern.permute.xlu0 1
        %1278 = vperm.xlu0 %1277, %v244
        %v1279 = vpop.permute.xlu0 %1278
        %1281 = vset.pattern.permute.xlu0 1
        %1282 = vperm.xlu0 %1281, %v245
        %v1283 = vpop.permute.xlu0 %1282
        %1285 = vset.pattern.permute.xlu0 1
        %1286 = vperm.xlu0 %1285, %v246
        %v1287 = vpop.permute.xlu0 %1286
        %1289 = vset.pattern.permute.xlu0 1
        %1290 = vperm.xlu0 %1289, %v247
        %v1291 = vpop.permute.xlu0 %1290
        %1293 = vset.pattern.permute.xlu0 1
        %1294 = vperm.xlu0 %1293, %v248
        %v1295 = vpop.permute.xlu0 %1294
        %1297 = vset.pattern.permute.xlu0 1
        %1298 = vperm.xlu0 %1297, %v249
        %v1299 = vpop.permute.xlu0 %1298
        %1301 = vset.pattern.permute.xlu0 1
        %1302 = vperm.xlu0 %1301, %v250
        %v1303 = vpop.permute.xlu0 %1302
        %1305 = vset.pattern.permute.xlu0 1
        %1306 = vperm.xlu0 %1305, %v251
        %v1307 = vpop.permute.xlu0 %1306
        %1309 = vset.pattern.permute.xlu0 1
        %1310 = vperm.xlu0 %1309, %v252
        %v1311 = vpop.permute.xlu0 %1310
        %1313 = vset.pattern.permute.xlu0 1
        %1314 = vperm.xlu0 %1313, %v253
        %v1315 = vpop.permute.xlu0 %1314
        %1317 = vset.pattern.permute.xlu0 1
        %1318 = vperm.xlu0 %1317, %v254
        %v1319 = vpop.permute.xlu0 %1318
        %1321 = vset.pattern.permute.xlu0 1
        %1322 = vperm.xlu0 %1321, %v255
        %v1323 = vpop.permute.xlu0 %1322
        %1325 = vset.pattern.permute.xlu0 1
        %1326 = vperm.xlu0 %1325, %v256
        %v1327 = vpop.permute.xlu0 %1326
        %1329 = vset.pattern.permute.xlu0 1
        %1330 = vperm.xlu0 %1329, %v257
        %v1331 = vpop.permute.xlu0 %1330
        %1333 = vset.pattern.permute.xlu0 1
        %1334 = vperm.xlu0 %1333, %v258
        %v1335 = vpop.permute.xlu0 %1334
        %1337 = vset.pattern.permute.xlu0 1
        %1338 = vperm.xlu0 %1337, %v259
        %v1339 = vpop.permute.xlu0 %1338
        %1341 = vset.pattern.permute.xlu0 1
        %1342 = vperm.xlu0 %1341, %v260
        %v1343 = vpop.permute.xlu0 %1342
        %1345 = vset.pattern.permute.xlu0 1
        %1346 = vperm.xlu0 %1345, %v261
        %v1347 = vpop.permute.xlu0 %1346
        %1349 = vset.pattern.permute.xlu0 1
        %1350 = vperm.xlu0 %1349, %v262
        %v1351 = vpop.permute.xlu0 %1350
        %1353 = vset.pattern.permute.xlu0 1
        %1354 = vperm.xlu0 %1353, %v263
        %v1355 = vpop.permute.xlu0 %1354
        %1357 = vset.pattern.permute.xlu0 1
        %1358 = vperm.xlu0 %1357, %v264
        %v1359 = vpop.permute.xlu0 %1358
        %1361 = vset.pattern.permute.xlu0 1
        %1362 = vperm.xlu0 %1361, %v265
        %v1363 = vpop.permute.xlu0 %1362
        %1365 = vset.pattern.permute.xlu0 1
        %1366 = vperm.xlu0 %1365, %v266
        %v1367 = vpop.permute.xlu0 %1366
        %1369 = vset.pattern.permute.xlu0 1
        %1370 = vperm.xlu0 %1369, %v267
        %v1371 = vpop.permute.xlu0 %1370
        %1373 = vset.pattern.permute.xlu0 1
        %1374 = vperm.xlu0 %1373, %v268
        %v1375 = vpop.permute.xlu0 %1374
        %1377 = vset.pattern.permute.xlu0 1
        %1378 = vperm.xlu0 %1377, %v269
        %v1379 = vpop.permute.xlu0 %1378
        %1381 = vset.pattern.permute.xlu0 1
        %1382 = vperm.xlu0 %1381, %v270
        %v1383 = vpop.permute.xlu0 %1382
        %1385 = vset.pattern.permute.xlu0 1
        %1386 = vperm.xlu0 %1385, %v271
        %v1387 = vpop.permute.xlu0 %1386
        %1389 = vset.pattern.permute.xlu0 1
        %1390 = vperm.xlu0 %1389, %v272
        %v1391 = vpop.permute.xlu0 %1390
        %1393 = vset.pattern.permute.xlu0 1
        %1394 = vperm.xlu0 %1393, %v273
        %v1395 = vpop.permute.xlu0 %1394
        %1397 = vset.pattern.permute.xlu0 1
        %1398 = vperm.xlu0 %1397, %v274
        %v1399 = vpop.permute.xlu0 %1398
        %1401 = vset.pattern.permute.xlu0 1
        %1402 = vperm.xlu0 %1401, %v275
        %v1403 = vpop.permute.xlu0 %1402
        %1405 = vset.pattern.permute.xlu0 1
        %1406 = vperm.xlu0 %1405, %v276
        %v1407 = vpop.permute.xlu0 %1406
        %1409 = vset.pattern.permute.xlu0 1
        %1410 = vperm.xlu0 %1409, %v277
        %v1411 = vpop.permute.xlu0 %1410
        %1413 = vset.pattern.permute.xlu0 1
        %1414 = vperm.xlu0 %1413, %v278
        %v1415 = vpop.permute.xlu0 %1414
        %1417 = vset.pattern.permute.xlu0 1
        %1418 = vperm.xlu0 %1417, %v279
        %v1419 = vpop.permute.xlu0 %1418
        %1421 = vset.pattern.permute.xlu0 1
        %1422 = vperm.xlu0 %1421, %v280
        %v1423 = vpop.permute.xlu0 %1422
        %1425 = vset.pattern.permute.xlu0 1
        %1426 = vperm.xlu0 %1425, %v281
        %v1427 = vpop.permute.xlu0 %1426
        %1429 = vset.pattern.permute.xlu0 1
        %1430 = vperm.xlu0 %1429, %v282
        %v1431 = vpop.permute.xlu0 %1430
        %1433 = vset.pattern.permute.xlu0 1
        %1434 = vperm.xlu0 %1433, %v283
        %v1435 = vpop.permute.xlu0 %1434
        %1437 = vset.pattern.permute.xlu0 1
        %1438 = vperm.xlu0 %1437, %v284
        %v1439 = vpop.permute.xlu0 %1438
        %1441 = vset.pattern.permute.xlu0 1
        %1442 = vperm.xlu0 %1441, %v285
        %v1443 = vpop.permute.xlu0 %1442
        %1445 = vset.pattern.permute.xlu0 1
        %1446 = vperm.xlu0 %1445, %v286
        %v1447 = vpop.permute.xlu0 %1446
        %1449 = vset.pattern.permute.xlu0 1
        %1450 = vperm.xlu0 %1449, %v287
        %v1451 = vpop.permute.xlu0 %1450
        %1453 = vset.pattern.permute.xlu0 1
        %1454 = vperm.xlu0 %1453, %v288
        %v1455 = vpop.permute.xlu0 %1454
        %1457 = vset.pattern.permute.xlu0 1
        %1458 = vperm.xlu0 %1457, %v289
        %v1459 = vpop.permute.xlu0 %1458
        %1461 = vset.pattern.permute.xlu0 1
        %1462 = vperm.xlu0 %1461, %v290
        %v1463 = vpop.permute.xlu0 %1462
        %1465 = vset.pattern.permute.xlu0 1
        %1466 = vperm.xlu0 %1465, %v291
        %v1467 = vpop.permute.xlu0 %1466
        %1469 = vset.pattern.permute.xlu0 1
        %1470 = vperm.xlu0 %1469, %v292
        %v1471 = vpop.permute.xlu0 %1470
        %1473 = vset.pattern.permute.xlu0 1
        %1474 = vperm.xlu0 %1473, %v293
        %v1475 = vpop.permute.xlu0 %1474
        %1477 = vset.pattern.permute.xlu0 1
        %1478 = vperm.xlu0 %1477, %v294
        %v1479 = vpop.permute.xlu0 %1478
        %1481 = vset.pattern.permute.xlu0 1
        %1482 = vperm.xlu0 %1481, %v295
        %v1483 = vpop.permute.xlu0 %1482
        %1485 = vset.pattern.permute.xlu0 1
        %1486 = vperm.xlu0 %1485, %v296
        %v1487 = vpop.permute.xlu0 %1486
        %1489 = vset.pattern.permute.xlu0 1
        %1490 = vperm.xlu0 %1489, %v297
        %v1491 = vpop.permute.xlu0 %1490
        %1493 = vset.pattern.permute.xlu0 1
        %1494 = vperm.xlu0 %1493, %v298
        %v1495 = vpop.permute.xlu0 %1494
        %1497 = vset.pattern.permute.xlu0 1
        %1498 = vperm.xlu0 %1497, %v299
        %v1499 = vpop.permute.xlu0 %1498
        %1501 = vset.pattern.permute.xlu0 1
        %1502 = vperm.xlu0 %1501, %v300
        %v1503 = vpop.permute.xlu0 %1502
        %1505 = vset.pattern.permute.xlu0 1
        %1506 = vperm.xlu0 %1505, %v301
        %v1507 = vpop.permute.xlu0 %1506
        %1509 = vset.pattern.permute.xlu0 1
        %1510 = vperm.xlu0 %1509, %v302
        %v1511 = vpop.permute.xlu0 %1510
        %1513 = vset.pattern.permute.xlu0 1
        %1514 = vperm.xlu0 %1513, %v303
        %v1515 = vpop.permute.xlu0 %1514
        %1517 = vset.pattern.permute.xlu0 1
        %1518 = vperm.xlu0 %1517, %v304
        %v1519 = vpop.permute.xlu0 %1518
        %1521 = vset.pattern.permute.xlu0 1
        %1522 = vperm.xlu0 %1521, %v305
        %v1523 = vpop.permute.xlu0 %1522
        %1525 = vset.pattern.permute.xlu0 1
        %1526 = vperm.xlu0 %1525, %v306
        %v1527 = vpop.permute.xlu0 %1526
        %1529 = vset.pattern.permute.xlu0 1
        %1530 = vperm.xlu0 %1529, %v307
        %v1531 = vpop.permute.xlu0 %1530
        %1533 = vset.pattern.permute.xlu0 1
        %1534 = vperm.xlu0 %1533, %v308
        %v1535 = vpop.permute.xlu0 %1534
        %1537 = vset.pattern.permute.xlu0 1
        %1538 = vperm.xlu0 %1537, %v309
        %v1539 = vpop.permute.xlu0 %1538
        %1541 = vset.pattern.permute.xlu0 1
        %1542 = vperm.xlu0 %1541, %v310
        %v1543 = vpop.permute.xlu0 %1542
        %1545 = vset.pattern.permute.xlu0 1
        %1546 = vperm.xlu0 %1545, %v311
        %v1547 = vpop.permute.xlu0 %1546
        %1549 = vset.pattern.permute.xlu0 1
        %1550 = vperm.xlu0 %1549, %v312
        %v1551 = vpop.permute.xlu0 %1550
        %1553 = vset.pattern.permute.xlu0 1
        %1554 = vperm.xlu0 %1553, %v313
        %v1555 = vpop.permute.xlu0 %1554
        %1557 = vset.pattern.permute.xlu0 1
        %1558 = vperm.xlu0 %1557, %v314
        %v1559 = vpop.permute.xlu0 %1558
        %1561 = vset.pattern.permute.xlu0 1
        %1562 = vperm.xlu0 %1561, %v315
        %v1563 = vpop.permute.xlu0 %1562
        %1565 = vset.pattern.permute.xlu0 1
        %1566 = vperm.xlu0 %1565, %v316
        %v1567 = vpop.permute.xlu0 %1566
        %1569 = vset.pattern.permute.xlu0 1
        %1570 = vperm.xlu0 %1569, %v317
        %v1571 = vpop.permute.xlu0 %1570
        %1573 = vset.pattern.permute.xlu0 1
        %1574 = vperm.xlu0 %1573, %v318
        %v1575 = vpop.permute.xlu0 %1574
        %1577 = vset.pattern.permute.xlu0 1
        %1578 = vperm.xlu0 %1577, %v319
        %v1579 = vpop.permute.xlu0 %1578
        %1581 = vset.pattern.permute.xlu0 1
        %1582 = vperm.xlu0 %1581, %v320
        %v1583 = vpop.permute.xlu0 %1582
        %1585 = vset.pattern.permute.xlu0 1
        %1586 = vperm.xlu0 %1585, %v321
        %v1587 = vpop.permute.xlu0 %1586
        %1589 = vset.pattern.permute.xlu0 1
        %1590 = vperm.xlu0 %1589, %v322
        %v1591 = vpop.permute.xlu0 %1590
        %1593 = vset.pattern.permute.xlu0 1
        %1594 = vperm.xlu0 %1593, %v323
        %v1595 = vpop.permute.xlu0 %1594
        %1597 = vset.pattern.permute.xlu0 1
        %1598 = vperm.xlu0 %1597, %v324
        %v1599 = vpop.permute.xlu0 %1598
        %1601 = vset.pattern.permute.xlu0 1
        %1602 = vperm.xlu0 %1601, %v325
        %v1603 = vpop.permute.xlu0 %1602
        %1605 = vset.pattern.permute.xlu0 1
        %1606 = vperm.xlu0 %1605, %v326
        %v1607 = vpop.permute.xlu0 %1606
        %1609 = vset.pattern.permute.xlu0 1
        %1610 = vperm.xlu0 %1609, %v327
        %v1611 = vpop.permute.xlu0 %1610
        %v1613 = vlaneseq
        %v1614 = vshrl.u32 %v1613, 7
        %v1615 = vsub.s32 1, %v1614
        %v1616 = vrot.slane %v328, %v1615
        %v1617 = vmul.f32 %v1103, %v1616
        %v1618 = vmul.f32 %v1107, %v1616
        %v1619 = vmul.f32 %v1111, %v1616
        %v1620 = vmul.f32 %v1115, %v1616
        %v1621 = vmul.f32 %v1119, %v1616
        %v1622 = vmul.f32 %v1123, %v1616
        %v1623 = vmul.f32 %v1127, %v1616
        %v1624 = vmul.f32 %v1131, %v1616
        %v1625 = vmul.f32 %v1135, %v1616
        %v1626 = vmul.f32 %v1139, %v1616
        %v1627 = vmul.f32 %v1143, %v1616
        %v1628 = vmul.f32 %v1147, %v1616
        %v1629 = vmul.f32 %v1151, %v1616
        %v1630 = vmul.f32 %v1155, %v1616
        %v1631 = vmul.f32 %v1159, %v1616
        %v1632 = vmul.f32 %v1163, %v1616
        %v1633 = vmul.f32 %v1167, %v1616
        %v1634 = vmul.f32 %v1171, %v1616
        %v1635 = vmul.f32 %v1175, %v1616
        %v1636 = vmul.f32 %v1179, %v1616
        %v1637 = vmul.f32 %v1183, %v1616
        %v1638 = vmul.f32 %v1187, %v1616
        %v1639 = vmul.f32 %v1191, %v1616
        %v1640 = vmul.f32 %v1195, %v1616
        %v1641 = vmul.f32 %v1199, %v1616
        %v1642 = vmul.f32 %v1203, %v1616
        %v1643 = vmul.f32 %v1207, %v1616
        %v1644 = vmul.f32 %v1211, %v1616
        %v1645 = vmul.f32 %v1215, %v1616
        %v1646 = vmul.f32 %v1219, %v1616
        %v1647 = vmul.f32 %v1223, %v1616
        %v1648 = vmul.f32 %v1227, %v1616
        %v1649 = vmul.f32 %v1231, %v1616
        %v1650 = vmul.f32 %v1235, %v1616
        %v1651 = vmul.f32 %v1239, %v1616
        %v1652 = vmul.f32 %v1243, %v1616
        %v1653 = vmul.f32 %v1247, %v1616
        %v1654 = vmul.f32 %v1251, %v1616
        %v1655 = vmul.f32 %v1255, %v1616
        %v1656 = vmul.f32 %v1259, %v1616
        %v1657 = vmul.f32 %v1263, %v1616
        %v1658 = vmul.f32 %v1267, %v1616
        %v1659 = vmul.f32 %v1271, %v1616
        %v1660 = vmul.f32 %v1275, %v1616
        %v1661 = vmul.f32 %v1279, %v1616
        %v1662 = vmul.f32 %v1283, %v1616
        %v1663 = vmul.f32 %v1287, %v1616
        %v1664 = vmul.f32 %v1291, %v1616
        %v1665 = vmul.f32 %v1295, %v1616
        %v1666 = vmul.f32 %v1299, %v1616
        %v1667 = vmul.f32 %v1303, %v1616
        %v1668 = vmul.f32 %v1307, %v1616
        %v1669 = vmul.f32 %v1311, %v1616
        %v1670 = vmul.f32 %v1315, %v1616
        %v1671 = vmul.f32 %v1319, %v1616
        %v1672 = vmul.f32 %v1323, %v1616
        %v1673 = vmul.f32 %v1327, %v1616
        %v1674 = vmul.f32 %v1331, %v1616
        %v1675 = vmul.f32 %v1335, %v1616
        %v1676 = vmul.f32 %v1339, %v1616
        %v1677 = vmul.f32 %v1343, %v1616
        %v1678 = vmul.f32 %v1347, %v1616
        %v1679 = vmul.f32 %v1351, %v1616
        %v1680 = vmul.f32 %v1355, %v1616
        %v1681 = vmul.f32 %v1359, %v1616
        %v1682 = vmul.f32 %v1363, %v1616
        %v1683 = vmul.f32 %v1367, %v1616
        %v1684 = vmul.f32 %v1371, %v1616
        %v1685 = vmul.f32 %v1375, %v1616
        %v1686 = vmul.f32 %v1379, %v1616
        %v1687 = vmul.f32 %v1383, %v1616
        %v1688 = vmul.f32 %v1387, %v1616
        %v1689 = vmul.f32 %v1391, %v1616
        %v1690 = vmul.f32 %v1395, %v1616
        %v1691 = vmul.f32 %v1399, %v1616
        %v1692 = vmul.f32 %v1403, %v1616
        %v1693 = vmul.f32 %v1407, %v1616
        %v1694 = vmul.f32 %v1411, %v1616
        %v1695 = vmul.f32 %v1415, %v1616
        %v1696 = vmul.f32 %v1419, %v1616
        %v1697 = vmul.f32 %v1423, %v1616
        %v1698 = vmul.f32 %v1427, %v1616
        %v1699 = vmul.f32 %v1431, %v1616
        %v1700 = vmul.f32 %v1435, %v1616
        %v1701 = vmul.f32 %v1439, %v1616
        %v1702 = vmul.f32 %v1443, %v1616
        %v1703 = vmul.f32 %v1447, %v1616
        %v1704 = vmul.f32 %v1451, %v1616
        %v1705 = vmul.f32 %v1455, %v1616
        %v1706 = vmul.f32 %v1459, %v1616
        %v1707 = vmul.f32 %v1463, %v1616
        %v1708 = vmul.f32 %v1467, %v1616
        %v1709 = vmul.f32 %v1471, %v1616
        %v1710 = vmul.f32 %v1475, %v1616
        %v1711 = vmul.f32 %v1479, %v1616
        %v1712 = vmul.f32 %v1483, %v1616
        %v1713 = vmul.f32 %v1487, %v1616
        %v1714 = vmul.f32 %v1491, %v1616
        %v1715 = vmul.f32 %v1495, %v1616
        %v1716 = vmul.f32 %v1499, %v1616
        %v1717 = vmul.f32 %v1503, %v1616
        %v1718 = vmul.f32 %v1507, %v1616
        %v1719 = vmul.f32 %v1511, %v1616
        %v1720 = vmul.f32 %v1515, %v1616
        %v1721 = vmul.f32 %v1519, %v1616
        %v1722 = vmul.f32 %v1523, %v1616
        %v1723 = vmul.f32 %v1527, %v1616
        %v1724 = vmul.f32 %v1531, %v1616
        %v1725 = vmul.f32 %v1535, %v1616
        %v1726 = vmul.f32 %v1539, %v1616
        %v1727 = vmul.f32 %v1543, %v1616
        %v1728 = vmul.f32 %v1547, %v1616
        %v1729 = vmul.f32 %v1551, %v1616
        %v1730 = vmul.f32 %v1555, %v1616
        %v1731 = vmul.f32 %v1559, %v1616
        %v1732 = vmul.f32 %v1563, %v1616
        %v1733 = vmul.f32 %v1567, %v1616
        %v1734 = vmul.f32 %v1571, %v1616
        %v1735 = vmul.f32 %v1575, %v1616
        %v1736 = vmul.f32 %v1579, %v1616
        %v1737 = vmul.f32 %v1583, %v1616
        %v1738 = vmul.f32 %v1587, %v1616
        %v1739 = vmul.f32 %v1591, %v1616
        %v1740 = vmul.f32 %v1595, %v1616
        %v1741 = vmul.f32 %v1599, %v1616
        %v1742 = vmul.f32 %v1603, %v1616
        %v1743 = vmul.f32 %v1607, %v1616
        %v1744 = vmul.f32 %v1611, %v1616
        %v1745 = vadd.f32 %v973, %v1617
        %v1746 = vadd.f32 %v974, %v1618
        %v1747 = vadd.f32 %v975, %v1619
        %v1748 = vadd.f32 %v976, %v1620
        %v1749 = vadd.f32 %v977, %v1621
        %v1750 = vadd.f32 %v978, %v1622
        %v1751 = vadd.f32 %v979, %v1623
        %v1752 = vadd.f32 %v980, %v1624
        %v1753 = vadd.f32 %v981, %v1625
        %v1754 = vadd.f32 %v982, %v1626
        %v1755 = vadd.f32 %v983, %v1627
        %v1756 = vadd.f32 %v984, %v1628
        %v1757 = vadd.f32 %v985, %v1629
        %v1758 = vadd.f32 %v986, %v1630
        %v1759 = vadd.f32 %v987, %v1631
        %v1760 = vadd.f32 %v988, %v1632
        %v1761 = vadd.f32 %v989, %v1633
        %v1762 = vadd.f32 %v990, %v1634
        %v1763 = vadd.f32 %v991, %v1635
        %v1764 = vadd.f32 %v992, %v1636
        %v1765 = vadd.f32 %v993, %v1637
        %v1766 = vadd.f32 %v994, %v1638
        %v1767 = vadd.f32 %v995, %v1639
        %v1768 = vadd.f32 %v996, %v1640
        %v1769 = vadd.f32 %v997, %v1641
        %v1770 = vadd.f32 %v998, %v1642
        %v1771 = vadd.f32 %v999, %v1643
        %v1772 = vadd.f32 %v1000, %v1644
        %v1773 = vadd.f32 %v1001, %v1645
        %v1774 = vadd.f32 %v1002, %v1646
        %v1775 = vadd.f32 %v1003, %v1647
        %v1776 = vadd.f32 %v1004, %v1648
        %v1777 = vadd.f32 %v1005, %v1649
        %v1778 = vadd.f32 %v1006, %v1650
        %v1779 = vadd.f32 %v1007, %v1651
        %v1780 = vadd.f32 %v1008, %v1652
        %v1781 = vadd.f32 %v1009, %v1653
        %v1782 = vadd.f32 %v1010, %v1654
        %v1783 = vadd.f32 %v1011, %v1655
        %v1784 = vadd.f32 %v1012, %v1656
        %v1785 = vadd.f32 %v1013, %v1657
        %v1786 = vadd.f32 %v1014, %v1658
        %v1787 = vadd.f32 %v1015, %v1659
        %v1788 = vadd.f32 %v1016, %v1660
        %v1789 = vadd.f32 %v1017, %v1661
        %v1790 = vadd.f32 %v1018, %v1662
        %v1791 = vadd.f32 %v1019, %v1663
        %v1792 = vadd.f32 %v1020, %v1664
        %v1793 = vadd.f32 %v1021, %v1665
        %v1794 = vadd.f32 %v1022, %v1666
        %v1795 = vadd.f32 %v1023, %v1667
        %v1796 = vadd.f32 %v1024, %v1668
        %v1797 = vadd.f32 %v1025, %v1669
        %v1798 = vadd.f32 %v1026, %v1670
        %v1799 = vadd.f32 %v1027, %v1671
        %v1800 = vadd.f32 %v1028, %v1672
        %v1801 = vadd.f32 %v1029, %v1673
        %v1802 = vadd.f32 %v1030, %v1674
        %v1803 = vadd.f32 %v1031, %v1675
        %v1804 = vadd.f32 %v1032, %v1676
        %v1805 = vadd.f32 %v1033, %v1677
        %v1806 = vadd.f32 %v1034, %v1678
        %v1807 = vadd.f32 %v1035, %v1679
        %v1808 = vadd.f32 %v1036, %v1680
        %v1809 = vadd.f32 %v1037, %v1681
        %v1810 = vadd.f32 %v1038, %v1682
        %v1811 = vadd.f32 %v1039, %v1683
        %v1812 = vadd.f32 %v1040, %v1684
        %v1813 = vadd.f32 %v1041, %v1685
        %v1814 = vadd.f32 %v1042, %v1686
        %v1815 = vadd.f32 %v1043, %v1687
        %v1816 = vadd.f32 %v1044, %v1688
        %v1817 = vadd.f32 %v1045, %v1689
        %v1818 = vadd.f32 %v1046, %v1690
        %v1819 = vadd.f32 %v1047, %v1691
        %v1820 = vadd.f32 %v1048, %v1692
        %v1821 = vadd.f32 %v1049, %v1693
        %v1822 = vadd.f32 %v1050, %v1694
        %v1823 = vadd.f32 %v1051, %v1695
        %v1824 = vadd.f32 %v1052, %v1696
        %v1825 = vadd.f32 %v1053, %v1697
        %v1826 = vadd.f32 %v1054, %v1698
        %v1827 = vadd.f32 %v1055, %v1699
        %v1828 = vadd.f32 %v1056, %v1700
        %v1829 = vadd.f32 %v1057, %v1701
        %v1830 = vadd.f32 %v1058, %v1702
        %v1831 = vadd.f32 %v1059, %v1703
        %v1832 = vadd.f32 %v1060, %v1704
        %v1833 = vadd.f32 %v1061, %v1705
        %v1834 = vadd.f32 %v1062, %v1706
        %v1835 = vadd.f32 %v1063, %v1707
        %v1836 = vadd.f32 %v1064, %v1708
        %v1837 = vadd.f32 %v1065, %v1709
        %v1838 = vadd.f32 %v1066, %v1710
        %v1839 = vadd.f32 %v1067, %v1711
        %v1840 = vadd.f32 %v1068, %v1712
        %v1841 = vadd.f32 %v1069, %v1713
        %v1842 = vadd.f32 %v1070, %v1714
        %v1843 = vadd.f32 %v1071, %v1715
        %v1844 = vadd.f32 %v1072, %v1716
        %v1845 = vadd.f32 %v1073, %v1717
        %v1846 = vadd.f32 %v1074, %v1718
        %v1847 = vadd.f32 %v1075, %v1719
        %v1848 = vadd.f32 %v1076, %v1720
        %v1849 = vadd.f32 %v1077, %v1721
        %v1850 = vadd.f32 %v1078, %v1722
        %v1851 = vadd.f32 %v1079, %v1723
        %v1852 = vadd.f32 %v1080, %v1724
        %v1853 = vadd.f32 %v1081, %v1725
        %v1854 = vadd.f32 %v1082, %v1726
        %v1855 = vadd.f32 %v1083, %v1727
        %v1856 = vadd.f32 %v1084, %v1728
        %v1857 = vadd.f32 %v1085, %v1729
        %v1858 = vadd.f32 %v1086, %v1730
        %v1859 = vadd.f32 %v1087, %v1731
        %v1860 = vadd.f32 %v1088, %v1732
        %v1861 = vadd.f32 %v1089, %v1733
        %v1862 = vadd.f32 %v1090, %v1734
        %v1863 = vadd.f32 %v1091, %v1735
        %v1864 = vadd.f32 %v1092, %v1736
        %v1865 = vadd.f32 %v1093, %v1737
        %v1866 = vadd.f32 %v1094, %v1738
        %v1867 = vadd.f32 %v1095, %v1739
        %v1868 = vadd.f32 %v1096, %v1740
        %v1869 = vadd.f32 %v1097, %v1741
        %v1870 = vadd.f32 %v1098, %v1742
        %v1871 = vadd.f32 %v1099, %v1743
        %v1872 = vadd.f32 %v1100, %v1744
        %vm1873 = vcmp.ge.f32.partialorder %v1745, 0.0
        %vm1874 = vcmp.ge.f32.partialorder %v1746, 0.0
        %vm1875 = vcmp.ge.f32.partialorder %v1747, 0.0
        %vm1876 = vcmp.ge.f32.partialorder %v1748, 0.0
        %vm1877 = vcmp.ge.f32.partialorder %v1749, 0.0
        %vm1878 = vcmp.ge.f32.partialorder %v1750, 0.0
        %vm1879 = vcmp.ge.f32.partialorder %v1751, 0.0
        %vm1880 = vcmp.ge.f32.partialorder %v1752, 0.0
        %vm1881 = vcmp.ge.f32.partialorder %v1753, 0.0
        %vm1882 = vcmp.ge.f32.partialorder %v1754, 0.0
        %vm1883 = vcmp.ge.f32.partialorder %v1755, 0.0
        %vm1884 = vcmp.ge.f32.partialorder %v1756, 0.0
        %vm1885 = vcmp.ge.f32.partialorder %v1757, 0.0
        %vm1886 = vcmp.ge.f32.partialorder %v1758, 0.0
        %vm1887 = vcmp.ge.f32.partialorder %v1759, 0.0
        %vm1888 = vcmp.ge.f32.partialorder %v1760, 0.0
        %vm1889 = vcmp.ge.f32.partialorder %v1761, 0.0
        %vm1890 = vcmp.ge.f32.partialorder %v1762, 0.0
        %vm1891 = vcmp.ge.f32.partialorder %v1763, 0.0
        %vm1892 = vcmp.ge.f32.partialorder %v1764, 0.0
        %vm1893 = vcmp.ge.f32.partialorder %v1765, 0.0
        %vm1894 = vcmp.ge.f32.partialorder %v1766, 0.0
        %vm1895 = vcmp.ge.f32.partialorder %v1767, 0.0
        %vm1896 = vcmp.ge.f32.partialorder %v1768, 0.0
        %vm1897 = vcmp.ge.f32.partialorder %v1769, 0.0
        %vm1898 = vcmp.ge.f32.partialorder %v1770, 0.0
        %vm1899 = vcmp.ge.f32.partialorder %v1771, 0.0
        %vm1900 = vcmp.ge.f32.partialorder %v1772, 0.0
        %vm1901 = vcmp.ge.f32.partialorder %v1773, 0.0
        %vm1902 = vcmp.ge.f32.partialorder %v1774, 0.0
        %vm1903 = vcmp.ge.f32.partialorder %v1775, 0.0
        %vm1904 = vcmp.ge.f32.partialorder %v1776, 0.0
        %vm1905 = vcmp.ge.f32.partialorder %v1777, 0.0
        %vm1906 = vcmp.ge.f32.partialorder %v1778, 0.0
        %vm1907 = vcmp.ge.f32.partialorder %v1779, 0.0
        %vm1908 = vcmp.ge.f32.partialorder %v1780, 0.0
        %vm1909 = vcmp.ge.f32.partialorder %v1781, 0.0
        %vm1910 = vcmp.ge.f32.partialorder %v1782, 0.0
        %vm1911 = vcmp.ge.f32.partialorder %v1783, 0.0
        %vm1912 = vcmp.ge.f32.partialorder %v1784, 0.0
        %vm1913 = vcmp.ge.f32.partialorder %v1785, 0.0
        %vm1914 = vcmp.ge.f32.partialorder %v1786, 0.0
        %vm1915 = vcmp.ge.f32.partialorder %v1787, 0.0
        %vm1916 = vcmp.ge.f32.partialorder %v1788, 0.0
        %vm1917 = vcmp.ge.f32.partialorder %v1789, 0.0
        %vm1918 = vcmp.ge.f32.partialorder %v1790, 0.0
        %vm1919 = vcmp.ge.f32.partialorder %v1791, 0.0
        %vm1920 = vcmp.ge.f32.partialorder %v1792, 0.0
        %vm1921 = vcmp.ge.f32.partialorder %v1793, 0.0
        %vm1922 = vcmp.ge.f32.partialorder %v1794, 0.0
        %vm1923 = vcmp.ge.f32.partialorder %v1795, 0.0
        %vm1924 = vcmp.ge.f32.partialorder %v1796, 0.0
        %vm1925 = vcmp.ge.f32.partialorder %v1797, 0.0
        %vm1926 = vcmp.ge.f32.partialorder %v1798, 0.0
        %vm1927 = vcmp.ge.f32.partialorder %v1799, 0.0
        %vm1928 = vcmp.ge.f32.partialorder %v1800, 0.0
        %vm1929 = vcmp.ge.f32.partialorder %v1801, 0.0
        %vm1930 = vcmp.ge.f32.partialorder %v1802, 0.0
        %vm1931 = vcmp.ge.f32.partialorder %v1803, 0.0
        %vm1932 = vcmp.ge.f32.partialorder %v1804, 0.0
        %vm1933 = vcmp.ge.f32.partialorder %v1805, 0.0
        %vm1934 = vcmp.ge.f32.partialorder %v1806, 0.0
        %vm1935 = vcmp.ge.f32.partialorder %v1807, 0.0
        %vm1936 = vcmp.ge.f32.partialorder %v1808, 0.0
        %vm1937 = vcmp.ge.f32.partialorder %v1809, 0.0
        %vm1938 = vcmp.ge.f32.partialorder %v1810, 0.0
        %vm1939 = vcmp.ge.f32.partialorder %v1811, 0.0
        %vm1940 = vcmp.ge.f32.partialorder %v1812, 0.0
        %vm1941 = vcmp.ge.f32.partialorder %v1813, 0.0
        %vm1942 = vcmp.ge.f32.partialorder %v1814, 0.0
        %vm1943 = vcmp.ge.f32.partialorder %v1815, 0.0
        %vm1944 = vcmp.ge.f32.partialorder %v1816, 0.0
        %vm1945 = vcmp.ge.f32.partialorder %v1817, 0.0
        %vm1946 = vcmp.ge.f32.partialorder %v1818, 0.0
        %vm1947 = vcmp.ge.f32.partialorder %v1819, 0.0
        %vm1948 = vcmp.ge.f32.partialorder %v1820, 0.0
        %vm1949 = vcmp.ge.f32.partialorder %v1821, 0.0
        %vm1950 = vcmp.ge.f32.partialorder %v1822, 0.0
        %vm1951 = vcmp.ge.f32.partialorder %v1823, 0.0
        %vm1952 = vcmp.ge.f32.partialorder %v1824, 0.0
        %vm1953 = vcmp.ge.f32.partialorder %v1825, 0.0
        %vm1954 = vcmp.ge.f32.partialorder %v1826, 0.0
        %vm1955 = vcmp.ge.f32.partialorder %v1827, 0.0
        %vm1956 = vcmp.ge.f32.partialorder %v1828, 0.0
        %vm1957 = vcmp.ge.f32.partialorder %v1829, 0.0
        %vm1958 = vcmp.ge.f32.partialorder %v1830, 0.0
        %vm1959 = vcmp.ge.f32.partialorder %v1831, 0.0
        %vm1960 = vcmp.ge.f32.partialorder %v1832, 0.0
        %vm1961 = vcmp.ge.f32.partialorder %v1833, 0.0
        %vm1962 = vcmp.ge.f32.partialorder %v1834, 0.0
        %vm1963 = vcmp.ge.f32.partialorder %v1835, 0.0
        %vm1964 = vcmp.ge.f32.partialorder %v1836, 0.0
        %vm1965 = vcmp.ge.f32.partialorder %v1837, 0.0
        %vm1966 = vcmp.ge.f32.partialorder %v1838, 0.0
        %vm1967 = vcmp.ge.f32.partialorder %v1839, 0.0
        %vm1968 = vcmp.ge.f32.partialorder %v1840, 0.0
        %vm1969 = vcmp.ge.f32.partialorder %v1841, 0.0
        %vm1970 = vcmp.ge.f32.partialorder %v1842, 0.0
        %vm1971 = vcmp.ge.f32.partialorder %v1843, 0.0
        %vm1972 = vcmp.ge.f32.partialorder %v1844, 0.0
        %vm1973 = vcmp.ge.f32.partialorder %v1845, 0.0
        %vm1974 = vcmp.ge.f32.partialorder %v1846, 0.0
        %vm1975 = vcmp.ge.f32.partialorder %v1847, 0.0
        %vm1976 = vcmp.ge.f32.partialorder %v1848, 0.0
        %vm1977 = vcmp.ge.f32.partialorder %v1849, 0.0
        %vm1978 = vcmp.ge.f32.partialorder %v1850, 0.0
        %vm1979 = vcmp.ge.f32.partialorder %v1851, 0.0
        %vm1980 = vcmp.ge.f32.partialorder %v1852, 0.0
        %vm1981 = vcmp.ge.f32.partialorder %v1853, 0.0
        %vm1982 = vcmp.ge.f32.partialorder %v1854, 0.0
        %vm1983 = vcmp.ge.f32.partialorder %v1855, 0.0
        %vm1984 = vcmp.ge.f32.partialorder %v1856, 0.0
        %vm1985 = vcmp.ge.f32.partialorder %v1857, 0.0
        %vm1986 = vcmp.ge.f32.partialorder %v1858, 0.0
        %vm1987 = vcmp.ge.f32.partialorder %v1859, 0.0
        %vm1988 = vcmp.ge.f32.partialorder %v1860, 0.0
        %vm1989 = vcmp.ge.f32.partialorder %v1861, 0.0
        %vm1990 = vcmp.ge.f32.partialorder %v1862, 0.0
        %vm1991 = vcmp.ge.f32.partialorder %v1863, 0.0
        %vm1992 = vcmp.ge.f32.partialorder %v1864, 0.0
        %vm1993 = vcmp.ge.f32.partialorder %v1865, 0.0
        %vm1994 = vcmp.ge.f32.partialorder %v1866, 0.0
        %vm1995 = vcmp.ge.f32.partialorder %v1867, 0.0
        %vm1996 = vcmp.ge.f32.partialorder %v1868, 0.0
        %vm1997 = vcmp.ge.f32.partialorder %v1869, 0.0
        %vm1998 = vcmp.ge.f32.partialorder %v1870, 0.0
        %vm1999 = vcmp.ge.f32.partialorder %v1871, 0.0
        %vm2000 = vcmp.ge.f32.partialorder %v1872, 0.0
        %v2001 = vmul.f32 %v1745, 0.01
        %v2002 = vmul.f32 %v1746, 0.01
        %v2003 = vmul.f32 %v1747, 0.01
        %v2004 = vmul.f32 %v1748, 0.01
        %v2005 = vmul.f32 %v1749, 0.01
        %v2006 = vmul.f32 %v1750, 0.01
        %v2007 = vmul.f32 %v1751, 0.01
        %v2008 = vmul.f32 %v1752, 0.01
        %v2009 = vmul.f32 %v1753, 0.01
        %v2010 = vmul.f32 %v1754, 0.01
        %v2011 = vmul.f32 %v1755, 0.01
        %v2012 = vmul.f32 %v1756, 0.01
        %v2013 = vmul.f32 %v1757, 0.01
        %v2014 = vmul.f32 %v1758, 0.01
        %v2015 = vmul.f32 %v1759, 0.01
        %v2016 = vmul.f32 %v1760, 0.01
        %v2017 = vmul.f32 %v1761, 0.01
        %v2018 = vmul.f32 %v1762, 0.01
        %v2019 = vmul.f32 %v1763, 0.01
        %v2020 = vmul.f32 %v1764, 0.01
        %v2021 = vmul.f32 %v1765, 0.01
        %v2022 = vmul.f32 %v1766, 0.01
        %v2023 = vmul.f32 %v1767, 0.01
        %v2024 = vmul.f32 %v1768, 0.01
        %v2025 = vmul.f32 %v1769, 0.01
        %v2026 = vmul.f32 %v1770, 0.01
        %v2027 = vmul.f32 %v1771, 0.01
        %v2028 = vmul.f32 %v1772, 0.01
        %v2029 = vmul.f32 %v1773, 0.01
        %v2030 = vmul.f32 %v1774, 0.01
        %v2031 = vmul.f32 %v1775, 0.01
        %v2032 = vmul.f32 %v1776, 0.01
        %v2033 = vmul.f32 %v1777, 0.01
        %v2034 = vmul.f32 %v1778, 0.01
        %v2035 = vmul.f32 %v1779, 0.01
        %v2036 = vmul.f32 %v1780, 0.01
        %v2037 = vmul.f32 %v1781, 0.01
        %v2038 = vmul.f32 %v1782, 0.01
        %v2039 = vmul.f32 %v1783, 0.01
        %v2040 = vmul.f32 %v1784, 0.01
        %v2041 = vmul.f32 %v1785, 0.01
        %v2042 = vmul.f32 %v1786, 0.01
        %v2043 = vmul.f32 %v1787, 0.01
        %v2044 = vmul.f32 %v1788, 0.01
        %v2045 = vmul.f32 %v1789, 0.01
        %v2046 = vmul.f32 %v1790, 0.01
        %v2047 = vmul.f32 %v1791, 0.01
        %v2048 = vmul.f32 %v1792, 0.01
        %v2049 = vmul.f32 %v1793, 0.01
        %v2050 = vmul.f32 %v1794, 0.01
        %v2051 = vmul.f32 %v1795, 0.01
        %v2052 = vmul.f32 %v1796, 0.01
        %v2053 = vmul.f32 %v1797, 0.01
        %v2054 = vmul.f32 %v1798, 0.01
        %v2055 = vmul.f32 %v1799, 0.01
        %v2056 = vmul.f32 %v1800, 0.01
        %v2057 = vmul.f32 %v1801, 0.01
        %v2058 = vmul.f32 %v1802, 0.01
        %v2059 = vmul.f32 %v1803, 0.01
        %v2060 = vmul.f32 %v1804, 0.01
        %v2061 = vmul.f32 %v1805, 0.01
        %v2062 = vmul.f32 %v1806, 0.01
        %v2063 = vmul.f32 %v1807, 0.01
        %v2064 = vmul.f32 %v1808, 0.01
        %v2065 = vmul.f32 %v1809, 0.01
        %v2066 = vmul.f32 %v1810, 0.01
        %v2067 = vmul.f32 %v1811, 0.01
        %v2068 = vmul.f32 %v1812, 0.01
        %v2069 = vmul.f32 %v1813, 0.01
        %v2070 = vmul.f32 %v1814, 0.01
        %v2071 = vmul.f32 %v1815, 0.01
        %v2072 = vmul.f32 %v1816, 0.01
        %v2073 = vmul.f32 %v1817, 0.01
        %v2074 = vmul.f32 %v1818, 0.01
        %v2075 = vmul.f32 %v1819, 0.01
        %v2076 = vmul.f32 %v1820, 0.01
        %v2077 = vmul.f32 %v1821, 0.01
        %v2078 = vmul.f32 %v1822, 0.01
        %v2079 = vmul.f32 %v1823, 0.01
        %v2080 = vmul.f32 %v1824, 0.01
        %v2081 = vmul.f32 %v1825, 0.01
        %v2082 = vmul.f32 %v1826, 0.01
        %v2083 = vmul.f32 %v1827, 0.01
        %v2084 = vmul.f32 %v1828, 0.01
        %v2085 = vmul.f32 %v1829, 0.01
        %v2086 = vmul.f32 %v1830, 0.01
        %v2087 = vmul.f32 %v1831, 0.01
        %v2088 = vmul.f32 %v1832, 0.01
        %v2089 = vmul.f32 %v1833, 0.01
        %v2090 = vmul.f32 %v1834, 0.01
        %v2091 = vmul.f32 %v1835, 0.01
        %v2092 = vmul.f32 %v1836, 0.01
        %v2093 = vmul.f32 %v1837, 0.01
        %v2094 = vmul.f32 %v1838, 0.01
        %v2095 = vmul.f32 %v1839, 0.01
        %v2096 = vmul.f32 %v1840, 0.01
        %v2097 = vmul.f32 %v1841, 0.01
        %v2098 = vmul.f32 %v1842, 0.01
        %v2099 = vmul.f32 %v1843, 0.01
        %v2100 = vmul.f32 %v1844, 0.01
        %v2101 = vmul.f32 %v1845, 0.01
        %v2102 = vmul.f32 %v1846, 0.01
        %v2103 = vmul.f32 %v1847, 0.01
        %v2104 = vmul.f32 %v1848, 0.01
        %v2105 = vmul.f32 %v1849, 0.01
        %v2106 = vmul.f32 %v1850, 0.01
        %v2107 = vmul.f32 %v1851, 0.01
        %v2108 = vmul.f32 %v1852, 0.01
        %v2109 = vmul.f32 %v1853, 0.01
        %v2110 = vmul.f32 %v1854, 0.01
        %v2111 = vmul.f32 %v1855, 0.01
        %v2112 = vmul.f32 %v1856, 0.01
        %v2113 = vmul.f32 %v1857, 0.01
        %v2114 = vmul.f32 %v1858, 0.01
        %v2115 = vmul.f32 %v1859, 0.01
        %v2116 = vmul.f32 %v1860, 0.01
        %v2117 = vmul.f32 %v1861, 0.01
        %v2118 = vmul.f32 %v1862, 0.01
        %v2119 = vmul.f32 %v1863, 0.01
        %v2120 = vmul.f32 %v1864, 0.01
        %v2121 = vmul.f32 %v1865, 0.01
        %v2122 = vmul.f32 %v1866, 0.01
        %v2123 = vmul.f32 %v1867, 0.01
        %v2124 = vmul.f32 %v1868, 0.01
        %v2125 = vmul.f32 %v1869, 0.01
        %v2126 = vmul.f32 %v1870, 0.01
        %v2127 = vmul.f32 %v1871, 0.01
        %v2128 = vmul.f32 %v1872, 0.01
        %v2129 = vsel %vm1873, %v1745, %v2001
        %v2130 = vsel %vm1874, %v1746, %v2002
        %v2131 = vsel %vm1875, %v1747, %v2003
        %v2132 = vsel %vm1876, %v1748, %v2004
        %v2133 = vsel %vm1877, %v1749, %v2005
        %v2134 = vsel %vm1878, %v1750, %v2006
        %v2135 = vsel %vm1879, %v1751, %v2007
        %v2136 = vsel %vm1880, %v1752, %v2008
        %v2137 = vsel %vm1881, %v1753, %v2009
        %v2138 = vsel %vm1882, %v1754, %v2010
        %v2139 = vsel %vm1883, %v1755, %v2011
        %v2140 = vsel %vm1884, %v1756, %v2012
        %v2141 = vsel %vm1885, %v1757, %v2013
        %v2142 = vsel %vm1886, %v1758, %v2014
        %v2143 = vsel %vm1887, %v1759, %v2015
        %v2144 = vsel %vm1888, %v1760, %v2016
        %v2145 = vsel %vm1889, %v1761, %v2017
        %v2146 = vsel %vm1890, %v1762, %v2018
        %v2147 = vsel %vm1891, %v1763, %v2019
        %v2148 = vsel %vm1892, %v1764, %v2020
        %v2149 = vsel %vm1893, %v1765, %v2021
        %v2150 = vsel %vm1894, %v1766, %v2022
        %v2151 = vsel %vm1895, %v1767, %v2023
        %v2152 = vsel %vm1896, %v1768, %v2024
        %v2153 = vsel %vm1897, %v1769, %v2025
        %v2154 = vsel %vm1898, %v1770, %v2026
        %v2155 = vsel %vm1899, %v1771, %v2027
        %v2156 = vsel %vm1900, %v1772, %v2028
        %v2157 = vsel %vm1901, %v1773, %v2029
        %v2158 = vsel %vm1902, %v1774, %v2030
        %v2159 = vsel %vm1903, %v1775, %v2031
        %v2160 = vsel %vm1904, %v1776, %v2032
        %v2161 = vsel %vm1905, %v1777, %v2033
        %v2162 = vsel %vm1906, %v1778, %v2034
        %v2163 = vsel %vm1907, %v1779, %v2035
        %v2164 = vsel %vm1908, %v1780, %v2036
        %v2165 = vsel %vm1909, %v1781, %v2037
        %v2166 = vsel %vm1910, %v1782, %v2038
        %v2167 = vsel %vm1911, %v1783, %v2039
        %v2168 = vsel %vm1912, %v1784, %v2040
        %v2169 = vsel %vm1913, %v1785, %v2041
        %v2170 = vsel %vm1914, %v1786, %v2042
        %v2171 = vsel %vm1915, %v1787, %v2043
        %v2172 = vsel %vm1916, %v1788, %v2044
        %v2173 = vsel %vm1917, %v1789, %v2045
        %v2174 = vsel %vm1918, %v1790, %v2046
        %v2175 = vsel %vm1919, %v1791, %v2047
        %v2176 = vsel %vm1920, %v1792, %v2048
        %v2177 = vsel %vm1921, %v1793, %v2049
        %v2178 = vsel %vm1922, %v1794, %v2050
        %v2179 = vsel %vm1923, %v1795, %v2051
        %v2180 = vsel %vm1924, %v1796, %v2052
        %v2181 = vsel %vm1925, %v1797, %v2053
        %v2182 = vsel %vm1926, %v1798, %v2054
        %v2183 = vsel %vm1927, %v1799, %v2055
        %v2184 = vsel %vm1928, %v1800, %v2056
        %v2185 = vsel %vm1929, %v1801, %v2057
        %v2186 = vsel %vm1930, %v1802, %v2058
        %v2187 = vsel %vm1931, %v1803, %v2059
        %v2188 = vsel %vm1932, %v1804, %v2060
        %v2189 = vsel %vm1933, %v1805, %v2061
        %v2190 = vsel %vm1934, %v1806, %v2062
        %v2191 = vsel %vm1935, %v1807, %v2063
        %v2192 = vsel %vm1936, %v1808, %v2064
        %v2193 = vsel %vm1937, %v1809, %v2065
        %v2194 = vsel %vm1938, %v1810, %v2066
        %v2195 = vsel %vm1939, %v1811, %v2067
        %v2196 = vsel %vm1940, %v1812, %v2068
        %v2197 = vsel %vm1941, %v1813, %v2069
        %v2198 = vsel %vm1942, %v1814, %v2070
        %v2199 = vsel %vm1943, %v1815, %v2071
        %v2200 = vsel %vm1944, %v1816, %v2072
        %v2201 = vsel %vm1945, %v1817, %v2073
        %v2202 = vsel %vm1946, %v1818, %v2074
        %v2203 = vsel %vm1947, %v1819, %v2075
        %v2204 = vsel %vm1948, %v1820, %v2076
        %v2205 = vsel %vm1949, %v1821, %v2077
        %v2206 = vsel %vm1950, %v1822, %v2078
        %v2207 = vsel %vm1951, %v1823, %v2079
        %v2208 = vsel %vm1952, %v1824, %v2080
        %v2209 = vsel %vm1953, %v1825, %v2081
        %v2210 = vsel %vm1954, %v1826, %v2082
        %v2211 = vsel %vm1955, %v1827, %v2083
        %v2212 = vsel %vm1956, %v1828, %v2084
        %v2213 = vsel %vm1957, %v1829, %v2085
        %v2214 = vsel %vm1958, %v1830, %v2086
        %v2215 = vsel %vm1959, %v1831, %v2087
        %v2216 = vsel %vm1960, %v1832, %v2088
        %v2217 = vsel %vm1961, %v1833, %v2089
        %v2218 = vsel %vm1962, %v1834, %v2090
        %v2219 = vsel %vm1963, %v1835, %v2091
        %v2220 = vsel %vm1964, %v1836, %v2092
        %v2221 = vsel %vm1965, %v1837, %v2093
        %v2222 = vsel %vm1966, %v1838, %v2094
        %v2223 = vsel %vm1967, %v1839, %v2095
        %v2224 = vsel %vm1968, %v1840, %v2096
        %v2225 = vsel %vm1969, %v1841, %v2097
        %v2226 = vsel %vm1970, %v1842, %v2098
        %v2227 = vsel %vm1971, %v1843, %v2099
        %v2228 = vsel %vm1972, %v1844, %v2100
        %v2229 = vsel %vm1973, %v1845, %v2101
        %v2230 = vsel %vm1974, %v1846, %v2102
        %v2231 = vsel %vm1975, %v1847, %v2103
        %v2232 = vsel %vm1976, %v1848, %v2104
        %v2233 = vsel %vm1977, %v1849, %v2105
        %v2234 = vsel %vm1978, %v1850, %v2106
        %v2235 = vsel %vm1979, %v1851, %v2107
        %v2236 = vsel %vm1980, %v1852, %v2108
        %v2237 = vsel %vm1981, %v1853, %v2109
        %v2238 = vsel %vm1982, %v1854, %v2110
        %v2239 = vsel %vm1983, %v1855, %v2111
        %v2240 = vsel %vm1984, %v1856, %v2112
        %v2241 = vsel %vm1985, %v1857, %v2113
        %v2242 = vsel %vm1986, %v1858, %v2114
        %v2243 = vsel %vm1987, %v1859, %v2115
        %v2244 = vsel %vm1988, %v1860, %v2116
        %v2245 = vsel %vm1989, %v1861, %v2117
        %v2246 = vsel %vm1990, %v1862, %v2118
        %v2247 = vsel %vm1991, %v1863, %v2119
        %v2248 = vsel %vm1992, %v1864, %v2120
        %v2249 = vsel %vm1993, %v1865, %v2121
        %v2250 = vsel %vm1994, %v1866, %v2122
        %v2251 = vsel %vm1995, %v1867, %v2123
        %v2252 = vsel %vm1996, %v1868, %v2124
        %v2253 = vsel %vm1997, %v1869, %v2125
        %v2254 = vsel %vm1998, %v1870, %v2126
        %v2255 = vsel %vm1999, %v1871, %v2127
        %v2256 = vsel %vm2000, %v1872, %v2128
        %v2257 = vld [vmem:[%s2] sm:$0xf]
        %v2258 = vld [vmem:[%s2 + $0x4] sm:$0xf]
        %v2259 = vld [vmem:[%s2 + $0x8] sm:$0xf]
        %v2260 = vld [vmem:[%s2 + $0xc] sm:$0xf]
        %v2261 = vld [vmem:[%s2 + $0x10] sm:$0xf]
        %v2262 = vld [vmem:[%s2 + $0x14] sm:$0xf]
        %v2263 = vld [vmem:[%s2 + $0x18] sm:$0xf]
        %v2264 = vld [vmem:[%s2 + $0x1c] sm:$0xf]
        %v2265 = vld [vmem:[%s2 + $0x20] sm:$0xf]
        %v2266 = vld [vmem:[%s2 + $0x24] sm:$0xf]
        %v2267 = vld [vmem:[%s2 + $0x28] sm:$0xf]
        %v2268 = vld [vmem:[%s2 + $0x2c] sm:$0xf]
        %v2269 = vld [vmem:[%s2 + $0x30] sm:$0xf]
        %v2270 = vld [vmem:[%s2 + $0x34] sm:$0xf]
        %v2271 = vld [vmem:[%s2 + $0x38] sm:$0xf]
        %v2272 = vld [vmem:[%s2 + $0x3c] sm:$0xf]
        %v2273 = vpack.c.bf16 %v2130, %v2129
        %v2274 = vpack.c.bf16 %v2132, %v2131
        %v2275 = vpack.c.bf16 %v2134, %v2133
        %v2276 = vpack.c.bf16 %v2136, %v2135
        %v2277 = vpack.c.bf16 %v2138, %v2137
        %v2278 = vpack.c.bf16 %v2140, %v2139
        %v2279 = vpack.c.bf16 %v2142, %v2141
        %v2280 = vpack.c.bf16 %v2144, %v2143
        %v2281 = vpack.c.bf16 %v2146, %v2145
        %v2282 = vpack.c.bf16 %v2148, %v2147
        %v2283 = vpack.c.bf16 %v2150, %v2149
        %v2284 = vpack.c.bf16 %v2152, %v2151
        %v2285 = vpack.c.bf16 %v2154, %v2153
        %v2286 = vpack.c.bf16 %v2156, %v2155
        %v2287 = vpack.c.bf16 %v2158, %v2157
        %v2288 = vpack.c.bf16 %v2160, %v2159
        %v2289 = vpack.c.bf16 %v2162, %v2161
        %v2290 = vpack.c.bf16 %v2164, %v2163
        %v2291 = vpack.c.bf16 %v2166, %v2165
        %v2292 = vpack.c.bf16 %v2168, %v2167
        %v2293 = vpack.c.bf16 %v2170, %v2169
        %v2294 = vpack.c.bf16 %v2172, %v2171
        %v2295 = vpack.c.bf16 %v2174, %v2173
        %v2296 = vpack.c.bf16 %v2176, %v2175
        %v2297 = vpack.c.bf16 %v2178, %v2177
        %v2298 = vpack.c.bf16 %v2180, %v2179
        %v2299 = vpack.c.bf16 %v2182, %v2181
        %v2300 = vpack.c.bf16 %v2184, %v2183
        %v2301 = vpack.c.bf16 %v2186, %v2185
        %v2302 = vpack.c.bf16 %v2188, %v2187
        %v2303 = vpack.c.bf16 %v2190, %v2189
        %v2304 = vpack.c.bf16 %v2192, %v2191
        %v2305 = vpack.c.bf16 %v2194, %v2193
        %v2306 = vpack.c.bf16 %v2196, %v2195
        %v2307 = vpack.c.bf16 %v2198, %v2197
        %v2308 = vpack.c.bf16 %v2200, %v2199
        %v2309 = vpack.c.bf16 %v2202, %v2201
        %v2310 = vpack.c.bf16 %v2204, %v2203
        %v2311 = vpack.c.bf16 %v2206, %v2205
        %v2312 = vpack.c.bf16 %v2208, %v2207
        %v2313 = vpack.c.bf16 %v2210, %v2209
        %v2314 = vpack.c.bf16 %v2212, %v2211
        %v2315 = vpack.c.bf16 %v2214, %v2213
        %v2316 = vpack.c.bf16 %v2216, %v2215
        %v2317 = vpack.c.bf16 %v2218, %v2217
        %v2318 = vpack.c.bf16 %v2220, %v2219
        %v2319 = vpack.c.bf16 %v2222, %v2221
        %v2320 = vpack.c.bf16 %v2224, %v2223
        %v2321 = vpack.c.bf16 %v2226, %v2225
        %v2322 = vpack.c.bf16 %v2228, %v2227
        %v2323 = vpack.c.bf16 %v2230, %v2229
        %v2324 = vpack.c.bf16 %v2232, %v2231
        %v2325 = vpack.c.bf16 %v2234, %v2233
        %v2326 = vpack.c.bf16 %v2236, %v2235
        %v2327 = vpack.c.bf16 %v2238, %v2237
        %v2328 = vpack.c.bf16 %v2240, %v2239
        %v2329 = vpack.c.bf16 %v2242, %v2241
        %v2330 = vpack.c.bf16 %v2244, %v2243
        %v2331 = vpack.c.bf16 %v2246, %v2245
        %v2332 = vpack.c.bf16 %v2248, %v2247
        %v2333 = vpack.c.bf16 %v2250, %v2249
        %v2334 = vpack.c.bf16 %v2252, %v2251
        %v2335 = vpack.c.bf16 %v2254, %v2253
        %v2336 = vpack.c.bf16 %v2256, %v2255
        %v2353 = vunpack.c.l.b16 %v2257
        %v2354 = vunpack.c.l.b16 %v2258
        %v2355 = vunpack.c.l.b16 %v2259
        %v2356 = vunpack.c.l.b16 %v2260
        %v2357 = vunpack.c.l.b16 %v2261
        %v2358 = vunpack.c.l.b16 %v2262
        %v2359 = vunpack.c.l.b16 %v2263
        %v2360 = vunpack.c.l.b16 %v2264
        %v2361 = vunpack.c.l.b16 %v2265
        %v2362 = vunpack.c.l.b16 %v2266
        %v2363 = vunpack.c.l.b16 %v2267
        %v2364 = vunpack.c.l.b16 %v2268
        %v2365 = vunpack.c.l.b16 %v2269
        %v2366 = vunpack.c.l.b16 %v2270
        %v2367 = vunpack.c.l.b16 %v2271
        %v2368 = vunpack.c.l.b16 %v2272
        %v2369 = vpack.c.b16 %v2354, %v2353
        %v2370 = vpack.c.b16 %v2356, %v2355
        %v2371 = vpack.c.b16 %v2358, %v2357
        %v2372 = vpack.c.b16 %v2360, %v2359
        %v2373 = vpack.c.b16 %v2362, %v2361
        %v2374 = vpack.c.b16 %v2364, %v2363
        %v2375 = vpack.c.b16 %v2366, %v2365
        %v2376 = vpack.c.b16 %v2368, %v2367
        %2385 = vmatprep.subr.bf16.mxu0 0
        %2386 = vmatpush1.bf16.msra.mxu0 %v2376
        %2387 = vmatprep.subr.bf16.mxu0 0
        %2388 = vmatpush1.bf16.msra.mxu0 %v2375
        %2389 = vmatprep.subr.bf16.mxu0 0
        %2390 = vmatpush1.bf16.msra.mxu0 %v2374
        %2391 = vmatprep.subr.bf16.mxu0 0
        %2392 = vmatpush1.bf16.msra.mxu0 %v2373
        %2393 = vmatprep.subr.bf16.mxu0 0
        %2394 = vmatpush1.bf16.msra.mxu0 %v2372
        %2395 = vmatprep.subr.bf16.mxu0 0
        %2396 = vmatpush1.bf16.msra.mxu0 %v2371
        %2397 = vmatprep.subr.bf16.mxu0 0
        %2398 = vmatpush1.bf16.msra.mxu0 %v2370
        %2399 = vmatprep.subr.bf16.mxu0 0
        %2400 = vmatpush1.bf16.msra.mxu0 %v2369
        %2401 = vmatprep.subr.bf16.mxu0 0
        %2402 = vmatpush2.bf16.msra.mxu0 0
        %2403 = vmatprep.subr.bf16.mxu0 0
        %2404 = vmatpush2.bf16.msra.mxu0 0
        %2405 = vmatprep.subr.bf16.mxu0 0
        %2406 = vmatpush2.bf16.msra.mxu0 0
        %2407 = vmatprep.subr.bf16.mxu0 0
        %2408 = vmatpush2.bf16.msra.mxu0 0
        %2409 = vmatprep.subr.bf16.mxu0 0
        %2410 = vmatpush2.bf16.msra.mxu0 0
        %2411 = vmatprep.subr.bf16.mxu0 0
        %2412 = vmatpush2.bf16.msra.mxu0 0
        %2413 = vmatprep.subr.bf16.mxu0 0
        %2414 = vmatpush2.bf16.msra.mxu0 0
        %2415 = vmatprep.subr.bf16.mxu0 0
        %2416 = vmatpush2.bf16.msra.mxu0 0
        %2417 = vmatprep.mubr.bf16.mxu0 0
        %2418 = vmatmul.mubr.bf16.gmra.mxu0 %v2273
        %v2419 = vpop.f32.mrf.mxu0
        %v2420 = vadd.f32 0.0, %v2419
        %v2421 = vpop.f32.mrf.mxu0
        %v2422 = vpop.f32.mrf.mxu0
        %v2423 = vadd.f32 0.0, %v2422
        %v2424 = vpop.f32.mrf.mxu0
        %2425 = vmatprep.mubr.bf16.mxu0 0
        %2426 = vmatmul.mubr.bf16.gmra.mxu0 %v2274
        %v2427 = vpop.f32.mrf.mxu0
        %v2428 = vadd.f32 0.0, %v2427
        %v2429 = vpop.f32.mrf.mxu0
        %v2430 = vpop.f32.mrf.mxu0
        %v2431 = vadd.f32 0.0, %v2430
        %v2432 = vpop.f32.mrf.mxu0
        %2433 = vmatprep.mubr.bf16.mxu0 0
        %2434 = vmatmul.mubr.bf16.gmra.mxu0 %v2275
        %v2435 = vpop.f32.mrf.mxu0
        %v2436 = vadd.f32 0.0, %v2435
        %v2437 = vpop.f32.mrf.mxu0
        %v2438 = vpop.f32.mrf.mxu0
        %v2439 = vadd.f32 0.0, %v2438
        %v2440 = vpop.f32.mrf.mxu0
        %2441 = vmatprep.mubr.bf16.mxu0 0
        %2442 = vmatmul.mubr.bf16.gmra.mxu0 %v2276
        %v2443 = vpop.f32.mrf.mxu0
        %v2444 = vadd.f32 0.0, %v2443
        %v2445 = vpop.f32.mrf.mxu0
        %v2446 = vpop.f32.mrf.mxu0
        %v2447 = vadd.f32 0.0, %v2446
        %v2448 = vpop.f32.mrf.mxu0
        %2449 = vmatprep.mubr.bf16.mxu0 0
        %2450 = vmatmul.mubr.bf16.gmra.mxu0 %v2277
        %v2451 = vpop.f32.mrf.mxu0
        %v2452 = vadd.f32 0.0, %v2451
        %v2453 = vpop.f32.mrf.mxu0
        %v2454 = vpop.f32.mrf.mxu0
        %v2455 = vadd.f32 0.0, %v2454
        %v2456 = vpop.f32.mrf.mxu0
        %2457 = vmatprep.mubr.bf16.mxu0 0
        %2458 = vmatmul.mubr.bf16.gmra.mxu0 %v2278
        %v2459 = vpop.f32.mrf.mxu0
        %v2460 = vadd.f32 0.0, %v2459
        %v2461 = vpop.f32.mrf.mxu0
        %v2462 = vpop.f32.mrf.mxu0
        %v2463 = vadd.f32 0.0, %v2462
        %v2464 = vpop.f32.mrf.mxu0
        %2465 = vmatprep.mubr.bf16.mxu0 0
        %2466 = vmatmul.mubr.bf16.gmra.mxu0 %v2279
        %v2467 = vpop.f32.mrf.mxu0
        %v2468 = vadd.f32 0.0, %v2467
        %v2469 = vpop.f32.mrf.mxu0
        %v2470 = vpop.f32.mrf.mxu0
        %v2471 = vadd.f32 0.0, %v2470
        %v2472 = vpop.f32.mrf.mxu0
        %2473 = vmatprep.mubr.bf16.mxu0 0
        %2474 = vmatmul.mubr.bf16.gmra.mxu0 %v2280
        %v2475 = vpop.f32.mrf.mxu0
        %v2476 = vadd.f32 0.0, %v2475
        %v2477 = vpop.f32.mrf.mxu0
        %v2478 = vpop.f32.mrf.mxu0
        %v2479 = vadd.f32 0.0, %v2478
        %v2480 = vpop.f32.mrf.mxu0
        %2481 = vmatprep.mubr.bf16.mxu0 0
        %2482 = vmatmul.mubr.bf16.gmra.mxu0 %v2281
        %v2483 = vpop.f32.mrf.mxu0
        %v2484 = vadd.f32 0.0, %v2483
        %v2485 = vpop.f32.mrf.mxu0
        %v2486 = vpop.f32.mrf.mxu0
        %v2487 = vadd.f32 0.0, %v2486
        %v2488 = vpop.f32.mrf.mxu0
        %2489 = vmatprep.mubr.bf16.mxu0 0
        %2490 = vmatmul.mubr.bf16.gmra.mxu0 %v2282
        %v2491 = vpop.f32.mrf.mxu0
        %v2492 = vadd.f32 0.0, %v2491
        %v2493 = vpop.f32.mrf.mxu0
        %v2494 = vpop.f32.mrf.mxu0
        %v2495 = vadd.f32 0.0, %v2494
        %v2496 = vpop.f32.mrf.mxu0
        %2497 = vmatprep.mubr.bf16.mxu0 0
        %2498 = vmatmul.mubr.bf16.gmra.mxu0 %v2283
        %v2499 = vpop.f32.mrf.mxu0
        %v2500 = vadd.f32 0.0, %v2499
        %v2501 = vpop.f32.mrf.mxu0
        %v2502 = vpop.f32.mrf.mxu0
        %v2503 = vadd.f32 0.0, %v2502
        %v2504 = vpop.f32.mrf.mxu0
        %2505 = vmatprep.mubr.bf16.mxu0 0
        %2506 = vmatmul.mubr.bf16.gmra.mxu0 %v2284
        %v2507 = vpop.f32.mrf.mxu0
        %v2508 = vadd.f32 0.0, %v2507
        %v2509 = vpop.f32.mrf.mxu0
        %v2510 = vpop.f32.mrf.mxu0
        %v2511 = vadd.f32 0.0, %v2510
        %v2512 = vpop.f32.mrf.mxu0
        %2513 = vmatprep.mubr.bf16.mxu0 0
        %2514 = vmatmul.mubr.bf16.gmra.mxu0 %v2285
        %v2515 = vpop.f32.mrf.mxu0
        %v2516 = vadd.f32 0.0, %v2515
        %v2517 = vpop.f32.mrf.mxu0
        %v2518 = vpop.f32.mrf.mxu0
        %v2519 = vadd.f32 0.0, %v2518
        %v2520 = vpop.f32.mrf.mxu0
        %2521 = vmatprep.mubr.bf16.mxu0 0
        %2522 = vmatmul.mubr.bf16.gmra.mxu0 %v2286
        %v2523 = vpop.f32.mrf.mxu0
        %v2524 = vadd.f32 0.0, %v2523
        %v2525 = vpop.f32.mrf.mxu0
        %v2526 = vpop.f32.mrf.mxu0
        %v2527 = vadd.f32 0.0, %v2526
        %v2528 = vpop.f32.mrf.mxu0
        %2529 = vmatprep.mubr.bf16.mxu0 0
        %2530 = vmatmul.mubr.bf16.gmra.mxu0 %v2287
        %v2531 = vpop.f32.mrf.mxu0
        %v2532 = vadd.f32 0.0, %v2531
        %v2533 = vpop.f32.mrf.mxu0
        %v2534 = vpop.f32.mrf.mxu0
        %v2535 = vadd.f32 0.0, %v2534
        %v2536 = vpop.f32.mrf.mxu0
        %2537 = vmatprep.mubr.bf16.mxu0 0
        %2538 = vmatmul.mubr.bf16.gmra.mxu0 %v2288
        %v2539 = vpop.f32.mrf.mxu0
        %v2540 = vadd.f32 0.0, %v2539
        %v2541 = vpop.f32.mrf.mxu0
        %v2542 = vpop.f32.mrf.mxu0
        %v2543 = vadd.f32 0.0, %v2542
        %v2544 = vpop.f32.mrf.mxu0
        %2545 = vmatprep.mubr.bf16.mxu0 0
        %2546 = vmatmul.mubr.bf16.gmra.mxu0 %v2289
        %v2547 = vpop.f32.mrf.mxu0
        %v2548 = vadd.f32 0.0, %v2547
        %v2549 = vpop.f32.mrf.mxu0
        %v2550 = vpop.f32.mrf.mxu0
        %v2551 = vadd.f32 0.0, %v2550
        %v2552 = vpop.f32.mrf.mxu0
        %2553 = vmatprep.mubr.bf16.mxu0 0
        %2554 = vmatmul.mubr.bf16.gmra.mxu0 %v2290
        %v2555 = vpop.f32.mrf.mxu0
        %v2556 = vadd.f32 0.0, %v2555
        %v2557 = vpop.f32.mrf.mxu0
        %v2558 = vpop.f32.mrf.mxu0
        %v2559 = vadd.f32 0.0, %v2558
        %v2560 = vpop.f32.mrf.mxu0
        %2561 = vmatprep.mubr.bf16.mxu0 0
        %2562 = vmatmul.mubr.bf16.gmra.mxu0 %v2291
        %v2563 = vpop.f32.mrf.mxu0
        %v2564 = vadd.f32 0.0, %v2563
        %v2565 = vpop.f32.mrf.mxu0
        %v2566 = vpop.f32.mrf.mxu0
        %v2567 = vadd.f32 0.0, %v2566
        %v2568 = vpop.f32.mrf.mxu0
        %2569 = vmatprep.mubr.bf16.mxu0 0
        %2570 = vmatmul.mubr.bf16.gmra.mxu0 %v2292
        %v2571 = vpop.f32.mrf.mxu0
        %v2572 = vadd.f32 0.0, %v2571
        %v2573 = vpop.f32.mrf.mxu0
        %v2574 = vpop.f32.mrf.mxu0
        %v2575 = vadd.f32 0.0, %v2574
        %v2576 = vpop.f32.mrf.mxu0
        %2577 = vmatprep.mubr.bf16.mxu0 0
        %2578 = vmatmul.mubr.bf16.gmra.mxu0 %v2293
        %v2579 = vpop.f32.mrf.mxu0
        %v2580 = vadd.f32 0.0, %v2579
        %v2581 = vpop.f32.mrf.mxu0
        %v2582 = vpop.f32.mrf.mxu0
        %v2583 = vadd.f32 0.0, %v2582
        %v2584 = vpop.f32.mrf.mxu0
        %2585 = vmatprep.mubr.bf16.mxu0 0
        %2586 = vmatmul.mubr.bf16.gmra.mxu0 %v2294
        %v2587 = vpop.f32.mrf.mxu0
        %v2588 = vadd.f32 0.0, %v2587
        %v2589 = vpop.f32.mrf.mxu0
        %v2590 = vpop.f32.mrf.mxu0
        %v2591 = vadd.f32 0.0, %v2590
        %v2592 = vpop.f32.mrf.mxu0
        %2593 = vmatprep.mubr.bf16.mxu0 0
        %2594 = vmatmul.mubr.bf16.gmra.mxu0 %v2295
        %v2595 = vpop.f32.mrf.mxu0
        %v2596 = vadd.f32 0.0, %v2595
        %v2597 = vpop.f32.mrf.mxu0
        %v2598 = vpop.f32.mrf.mxu0
        %v2599 = vadd.f32 0.0, %v2598
        %v2600 = vpop.f32.mrf.mxu0
        %2601 = vmatprep.mubr.bf16.mxu0 0
        %2602 = vmatmul.mubr.bf16.gmra.mxu0 %v2296
        %v2603 = vpop.f32.mrf.mxu0
        %v2604 = vadd.f32 0.0, %v2603
        %v2605 = vpop.f32.mrf.mxu0
        %v2606 = vpop.f32.mrf.mxu0
        %v2607 = vadd.f32 0.0, %v2606
        %v2608 = vpop.f32.mrf.mxu0
        %2609 = vmatprep.mubr.bf16.mxu0 0
        %2610 = vmatmul.mubr.bf16.gmra.mxu0 %v2297
        %v2611 = vpop.f32.mrf.mxu0
        %v2612 = vadd.f32 0.0, %v2611
        %v2613 = vpop.f32.mrf.mxu0
        %v2614 = vpop.f32.mrf.mxu0
        %v2615 = vadd.f32 0.0, %v2614
        %v2616 = vpop.f32.mrf.mxu0
        %2617 = vmatprep.mubr.bf16.mxu0 0
        %2618 = vmatmul.mubr.bf16.gmra.mxu0 %v2298
        %v2619 = vpop.f32.mrf.mxu0
        %v2620 = vadd.f32 0.0, %v2619
        %v2621 = vpop.f32.mrf.mxu0
        %v2622 = vpop.f32.mrf.mxu0
        %v2623 = vadd.f32 0.0, %v2622
        %v2624 = vpop.f32.mrf.mxu0
        %2625 = vmatprep.mubr.bf16.mxu0 0
        %2626 = vmatmul.mubr.bf16.gmra.mxu0 %v2299
        %v2627 = vpop.f32.mrf.mxu0
        %v2628 = vadd.f32 0.0, %v2627
        %v2629 = vpop.f32.mrf.mxu0
        %v2630 = vpop.f32.mrf.mxu0
        %v2631 = vadd.f32 0.0, %v2630
        %v2632 = vpop.f32.mrf.mxu0
        %2633 = vmatprep.mubr.bf16.mxu0 0
        %2634 = vmatmul.mubr.bf16.gmra.mxu0 %v2300
        %v2635 = vpop.f32.mrf.mxu0
        %v2636 = vadd.f32 0.0, %v2635
        %v2637 = vpop.f32.mrf.mxu0
        %v2638 = vpop.f32.mrf.mxu0
        %v2639 = vadd.f32 0.0, %v2638
        %v2640 = vpop.f32.mrf.mxu0
        %2641 = vmatprep.mubr.bf16.mxu0 0
        %2642 = vmatmul.mubr.bf16.gmra.mxu0 %v2301
        %v2643 = vpop.f32.mrf.mxu0
        %v2644 = vadd.f32 0.0, %v2643
        %v2645 = vpop.f32.mrf.mxu0
        %v2646 = vpop.f32.mrf.mxu0
        %v2647 = vadd.f32 0.0, %v2646
        %v2648 = vpop.f32.mrf.mxu0
        %2649 = vmatprep.mubr.bf16.mxu0 0
        %2650 = vmatmul.mubr.bf16.gmra.mxu0 %v2302
        %v2651 = vpop.f32.mrf.mxu0
        %v2652 = vadd.f32 0.0, %v2651
        %v2653 = vpop.f32.mrf.mxu0
        %v2654 = vpop.f32.mrf.mxu0
        %v2655 = vadd.f32 0.0, %v2654
        %v2656 = vpop.f32.mrf.mxu0
        %2657 = vmatprep.mubr.bf16.mxu0 0
        %2658 = vmatmul.mubr.bf16.gmra.mxu0 %v2303
        %v2659 = vpop.f32.mrf.mxu0
        %v2660 = vadd.f32 0.0, %v2659
        %v2661 = vpop.f32.mrf.mxu0
        %v2662 = vpop.f32.mrf.mxu0
        %v2663 = vadd.f32 0.0, %v2662
        %v2664 = vpop.f32.mrf.mxu0
        %2665 = vmatprep.mubr.bf16.mxu0 0
        %2666 = vmatmul.mubr.bf16.gmra.mxu0 %v2304
        %v2667 = vpop.f32.mrf.mxu0
        %v2668 = vadd.f32 0.0, %v2667
        %v2669 = vpop.f32.mrf.mxu0
        %v2670 = vpop.f32.mrf.mxu0
        %v2671 = vadd.f32 0.0, %v2670
        %v2672 = vpop.f32.mrf.mxu0
        %2673 = vmatprep.mubr.bf16.mxu0 0
        %2674 = vmatmul.mubr.bf16.gmra.mxu0 %v2305
        %v2675 = vpop.f32.mrf.mxu0
        %v2676 = vadd.f32 0.0, %v2675
        %v2677 = vpop.f32.mrf.mxu0
        %v2678 = vpop.f32.mrf.mxu0
        %v2679 = vadd.f32 0.0, %v2678
        %v2680 = vpop.f32.mrf.mxu0
        %2681 = vmatprep.mubr.bf16.mxu0 0
        %2682 = vmatmul.mubr.bf16.gmra.mxu0 %v2306
        %v2683 = vpop.f32.mrf.mxu0
        %v2684 = vadd.f32 0.0, %v2683
        %v2685 = vpop.f32.mrf.mxu0
        %v2686 = vpop.f32.mrf.mxu0
        %v2687 = vadd.f32 0.0, %v2686
        %v2688 = vpop.f32.mrf.mxu0
        %2689 = vmatprep.mubr.bf16.mxu0 0
        %2690 = vmatmul.mubr.bf16.gmra.mxu0 %v2307
        %v2691 = vpop.f32.mrf.mxu0
        %v2692 = vadd.f32 0.0, %v2691
        %v2693 = vpop.f32.mrf.mxu0
        %v2694 = vpop.f32.mrf.mxu0
        %v2695 = vadd.f32 0.0, %v2694
        %v2696 = vpop.f32.mrf.mxu0
        %2697 = vmatprep.mubr.bf16.mxu0 0
        %2698 = vmatmul.mubr.bf16.gmra.mxu0 %v2308
        %v2699 = vpop.f32.mrf.mxu0
        %v2700 = vadd.f32 0.0, %v2699
        %v2701 = vpop.f32.mrf.mxu0
        %v2702 = vpop.f32.mrf.mxu0
        %v2703 = vadd.f32 0.0, %v2702
        %v2704 = vpop.f32.mrf.mxu0
        %2705 = vmatprep.mubr.bf16.mxu0 0
        %2706 = vmatmul.mubr.bf16.gmra.mxu0 %v2309
        %v2707 = vpop.f32.mrf.mxu0
        %v2708 = vadd.f32 0.0, %v2707
        %v2709 = vpop.f32.mrf.mxu0
        %v2710 = vpop.f32.mrf.mxu0
        %v2711 = vadd.f32 0.0, %v2710
        %v2712 = vpop.f32.mrf.mxu0
        %2713 = vmatprep.mubr.bf16.mxu0 0
        %2714 = vmatmul.mubr.bf16.gmra.mxu0 %v2310
        %v2715 = vpop.f32.mrf.mxu0
        %v2716 = vadd.f32 0.0, %v2715
        %v2717 = vpop.f32.mrf.mxu0
        %v2718 = vpop.f32.mrf.mxu0
        %v2719 = vadd.f32 0.0, %v2718
        %v2720 = vpop.f32.mrf.mxu0
        %2721 = vmatprep.mubr.bf16.mxu0 0
        %2722 = vmatmul.mubr.bf16.gmra.mxu0 %v2311
        %v2723 = vpop.f32.mrf.mxu0
        %v2724 = vadd.f32 0.0, %v2723
        %v2725 = vpop.f32.mrf.mxu0
        %v2726 = vpop.f32.mrf.mxu0
        %v2727 = vadd.f32 0.0, %v2726
        %v2728 = vpop.f32.mrf.mxu0
        %2729 = vmatprep.mubr.bf16.mxu0 0
        %2730 = vmatmul.mubr.bf16.gmra.mxu0 %v2312
        %v2731 = vpop.f32.mrf.mxu0
        %v2732 = vadd.f32 0.0, %v2731
        %v2733 = vpop.f32.mrf.mxu0
        %v2734 = vpop.f32.mrf.mxu0
        %v2735 = vadd.f32 0.0, %v2734
        %v2736 = vpop.f32.mrf.mxu0
        %2737 = vmatprep.mubr.bf16.mxu0 0
        %2738 = vmatmul.mubr.bf16.gmra.mxu0 %v2313
        %v2739 = vpop.f32.mrf.mxu0
        %v2740 = vadd.f32 0.0, %v2739
        %v2741 = vpop.f32.mrf.mxu0
        %v2742 = vpop.f32.mrf.mxu0
        %v2743 = vadd.f32 0.0, %v2742
        %v2744 = vpop.f32.mrf.mxu0
        %2745 = vmatprep.mubr.bf16.mxu0 0
        %2746 = vmatmul.mubr.bf16.gmra.mxu0 %v2314
        %v2747 = vpop.f32.mrf.mxu0
        %v2748 = vadd.f32 0.0, %v2747
        %v2749 = vpop.f32.mrf.mxu0
        %v2750 = vpop.f32.mrf.mxu0
        %v2751 = vadd.f32 0.0, %v2750
        %v2752 = vpop.f32.mrf.mxu0
        %2753 = vmatprep.mubr.bf16.mxu0 0
        %2754 = vmatmul.mubr.bf16.gmra.mxu0 %v2315
        %v2755 = vpop.f32.mrf.mxu0
        %v2756 = vadd.f32 0.0, %v2755
        %v2757 = vpop.f32.mrf.mxu0
        %v2758 = vpop.f32.mrf.mxu0
        %v2759 = vadd.f32 0.0, %v2758
        %v2760 = vpop.f32.mrf.mxu0
        %2761 = vmatprep.mubr.bf16.mxu0 0
        %2762 = vmatmul.mubr.bf16.gmra.mxu0 %v2316
        %v2763 = vpop.f32.mrf.mxu0
        %v2764 = vadd.f32 0.0, %v2763
        %v2765 = vpop.f32.mrf.mxu0
        %v2766 = vpop.f32.mrf.mxu0
        %v2767 = vadd.f32 0.0, %v2766
        %v2768 = vpop.f32.mrf.mxu0
        %2769 = vmatprep.mubr.bf16.mxu0 0
        %2770 = vmatmul.mubr.bf16.gmra.mxu0 %v2317
        %v2771 = vpop.f32.mrf.mxu0
        %v2772 = vadd.f32 0.0, %v2771
        %v2773 = vpop.f32.mrf.mxu0
        %v2774 = vpop.f32.mrf.mxu0
        %v2775 = vadd.f32 0.0, %v2774
        %v2776 = vpop.f32.mrf.mxu0
        %2777 = vmatprep.mubr.bf16.mxu0 0
        %2778 = vmatmul.mubr.bf16.gmra.mxu0 %v2318
        %v2779 = vpop.f32.mrf.mxu0
        %v2780 = vadd.f32 0.0, %v2779
        %v2781 = vpop.f32.mrf.mxu0
        %v2782 = vpop.f32.mrf.mxu0
        %v2783 = vadd.f32 0.0, %v2782
        %v2784 = vpop.f32.mrf.mxu0
        %2785 = vmatprep.mubr.bf16.mxu0 0
        %2786 = vmatmul.mubr.bf16.gmra.mxu0 %v2319
        %v2787 = vpop.f32.mrf.mxu0
        %v2788 = vadd.f32 0.0, %v2787
        %v2789 = vpop.f32.mrf.mxu0
        %v2790 = vpop.f32.mrf.mxu0
        %v2791 = vadd.f32 0.0, %v2790
        %v2792 = vpop.f32.mrf.mxu0
        %2793 = vmatprep.mubr.bf16.mxu0 0
        %2794 = vmatmul.mubr.bf16.gmra.mxu0 %v2320
        %v2795 = vpop.f32.mrf.mxu0
        %v2796 = vadd.f32 0.0, %v2795
        %v2797 = vpop.f32.mrf.mxu0
        %v2798 = vpop.f32.mrf.mxu0
        %v2799 = vadd.f32 0.0, %v2798
        %v2800 = vpop.f32.mrf.mxu0
        %2801 = vmatprep.mubr.bf16.mxu0 0
        %2802 = vmatmul.mubr.bf16.gmra.mxu0 %v2321
        %v2803 = vpop.f32.mrf.mxu0
        %v2804 = vadd.f32 0.0, %v2803
        %v2805 = vpop.f32.mrf.mxu0
        %v2806 = vpop.f32.mrf.mxu0
        %v2807 = vadd.f32 0.0, %v2806
        %v2808 = vpop.f32.mrf.mxu0
        %2809 = vmatprep.mubr.bf16.mxu0 0
        %2810 = vmatmul.mubr.bf16.gmra.mxu0 %v2322
        %v2811 = vpop.f32.mrf.mxu0
        %v2812 = vadd.f32 0.0, %v2811
        %v2813 = vpop.f32.mrf.mxu0
        %v2814 = vpop.f32.mrf.mxu0
        %v2815 = vadd.f32 0.0, %v2814
        %v2816 = vpop.f32.mrf.mxu0
        %2817 = vmatprep.mubr.bf16.mxu0 0
        %2818 = vmatmul.mubr.bf16.gmra.mxu0 %v2323
        %v2819 = vpop.f32.mrf.mxu0
        %v2820 = vadd.f32 0.0, %v2819
        %v2821 = vpop.f32.mrf.mxu0
        %v2822 = vpop.f32.mrf.mxu0
        %v2823 = vadd.f32 0.0, %v2822
        %v2824 = vpop.f32.mrf.mxu0
        %2825 = vmatprep.mubr.bf16.mxu0 0
        %2826 = vmatmul.mubr.bf16.gmra.mxu0 %v2324
        %v2827 = vpop.f32.mrf.mxu0
        %v2828 = vadd.f32 0.0, %v2827
        %v2829 = vpop.f32.mrf.mxu0
        %v2830 = vpop.f32.mrf.mxu0
        %v2831 = vadd.f32 0.0, %v2830
        %v2832 = vpop.f32.mrf.mxu0
        %2833 = vmatprep.mubr.bf16.mxu0 0
        %2834 = vmatmul.mubr.bf16.gmra.mxu0 %v2325
        %v2835 = vpop.f32.mrf.mxu0
        %v2836 = vadd.f32 0.0, %v2835
        %v2837 = vpop.f32.mrf.mxu0
        %v2838 = vpop.f32.mrf.mxu0
        %v2839 = vadd.f32 0.0, %v2838
        %v2840 = vpop.f32.mrf.mxu0
        %2841 = vmatprep.mubr.bf16.mxu0 0
        %2842 = vmatmul.mubr.bf16.gmra.mxu0 %v2326
        %v2843 = vpop.f32.mrf.mxu0
        %v2844 = vadd.f32 0.0, %v2843
        %v2845 = vpop.f32.mrf.mxu0
        %v2846 = vpop.f32.mrf.mxu0
        %v2847 = vadd.f32 0.0, %v2846
        %v2848 = vpop.f32.mrf.mxu0
        %2849 = vmatprep.mubr.bf16.mxu0 0
        %2850 = vmatmul.mubr.bf16.gmra.mxu0 %v2327
        %v2851 = vpop.f32.mrf.mxu0
        %v2852 = vadd.f32 0.0, %v2851
        %v2853 = vpop.f32.mrf.mxu0
        %v2854 = vpop.f32.mrf.mxu0
        %v2855 = vadd.f32 0.0, %v2854
        %v2856 = vpop.f32.mrf.mxu0
        %2857 = vmatprep.mubr.bf16.mxu0 0
        %2858 = vmatmul.mubr.bf16.gmra.mxu0 %v2328
        %v2859 = vpop.f32.mrf.mxu0
        %v2860 = vadd.f32 0.0, %v2859
        %v2861 = vpop.f32.mrf.mxu0
        %v2862 = vpop.f32.mrf.mxu0
        %v2863 = vadd.f32 0.0, %v2862
        %v2864 = vpop.f32.mrf.mxu0
        %2865 = vmatprep.mubr.bf16.mxu0 0
        %2866 = vmatmul.mubr.bf16.gmra.mxu0 %v2329
        %v2867 = vpop.f32.mrf.mxu0
        %v2868 = vadd.f32 0.0, %v2867
        %v2869 = vpop.f32.mrf.mxu0
        %v2870 = vpop.f32.mrf.mxu0
        %v2871 = vadd.f32 0.0, %v2870
        %v2872 = vpop.f32.mrf.mxu0
        %2873 = vmatprep.mubr.bf16.mxu0 0
        %2874 = vmatmul.mubr.bf16.gmra.mxu0 %v2330
        %v2875 = vpop.f32.mrf.mxu0
        %v2876 = vadd.f32 0.0, %v2875
        %v2877 = vpop.f32.mrf.mxu0
        %v2878 = vpop.f32.mrf.mxu0
        %v2879 = vadd.f32 0.0, %v2878
        %v2880 = vpop.f32.mrf.mxu0
        %2881 = vmatprep.mubr.bf16.mxu0 0
        %2882 = vmatmul.mubr.bf16.gmra.mxu0 %v2331
        %v2883 = vpop.f32.mrf.mxu0
        %v2884 = vadd.f32 0.0, %v2883
        %v2885 = vpop.f32.mrf.mxu0
        %v2886 = vpop.f32.mrf.mxu0
        %v2887 = vadd.f32 0.0, %v2886
        %v2888 = vpop.f32.mrf.mxu0
        %2889 = vmatprep.mubr.bf16.mxu0 0
        %2890 = vmatmul.mubr.bf16.gmra.mxu0 %v2332
        %v2891 = vpop.f32.mrf.mxu0
        %v2892 = vadd.f32 0.0, %v2891
        %v2893 = vpop.f32.mrf.mxu0
        %v2894 = vpop.f32.mrf.mxu0
        %v2895 = vadd.f32 0.0, %v2894
        %v2896 = vpop.f32.mrf.mxu0
        %2897 = vmatprep.mubr.bf16.mxu0 0
        %2898 = vmatmul.mubr.bf16.gmra.mxu0 %v2333
        %v2899 = vpop.f32.mrf.mxu0
        %v2900 = vadd.f32 0.0, %v2899
        %v2901 = vpop.f32.mrf.mxu0
        %v2902 = vpop.f32.mrf.mxu0
        %v2903 = vadd.f32 0.0, %v2902
        %v2904 = vpop.f32.mrf.mxu0
        %2905 = vmatprep.mubr.bf16.mxu0 0
        %2906 = vmatmul.mubr.bf16.gmra.mxu0 %v2334
        %v2907 = vpop.f32.mrf.mxu0
        %v2908 = vadd.f32 0.0, %v2907
        %v2909 = vpop.f32.mrf.mxu0
        %v2910 = vpop.f32.mrf.mxu0
        %v2911 = vadd.f32 0.0, %v2910
        %v2912 = vpop.f32.mrf.mxu0
        %2913 = vmatprep.mubr.bf16.mxu0 0
        %2914 = vmatmul.mubr.bf16.gmra.mxu0 %v2335
        %v2915 = vpop.f32.mrf.mxu0
        %v2916 = vadd.f32 0.0, %v2915
        %v2917 = vpop.f32.mrf.mxu0
        %v2918 = vpop.f32.mrf.mxu0
        %v2919 = vadd.f32 0.0, %v2918
        %v2920 = vpop.f32.mrf.mxu0
        %2921 = vmatprep.mubr.bf16.mxu0 0
        %2922 = vmatmul.mubr.bf16.gmra.mxu0 %v2336
        %v2923 = vpop.f32.mrf.mxu0
        %v2924 = vadd.f32 0.0, %v2923
        %v2925 = vpop.f32.mrf.mxu0
        %v2926 = vpop.f32.mrf.mxu0
        %v2927 = vadd.f32 0.0, %v2926
        %v2928 = vpop.f32.mrf.mxu0
        %2929 = vdwg.mxu0
        %v2930 = vadd.f32 %v2129, %v2420
        %v2931 = vadd.f32 %v2130, %v2423
        %v2932 = vadd.f32 %v2131, %v2428
        %v2933 = vadd.f32 %v2132, %v2431
        %v2934 = vadd.f32 %v2133, %v2436
        %v2935 = vadd.f32 %v2134, %v2439
        %v2936 = vadd.f32 %v2135, %v2444
        %v2937 = vadd.f32 %v2136, %v2447
        %v2938 = vadd.f32 %v2137, %v2452
        %v2939 = vadd.f32 %v2138, %v2455
        %v2940 = vadd.f32 %v2139, %v2460
        %v2941 = vadd.f32 %v2140, %v2463
        %v2942 = vadd.f32 %v2141, %v2468
        %v2943 = vadd.f32 %v2142, %v2471
        %v2944 = vadd.f32 %v2143, %v2476
        %v2945 = vadd.f32 %v2144, %v2479
        %v2946 = vadd.f32 %v2145, %v2484
        %v2947 = vadd.f32 %v2146, %v2487
        %v2948 = vadd.f32 %v2147, %v2492
        %v2949 = vadd.f32 %v2148, %v2495
        %v2950 = vadd.f32 %v2149, %v2500
        %v2951 = vadd.f32 %v2150, %v2503
        %v2952 = vadd.f32 %v2151, %v2508
        %v2953 = vadd.f32 %v2152, %v2511
        %v2954 = vadd.f32 %v2153, %v2516
        %v2955 = vadd.f32 %v2154, %v2519
        %v2956 = vadd.f32 %v2155, %v2524
        %v2957 = vadd.f32 %v2156, %v2527
        %v2958 = vadd.f32 %v2157, %v2532
        %v2959 = vadd.f32 %v2158, %v2535
        %v2960 = vadd.f32 %v2159, %v2540
        %v2961 = vadd.f32 %v2160, %v2543
        %v2962 = vadd.f32 %v2161, %v2548
        %v2963 = vadd.f32 %v2162, %v2551
        %v2964 = vadd.f32 %v2163, %v2556
        %v2965 = vadd.f32 %v2164, %v2559
        %v2966 = vadd.f32 %v2165, %v2564
        %v2967 = vadd.f32 %v2166, %v2567
        %v2968 = vadd.f32 %v2167, %v2572
        %v2969 = vadd.f32 %v2168, %v2575
        %v2970 = vadd.f32 %v2169, %v2580
        %v2971 = vadd.f32 %v2170, %v2583
        %v2972 = vadd.f32 %v2171, %v2588
        %v2973 = vadd.f32 %v2172, %v2591
        %v2974 = vadd.f32 %v2173, %v2596
        %v2975 = vadd.f32 %v2174, %v2599
        %v2976 = vadd.f32 %v2175, %v2604
        %v2977 = vadd.f32 %v2176, %v2607
        %v2978 = vadd.f32 %v2177, %v2612
        %v2979 = vadd.f32 %v2178, %v2615
        %v2980 = vadd.f32 %v2179, %v2620
        %v2981 = vadd.f32 %v2180, %v2623
        %v2982 = vadd.f32 %v2181, %v2628
        %v2983 = vadd.f32 %v2182, %v2631
        %v2984 = vadd.f32 %v2183, %v2636
        %v2985 = vadd.f32 %v2184, %v2639
        %v2986 = vadd.f32 %v2185, %v2644
        %v2987 = vadd.f32 %v2186, %v2647
        %v2988 = vadd.f32 %v2187, %v2652
        %v2989 = vadd.f32 %v2188, %v2655
        %v2990 = vadd.f32 %v2189, %v2660
        %v2991 = vadd.f32 %v2190, %v2663
        %v2992 = vadd.f32 %v2191, %v2668
        %v2993 = vadd.f32 %v2192, %v2671
        %v2994 = vadd.f32 %v2193, %v2676
        %v2995 = vadd.f32 %v2194, %v2679
        %v2996 = vadd.f32 %v2195, %v2684
        %v2997 = vadd.f32 %v2196, %v2687
        %v2998 = vadd.f32 %v2197, %v2692
        %v2999 = vadd.f32 %v2198, %v2695
        %v3000 = vadd.f32 %v2199, %v2700
        %v3001 = vadd.f32 %v2200, %v2703
        %v3002 = vadd.f32 %v2201, %v2708
        %v3003 = vadd.f32 %v2202, %v2711
        %v3004 = vadd.f32 %v2203, %v2716
        %v3005 = vadd.f32 %v2204, %v2719
        %v3006 = vadd.f32 %v2205, %v2724
        %v3007 = vadd.f32 %v2206, %v2727
        %v3008 = vadd.f32 %v2207, %v2732
        %v3009 = vadd.f32 %v2208, %v2735
        %v3010 = vadd.f32 %v2209, %v2740
        %v3011 = vadd.f32 %v2210, %v2743
        %v3012 = vadd.f32 %v2211, %v2748
        %v3013 = vadd.f32 %v2212, %v2751
        %v3014 = vadd.f32 %v2213, %v2756
        %v3015 = vadd.f32 %v2214, %v2759
        %v3016 = vadd.f32 %v2215, %v2764
        %v3017 = vadd.f32 %v2216, %v2767
        %v3018 = vadd.f32 %v2217, %v2772
        %v3019 = vadd.f32 %v2218, %v2775
        %v3020 = vadd.f32 %v2219, %v2780
        %v3021 = vadd.f32 %v2220, %v2783
        %v3022 = vadd.f32 %v2221, %v2788
        %v3023 = vadd.f32 %v2222, %v2791
        %v3024 = vadd.f32 %v2223, %v2796
        %v3025 = vadd.f32 %v2224, %v2799
        %v3026 = vadd.f32 %v2225, %v2804
        %v3027 = vadd.f32 %v2226, %v2807
        %v3028 = vadd.f32 %v2227, %v2812
        %v3029 = vadd.f32 %v2228, %v2815
        %v3030 = vadd.f32 %v2229, %v2820
        %v3031 = vadd.f32 %v2230, %v2823
        %v3032 = vadd.f32 %v2231, %v2828
        %v3033 = vadd.f32 %v2232, %v2831
        %v3034 = vadd.f32 %v2233, %v2836
        %v3035 = vadd.f32 %v2234, %v2839
        %v3036 = vadd.f32 %v2235, %v2844
        %v3037 = vadd.f32 %v2236, %v2847
        %v3038 = vadd.f32 %v2237, %v2852
        %v3039 = vadd.f32 %v2238, %v2855
        %v3040 = vadd.f32 %v2239, %v2860
        %v3041 = vadd.f32 %v2240, %v2863
        %v3042 = vadd.f32 %v2241, %v2868
        %v3043 = vadd.f32 %v2242, %v2871
        %v3044 = vadd.f32 %v2243, %v2876
        %v3045 = vadd.f32 %v2244, %v2879
        %v3046 = vadd.f32 %v2245, %v2884
        %v3047 = vadd.f32 %v2246, %v2887
        %v3048 = vadd.f32 %v2247, %v2892
        %v3049 = vadd.f32 %v2248, %v2895
        %v3050 = vadd.f32 %v2249, %v2900
        %v3051 = vadd.f32 %v2250, %v2903
        %v3052 = vadd.f32 %v2251, %v2908
        %v3053 = vadd.f32 %v2252, %v2911
        %v3054 = vadd.f32 %v2253, %v2916
        %v3055 = vadd.f32 %v2254, %v2919
        %v3056 = vadd.f32 %v2255, %v2924
        %v3057 = vadd.f32 %v2256, %v2927
        %v3058 = vrot.slane %v2930, 4
        %v3059 = vmax.f32 %v2930, %v3058
        %v3060 = vrot.slane %v3059, 2
        %v3061 = vmax.f32 %v3059, %v3060
        %v3062 = vrot.slane %v3061, 1
        %v3063 = vmax.f32 %v3061, %v3062
        %v3064 = vrot.slane %v2931, 4
        %v3065 = vmax.f32 %v2931, %v3064
        %v3066 = vrot.slane %v3065, 2
        %v3067 = vmax.f32 %v3065, %v3066
        %v3068 = vrot.slane %v3067, 1
        %v3069 = vmax.f32 %v3067, %v3068
        %v3070 = vrot.slane %v2932, 4
        %v3071 = vmax.f32 %v2932, %v3070
        %v3072 = vrot.slane %v3071, 2
        %v3073 = vmax.f32 %v3071, %v3072
        %v3074 = vrot.slane %v3073, 1
        %v3075 = vmax.f32 %v3073, %v3074
        %v3076 = vrot.slane %v2933, 4
        %v3077 = vmax.f32 %v2933, %v3076
        %v3078 = vrot.slane %v3077, 2
        %v3079 = vmax.f32 %v3077, %v3078
        %v3080 = vrot.slane %v3079, 1
        %v3081 = vmax.f32 %v3079, %v3080
        %v3082 = vrot.slane %v2934, 4
        %v3083 = vmax.f32 %v2934, %v3082
        %v3084 = vrot.slane %v3083, 2
        %v3085 = vmax.f32 %v3083, %v3084
        %v3086 = vrot.slane %v3085, 1
        %v3087 = vmax.f32 %v3085, %v3086
        %v3088 = vrot.slane %v2935, 4
        %v3089 = vmax.f32 %v2935, %v3088
        %v3090 = vrot.slane %v3089, 2
        %v3091 = vmax.f32 %v3089, %v3090
        %v3092 = vrot.slane %v3091, 1
        %v3093 = vmax.f32 %v3091, %v3092
        %v3094 = vrot.slane %v2936, 4
        %v3095 = vmax.f32 %v2936, %v3094
        %v3096 = vrot.slane %v3095, 2
        %v3097 = vmax.f32 %v3095, %v3096
        %v3098 = vrot.slane %v3097, 1
        %v3099 = vmax.f32 %v3097, %v3098
        %v3100 = vrot.slane %v2937, 4
        %v3101 = vmax.f32 %v2937, %v3100
        %v3102 = vrot.slane %v3101, 2
        %v3103 = vmax.f32 %v3101, %v3102
        %v3104 = vrot.slane %v3103, 1
        %v3105 = vmax.f32 %v3103, %v3104
        %v3106 = vrot.slane %v2938, 4
        %v3107 = vmax.f32 %v2938, %v3106
        %v3108 = vrot.slane %v3107, 2
        %v3109 = vmax.f32 %v3107, %v3108
        %v3110 = vrot.slane %v3109, 1
        %v3111 = vmax.f32 %v3109, %v3110
        %v3112 = vrot.slane %v2939, 4
        %v3113 = vmax.f32 %v2939, %v3112
        %v3114 = vrot.slane %v3113, 2
        %v3115 = vmax.f32 %v3113, %v3114
        %v3116 = vrot.slane %v3115, 1
        %v3117 = vmax.f32 %v3115, %v3116
        %v3118 = vrot.slane %v2940, 4
        %v3119 = vmax.f32 %v2940, %v3118
        %v3120 = vrot.slane %v3119, 2
        %v3121 = vmax.f32 %v3119, %v3120
        %v3122 = vrot.slane %v3121, 1
        %v3123 = vmax.f32 %v3121, %v3122
        %v3124 = vrot.slane %v2941, 4
        %v3125 = vmax.f32 %v2941, %v3124
        %v3126 = vrot.slane %v3125, 2
        %v3127 = vmax.f32 %v3125, %v3126
        %v3128 = vrot.slane %v3127, 1
        %v3129 = vmax.f32 %v3127, %v3128
        %v3130 = vrot.slane %v2942, 4
        %v3131 = vmax.f32 %v2942, %v3130
        %v3132 = vrot.slane %v3131, 2
        %v3133 = vmax.f32 %v3131, %v3132
        %v3134 = vrot.slane %v3133, 1
        %v3135 = vmax.f32 %v3133, %v3134
        %v3136 = vrot.slane %v2943, 4
        %v3137 = vmax.f32 %v2943, %v3136
        %v3138 = vrot.slane %v3137, 2
        %v3139 = vmax.f32 %v3137, %v3138
        %v3140 = vrot.slane %v3139, 1
        %v3141 = vmax.f32 %v3139, %v3140
        %v3142 = vrot.slane %v2944, 4
        %v3143 = vmax.f32 %v2944, %v3142
        %v3144 = vrot.slane %v3143, 2
        %v3145 = vmax.f32 %v3143, %v3144
        %v3146 = vrot.slane %v3145, 1
        %v3147 = vmax.f32 %v3145, %v3146
        %v3148 = vrot.slane %v2945, 4
        %v3149 = vmax.f32 %v2945, %v3148
        %v3150 = vrot.slane %v3149, 2
        %v3151 = vmax.f32 %v3149, %v3150
        %v3152 = vrot.slane %v3151, 1
        %v3153 = vmax.f32 %v3151, %v3152
        %v3154 = vrot.slane %v2946, 4
        %v3155 = vmax.f32 %v2946, %v3154
        %v3156 = vrot.slane %v3155, 2
        %v3157 = vmax.f32 %v3155, %v3156
        %v3158 = vrot.slane %v3157, 1
        %v3159 = vmax.f32 %v3157, %v3158
        %v3160 = vrot.slane %v2947, 4
        %v3161 = vmax.f32 %v2947, %v3160
        %v3162 = vrot.slane %v3161, 2
        %v3163 = vmax.f32 %v3161, %v3162
        %v3164 = vrot.slane %v3163, 1
        %v3165 = vmax.f32 %v3163, %v3164
        %v3166 = vrot.slane %v2948, 4
        %v3167 = vmax.f32 %v2948, %v3166
        %v3168 = vrot.slane %v3167, 2
        %v3169 = vmax.f32 %v3167, %v3168
        %v3170 = vrot.slane %v3169, 1
        %v3171 = vmax.f32 %v3169, %v3170
        %v3172 = vrot.slane %v2949, 4
        %v3173 = vmax.f32 %v2949, %v3172
        %v3174 = vrot.slane %v3173, 2
        %v3175 = vmax.f32 %v3173, %v3174
        %v3176 = vrot.slane %v3175, 1
        %v3177 = vmax.f32 %v3175, %v3176
        %v3178 = vrot.slane %v2950, 4
        %v3179 = vmax.f32 %v2950, %v3178
        %v3180 = vrot.slane %v3179, 2
        %v3181 = vmax.f32 %v3179, %v3180
        %v3182 = vrot.slane %v3181, 1
        %v3183 = vmax.f32 %v3181, %v3182
        %v3184 = vrot.slane %v2951, 4
        %v3185 = vmax.f32 %v2951, %v3184
        %v3186 = vrot.slane %v3185, 2
        %v3187 = vmax.f32 %v3185, %v3186
        %v3188 = vrot.slane %v3187, 1
        %v3189 = vmax.f32 %v3187, %v3188
        %v3190 = vrot.slane %v2952, 4
        %v3191 = vmax.f32 %v2952, %v3190
        %v3192 = vrot.slane %v3191, 2
        %v3193 = vmax.f32 %v3191, %v3192
        %v3194 = vrot.slane %v3193, 1
        %v3195 = vmax.f32 %v3193, %v3194
        %v3196 = vrot.slane %v2953, 4
        %v3197 = vmax.f32 %v2953, %v3196
        %v3198 = vrot.slane %v3197, 2
        %v3199 = vmax.f32 %v3197, %v3198
        %v3200 = vrot.slane %v3199, 1
        %v3201 = vmax.f32 %v3199, %v3200
        %v3202 = vrot.slane %v2954, 4
        %v3203 = vmax.f32 %v2954, %v3202
        %v3204 = vrot.slane %v3203, 2
        %v3205 = vmax.f32 %v3203, %v3204
        %v3206 = vrot.slane %v3205, 1
        %v3207 = vmax.f32 %v3205, %v3206
        %v3208 = vrot.slane %v2955, 4
        %v3209 = vmax.f32 %v2955, %v3208
        %v3210 = vrot.slane %v3209, 2
        %v3211 = vmax.f32 %v3209, %v3210
        %v3212 = vrot.slane %v3211, 1
        %v3213 = vmax.f32 %v3211, %v3212
        %v3214 = vrot.slane %v2956, 4
        %v3215 = vmax.f32 %v2956, %v3214
        %v3216 = vrot.slane %v3215, 2
        %v3217 = vmax.f32 %v3215, %v3216
        %v3218 = vrot.slane %v3217, 1
        %v3219 = vmax.f32 %v3217, %v3218
        %v3220 = vrot.slane %v2957, 4
        %v3221 = vmax.f32 %v2957, %v3220
        %v3222 = vrot.slane %v3221, 2
        %v3223 = vmax.f32 %v3221, %v3222
        %v3224 = vrot.slane %v3223, 1
        %v3225 = vmax.f32 %v3223, %v3224
        %v3226 = vrot.slane %v2958, 4
        %v3227 = vmax.f32 %v2958, %v3226
        %v3228 = vrot.slane %v3227, 2
        %v3229 = vmax.f32 %v3227, %v3228
        %v3230 = vrot.slane %v3229, 1
        %v3231 = vmax.f32 %v3229, %v3230
        %v3232 = vrot.slane %v2959, 4
        %v3233 = vmax.f32 %v2959, %v3232
        %v3234 = vrot.slane %v3233, 2
        %v3235 = vmax.f32 %v3233, %v3234
        %v3236 = vrot.slane %v3235, 1
        %v3237 = vmax.f32 %v3235, %v3236
        %v3238 = vrot.slane %v2960, 4
        %v3239 = vmax.f32 %v2960, %v3238
        %v3240 = vrot.slane %v3239, 2
        %v3241 = vmax.f32 %v3239, %v3240
        %v3242 = vrot.slane %v3241, 1
        %v3243 = vmax.f32 %v3241, %v3242
        %v3244 = vrot.slane %v2961, 4
        %v3245 = vmax.f32 %v2961, %v3244
        %v3246 = vrot.slane %v3245, 2
        %v3247 = vmax.f32 %v3245, %v3246
        %v3248 = vrot.slane %v3247, 1
        %v3249 = vmax.f32 %v3247, %v3248
        %v3250 = vrot.slane %v2962, 4
        %v3251 = vmax.f32 %v2962, %v3250
        %v3252 = vrot.slane %v3251, 2
        %v3253 = vmax.f32 %v3251, %v3252
        %v3254 = vrot.slane %v3253, 1
        %v3255 = vmax.f32 %v3253, %v3254
        %v3256 = vrot.slane %v2963, 4
        %v3257 = vmax.f32 %v2963, %v3256
        %v3258 = vrot.slane %v3257, 2
        %v3259 = vmax.f32 %v3257, %v3258
        %v3260 = vrot.slane %v3259, 1
        %v3261 = vmax.f32 %v3259, %v3260
        %v3262 = vrot.slane %v2964, 4
        %v3263 = vmax.f32 %v2964, %v3262
        %v3264 = vrot.slane %v3263, 2
        %v3265 = vmax.f32 %v3263, %v3264
        %v3266 = vrot.slane %v3265, 1
        %v3267 = vmax.f32 %v3265, %v3266
        %v3268 = vrot.slane %v2965, 4
        %v3269 = vmax.f32 %v2965, %v3268
        %v3270 = vrot.slane %v3269, 2
        %v3271 = vmax.f32 %v3269, %v3270
        %v3272 = vrot.slane %v3271, 1
        %v3273 = vmax.f32 %v3271, %v3272
        %v3274 = vrot.slane %v2966, 4
        %v3275 = vmax.f32 %v2966, %v3274
        %v3276 = vrot.slane %v3275, 2
        %v3277 = vmax.f32 %v3275, %v3276
        %v3278 = vrot.slane %v3277, 1
        %v3279 = vmax.f32 %v3277, %v3278
        %v3280 = vrot.slane %v2967, 4
        %v3281 = vmax.f32 %v2967, %v3280
        %v3282 = vrot.slane %v3281, 2
        %v3283 = vmax.f32 %v3281, %v3282
        %v3284 = vrot.slane %v3283, 1
        %v3285 = vmax.f32 %v3283, %v3284
        %v3286 = vrot.slane %v2968, 4
        %v3287 = vmax.f32 %v2968, %v3286
        %v3288 = vrot.slane %v3287, 2
        %v3289 = vmax.f32 %v3287, %v3288
        %v3290 = vrot.slane %v3289, 1
        %v3291 = vmax.f32 %v3289, %v3290
        %v3292 = vrot.slane %v2969, 4
        %v3293 = vmax.f32 %v2969, %v3292
        %v3294 = vrot.slane %v3293, 2
        %v3295 = vmax.f32 %v3293, %v3294
        %v3296 = vrot.slane %v3295, 1
        %v3297 = vmax.f32 %v3295, %v3296
        %v3298 = vrot.slane %v2970, 4
        %v3299 = vmax.f32 %v2970, %v3298
        %v3300 = vrot.slane %v3299, 2
        %v3301 = vmax.f32 %v3299, %v3300
        %v3302 = vrot.slane %v3301, 1
        %v3303 = vmax.f32 %v3301, %v3302
        %v3304 = vrot.slane %v2971, 4
        %v3305 = vmax.f32 %v2971, %v3304
        %v3306 = vrot.slane %v3305, 2
        %v3307 = vmax.f32 %v3305, %v3306
        %v3308 = vrot.slane %v3307, 1
        %v3309 = vmax.f32 %v3307, %v3308
        %v3310 = vrot.slane %v2972, 4
        %v3311 = vmax.f32 %v2972, %v3310
        %v3312 = vrot.slane %v3311, 2
        %v3313 = vmax.f32 %v3311, %v3312
        %v3314 = vrot.slane %v3313, 1
        %v3315 = vmax.f32 %v3313, %v3314
        %v3316 = vrot.slane %v2973, 4
        %v3317 = vmax.f32 %v2973, %v3316
        %v3318 = vrot.slane %v3317, 2
        %v3319 = vmax.f32 %v3317, %v3318
        %v3320 = vrot.slane %v3319, 1
        %v3321 = vmax.f32 %v3319, %v3320
        %v3322 = vrot.slane %v2974, 4
        %v3323 = vmax.f32 %v2974, %v3322
        %v3324 = vrot.slane %v3323, 2
        %v3325 = vmax.f32 %v3323, %v3324
        %v3326 = vrot.slane %v3325, 1
        %v3327 = vmax.f32 %v3325, %v3326
        %v3328 = vrot.slane %v2975, 4
        %v3329 = vmax.f32 %v2975, %v3328
        %v3330 = vrot.slane %v3329, 2
        %v3331 = vmax.f32 %v3329, %v3330
        %v3332 = vrot.slane %v3331, 1
        %v3333 = vmax.f32 %v3331, %v3332
        %v3334 = vrot.slane %v2976, 4
        %v3335 = vmax.f32 %v2976, %v3334
        %v3336 = vrot.slane %v3335, 2
        %v3337 = vmax.f32 %v3335, %v3336
        %v3338 = vrot.slane %v3337, 1
        %v3339 = vmax.f32 %v3337, %v3338
        %v3340 = vrot.slane %v2977, 4
        %v3341 = vmax.f32 %v2977, %v3340
        %v3342 = vrot.slane %v3341, 2
        %v3343 = vmax.f32 %v3341, %v3342
        %v3344 = vrot.slane %v3343, 1
        %v3345 = vmax.f32 %v3343, %v3344
        %v3346 = vrot.slane %v2978, 4
        %v3347 = vmax.f32 %v2978, %v3346
        %v3348 = vrot.slane %v3347, 2
        %v3349 = vmax.f32 %v3347, %v3348
        %v3350 = vrot.slane %v3349, 1
        %v3351 = vmax.f32 %v3349, %v3350
        %v3352 = vrot.slane %v2979, 4
        %v3353 = vmax.f32 %v2979, %v3352
        %v3354 = vrot.slane %v3353, 2
        %v3355 = vmax.f32 %v3353, %v3354
        %v3356 = vrot.slane %v3355, 1
        %v3357 = vmax.f32 %v3355, %v3356
        %v3358 = vrot.slane %v2980, 4
        %v3359 = vmax.f32 %v2980, %v3358
        %v3360 = vrot.slane %v3359, 2
        %v3361 = vmax.f32 %v3359, %v3360
        %v3362 = vrot.slane %v3361, 1
        %v3363 = vmax.f32 %v3361, %v3362
        %v3364 = vrot.slane %v2981, 4
        %v3365 = vmax.f32 %v2981, %v3364
        %v3366 = vrot.slane %v3365, 2
        %v3367 = vmax.f32 %v3365, %v3366
        %v3368 = vrot.slane %v3367, 1
        %v3369 = vmax.f32 %v3367, %v3368
        %v3370 = vrot.slane %v2982, 4
        %v3371 = vmax.f32 %v2982, %v3370
        %v3372 = vrot.slane %v3371, 2
        %v3373 = vmax.f32 %v3371, %v3372
        %v3374 = vrot.slane %v3373, 1
        %v3375 = vmax.f32 %v3373, %v3374
        %v3376 = vrot.slane %v2983, 4
        %v3377 = vmax.f32 %v2983, %v3376
        %v3378 = vrot.slane %v3377, 2
        %v3379 = vmax.f32 %v3377, %v3378
        %v3380 = vrot.slane %v3379, 1
        %v3381 = vmax.f32 %v3379, %v3380
        %v3382 = vrot.slane %v2984, 4
        %v3383 = vmax.f32 %v2984, %v3382
        %v3384 = vrot.slane %v3383, 2
        %v3385 = vmax.f32 %v3383, %v3384
        %v3386 = vrot.slane %v3385, 1
        %v3387 = vmax.f32 %v3385, %v3386
        %v3388 = vrot.slane %v2985, 4
        %v3389 = vmax.f32 %v2985, %v3388
        %v3390 = vrot.slane %v3389, 2
        %v3391 = vmax.f32 %v3389, %v3390
        %v3392 = vrot.slane %v3391, 1
        %v3393 = vmax.f32 %v3391, %v3392
        %v3394 = vrot.slane %v2986, 4
        %v3395 = vmax.f32 %v2986, %v3394
        %v3396 = vrot.slane %v3395, 2
        %v3397 = vmax.f32 %v3395, %v3396
        %v3398 = vrot.slane %v3397, 1
        %v3399 = vmax.f32 %v3397, %v3398
        %v3400 = vrot.slane %v2987, 4
        %v3401 = vmax.f32 %v2987, %v3400
        %v3402 = vrot.slane %v3401, 2
        %v3403 = vmax.f32 %v3401, %v3402
        %v3404 = vrot.slane %v3403, 1
        %v3405 = vmax.f32 %v3403, %v3404
        %v3406 = vrot.slane %v2988, 4
        %v3407 = vmax.f32 %v2988, %v3406
        %v3408 = vrot.slane %v3407, 2
        %v3409 = vmax.f32 %v3407, %v3408
        %v3410 = vrot.slane %v3409, 1
        %v3411 = vmax.f32 %v3409, %v3410
        %v3412 = vrot.slane %v2989, 4
        %v3413 = vmax.f32 %v2989, %v3412
        %v3414 = vrot.slane %v3413, 2
        %v3415 = vmax.f32 %v3413, %v3414
        %v3416 = vrot.slane %v3415, 1
        %v3417 = vmax.f32 %v3415, %v3416
        %v3418 = vrot.slane %v2990, 4
        %v3419 = vmax.f32 %v2990, %v3418
        %v3420 = vrot.slane %v3419, 2
        %v3421 = vmax.f32 %v3419, %v3420
        %v3422 = vrot.slane %v3421, 1
        %v3423 = vmax.f32 %v3421, %v3422
        %v3424 = vrot.slane %v2991, 4
        %v3425 = vmax.f32 %v2991, %v3424
        %v3426 = vrot.slane %v3425, 2
        %v3427 = vmax.f32 %v3425, %v3426
        %v3428 = vrot.slane %v3427, 1
        %v3429 = vmax.f32 %v3427, %v3428
        %v3430 = vrot.slane %v2992, 4
        %v3431 = vmax.f32 %v2992, %v3430
        %v3432 = vrot.slane %v3431, 2
        %v3433 = vmax.f32 %v3431, %v3432
        %v3434 = vrot.slane %v3433, 1
        %v3435 = vmax.f32 %v3433, %v3434
        %v3436 = vrot.slane %v2993, 4
        %v3437 = vmax.f32 %v2993, %v3436
        %v3438 = vrot.slane %v3437, 2
        %v3439 = vmax.f32 %v3437, %v3438
        %v3440 = vrot.slane %v3439, 1
        %v3441 = vmax.f32 %v3439, %v3440
        %v3442 = vrot.slane %v2994, 4
        %v3443 = vmax.f32 %v2994, %v3442
        %v3444 = vrot.slane %v3443, 2
        %v3445 = vmax.f32 %v3443, %v3444
        %v3446 = vrot.slane %v3445, 1
        %v3447 = vmax.f32 %v3445, %v3446
        %v3448 = vrot.slane %v2995, 4
        %v3449 = vmax.f32 %v2995, %v3448
        %v3450 = vrot.slane %v3449, 2
        %v3451 = vmax.f32 %v3449, %v3450
        %v3452 = vrot.slane %v3451, 1
        %v3453 = vmax.f32 %v3451, %v3452
        %v3454 = vrot.slane %v2996, 4
        %v3455 = vmax.f32 %v2996, %v3454
        %v3456 = vrot.slane %v3455, 2
        %v3457 = vmax.f32 %v3455, %v3456
        %v3458 = vrot.slane %v3457, 1
        %v3459 = vmax.f32 %v3457, %v3458
        %v3460 = vrot.slane %v2997, 4
        %v3461 = vmax.f32 %v2997, %v3460
        %v3462 = vrot.slane %v3461, 2
        %v3463 = vmax.f32 %v3461, %v3462
        %v3464 = vrot.slane %v3463, 1
        %v3465 = vmax.f32 %v3463, %v3464
        %v3466 = vrot.slane %v2998, 4
        %v3467 = vmax.f32 %v2998, %v3466
        %v3468 = vrot.slane %v3467, 2
        %v3469 = vmax.f32 %v3467, %v3468
        %v3470 = vrot.slane %v3469, 1
        %v3471 = vmax.f32 %v3469, %v3470
        %v3472 = vrot.slane %v2999, 4
        %v3473 = vmax.f32 %v2999, %v3472
        %v3474 = vrot.slane %v3473, 2
        %v3475 = vmax.f32 %v3473, %v3474
        %v3476 = vrot.slane %v3475, 1
        %v3477 = vmax.f32 %v3475, %v3476
        %v3478 = vrot.slane %v3000, 4
        %v3479 = vmax.f32 %v3000, %v3478
        %v3480 = vrot.slane %v3479, 2
        %v3481 = vmax.f32 %v3479, %v3480
        %v3482 = vrot.slane %v3481, 1
        %v3483 = vmax.f32 %v3481, %v3482
        %v3484 = vrot.slane %v3001, 4
        %v3485 = vmax.f32 %v3001, %v3484
        %v3486 = vrot.slane %v3485, 2
        %v3487 = vmax.f32 %v3485, %v3486
        %v3488 = vrot.slane %v3487, 1
        %v3489 = vmax.f32 %v3487, %v3488
        %v3490 = vrot.slane %v3002, 4
        %v3491 = vmax.f32 %v3002, %v3490
        %v3492 = vrot.slane %v3491, 2
        %v3493 = vmax.f32 %v3491, %v3492
        %v3494 = vrot.slane %v3493, 1
        %v3495 = vmax.f32 %v3493, %v3494
        %v3496 = vrot.slane %v3003, 4
        %v3497 = vmax.f32 %v3003, %v3496
        %v3498 = vrot.slane %v3497, 2
        %v3499 = vmax.f32 %v3497, %v3498
        %v3500 = vrot.slane %v3499, 1
        %v3501 = vmax.f32 %v3499, %v3500
        %v3502 = vrot.slane %v3004, 4
        %v3503 = vmax.f32 %v3004, %v3502
        %v3504 = vrot.slane %v3503, 2
        %v3505 = vmax.f32 %v3503, %v3504
        %v3506 = vrot.slane %v3505, 1
        %v3507 = vmax.f32 %v3505, %v3506
        %v3508 = vrot.slane %v3005, 4
        %v3509 = vmax.f32 %v3005, %v3508
        %v3510 = vrot.slane %v3509, 2
        %v3511 = vmax.f32 %v3509, %v3510
        %v3512 = vrot.slane %v3511, 1
        %v3513 = vmax.f32 %v3511, %v3512
        %v3514 = vrot.slane %v3006, 4
        %v3515 = vmax.f32 %v3006, %v3514
        %v3516 = vrot.slane %v3515, 2
        %v3517 = vmax.f32 %v3515, %v3516
        %v3518 = vrot.slane %v3517, 1
        %v3519 = vmax.f32 %v3517, %v3518
        %v3520 = vrot.slane %v3007, 4
        %v3521 = vmax.f32 %v3007, %v3520
        %v3522 = vrot.slane %v3521, 2
        %v3523 = vmax.f32 %v3521, %v3522
        %v3524 = vrot.slane %v3523, 1
        %v3525 = vmax.f32 %v3523, %v3524
        %v3526 = vrot.slane %v3008, 4
        %v3527 = vmax.f32 %v3008, %v3526
        %v3528 = vrot.slane %v3527, 2
        %v3529 = vmax.f32 %v3527, %v3528
        %v3530 = vrot.slane %v3529, 1
        %v3531 = vmax.f32 %v3529, %v3530
        %v3532 = vrot.slane %v3009, 4
        %v3533 = vmax.f32 %v3009, %v3532
        %v3534 = vrot.slane %v3533, 2
        %v3535 = vmax.f32 %v3533, %v3534
        %v3536 = vrot.slane %v3535, 1
        %v3537 = vmax.f32 %v3535, %v3536
        %v3538 = vrot.slane %v3010, 4
        %v3539 = vmax.f32 %v3010, %v3538
        %v3540 = vrot.slane %v3539, 2
        %v3541 = vmax.f32 %v3539, %v3540
        %v3542 = vrot.slane %v3541, 1
        %v3543 = vmax.f32 %v3541, %v3542
        %v3544 = vrot.slane %v3011, 4
        %v3545 = vmax.f32 %v3011, %v3544
        %v3546 = vrot.slane %v3545, 2
        %v3547 = vmax.f32 %v3545, %v3546
        %v3548 = vrot.slane %v3547, 1
        %v3549 = vmax.f32 %v3547, %v3548
        %v3550 = vrot.slane %v3012, 4
        %v3551 = vmax.f32 %v3012, %v3550
        %v3552 = vrot.slane %v3551, 2
        %v3553 = vmax.f32 %v3551, %v3552
        %v3554 = vrot.slane %v3553, 1
        %v3555 = vmax.f32 %v3553, %v3554
        %v3556 = vrot.slane %v3013, 4
        %v3557 = vmax.f32 %v3013, %v3556
        %v3558 = vrot.slane %v3557, 2
        %v3559 = vmax.f32 %v3557, %v3558
        %v3560 = vrot.slane %v3559, 1
        %v3561 = vmax.f32 %v3559, %v3560
        %v3562 = vrot.slane %v3014, 4
        %v3563 = vmax.f32 %v3014, %v3562
        %v3564 = vrot.slane %v3563, 2
        %v3565 = vmax.f32 %v3563, %v3564
        %v3566 = vrot.slane %v3565, 1
        %v3567 = vmax.f32 %v3565, %v3566
        %v3568 = vrot.slane %v3015, 4
        %v3569 = vmax.f32 %v3015, %v3568
        %v3570 = vrot.slane %v3569, 2
        %v3571 = vmax.f32 %v3569, %v3570
        %v3572 = vrot.slane %v3571, 1
        %v3573 = vmax.f32 %v3571, %v3572
        %v3574 = vrot.slane %v3016, 4
        %v3575 = vmax.f32 %v3016, %v3574
        %v3576 = vrot.slane %v3575, 2
        %v3577 = vmax.f32 %v3575, %v3576
        %v3578 = vrot.slane %v3577, 1
        %v3579 = vmax.f32 %v3577, %v3578
        %v3580 = vrot.slane %v3017, 4
        %v3581 = vmax.f32 %v3017, %v3580
        %v3582 = vrot.slane %v3581, 2
        %v3583 = vmax.f32 %v3581, %v3582
        %v3584 = vrot.slane %v3583, 1
        %v3585 = vmax.f32 %v3583, %v3584
        %v3586 = vrot.slane %v3018, 4
        %v3587 = vmax.f32 %v3018, %v3586
        %v3588 = vrot.slane %v3587, 2
        %v3589 = vmax.f32 %v3587, %v3588
        %v3590 = vrot.slane %v3589, 1
        %v3591 = vmax.f32 %v3589, %v3590
        %v3592 = vrot.slane %v3019, 4
        %v3593 = vmax.f32 %v3019, %v3592
        %v3594 = vrot.slane %v3593, 2
        %v3595 = vmax.f32 %v3593, %v3594
        %v3596 = vrot.slane %v3595, 1
        %v3597 = vmax.f32 %v3595, %v3596
        %v3598 = vrot.slane %v3020, 4
        %v3599 = vmax.f32 %v3020, %v3598
        %v3600 = vrot.slane %v3599, 2
        %v3601 = vmax.f32 %v3599, %v3600
        %v3602 = vrot.slane %v3601, 1
        %v3603 = vmax.f32 %v3601, %v3602
        %v3604 = vrot.slane %v3021, 4
        %v3605 = vmax.f32 %v3021, %v3604
        %v3606 = vrot.slane %v3605, 2
        %v3607 = vmax.f32 %v3605, %v3606
        %v3608 = vrot.slane %v3607, 1
        %v3609 = vmax.f32 %v3607, %v3608
        %v3610 = vrot.slane %v3022, 4
        %v3611 = vmax.f32 %v3022, %v3610
        %v3612 = vrot.slane %v3611, 2
        %v3613 = vmax.f32 %v3611, %v3612
        %v3614 = vrot.slane %v3613, 1
        %v3615 = vmax.f32 %v3613, %v3614
        %v3616 = vrot.slane %v3023, 4
        %v3617 = vmax.f32 %v3023, %v3616
        %v3618 = vrot.slane %v3617, 2
        %v3619 = vmax.f32 %v3617, %v3618
        %v3620 = vrot.slane %v3619, 1
        %v3621 = vmax.f32 %v3619, %v3620
        %v3622 = vrot.slane %v3024, 4
        %v3623 = vmax.f32 %v3024, %v3622
        %v3624 = vrot.slane %v3623, 2
        %v3625 = vmax.f32 %v3623, %v3624
        %v3626 = vrot.slane %v3625, 1
        %v3627 = vmax.f32 %v3625, %v3626
        %v3628 = vrot.slane %v3025, 4
        %v3629 = vmax.f32 %v3025, %v3628
        %v3630 = vrot.slane %v3629, 2
        %v3631 = vmax.f32 %v3629, %v3630
        %v3632 = vrot.slane %v3631, 1
        %v3633 = vmax.f32 %v3631, %v3632
        %v3634 = vrot.slane %v3026, 4
        %v3635 = vmax.f32 %v3026, %v3634
        %v3636 = vrot.slane %v3635, 2
        %v3637 = vmax.f32 %v3635, %v3636
        %v3638 = vrot.slane %v3637, 1
        %v3639 = vmax.f32 %v3637, %v3638
        %v3640 = vrot.slane %v3027, 4
        %v3641 = vmax.f32 %v3027, %v3640
        %v3642 = vrot.slane %v3641, 2
        %v3643 = vmax.f32 %v3641, %v3642
        %v3644 = vrot.slane %v3643, 1
        %v3645 = vmax.f32 %v3643, %v3644
        %v3646 = vrot.slane %v3028, 4
        %v3647 = vmax.f32 %v3028, %v3646
        %v3648 = vrot.slane %v3647, 2
        %v3649 = vmax.f32 %v3647, %v3648
        %v3650 = vrot.slane %v3649, 1
        %v3651 = vmax.f32 %v3649, %v3650
        %v3652 = vrot.slane %v3029, 4
        %v3653 = vmax.f32 %v3029, %v3652
        %v3654 = vrot.slane %v3653, 2
        %v3655 = vmax.f32 %v3653, %v3654
        %v3656 = vrot.slane %v3655, 1
        %v3657 = vmax.f32 %v3655, %v3656
        %v3658 = vrot.slane %v3030, 4
        %v3659 = vmax.f32 %v3030, %v3658
        %v3660 = vrot.slane %v3659, 2
        %v3661 = vmax.f32 %v3659, %v3660
        %v3662 = vrot.slane %v3661, 1
        %v3663 = vmax.f32 %v3661, %v3662
        %v3664 = vrot.slane %v3031, 4
        %v3665 = vmax.f32 %v3031, %v3664
        %v3666 = vrot.slane %v3665, 2
        %v3667 = vmax.f32 %v3665, %v3666
        %v3668 = vrot.slane %v3667, 1
        %v3669 = vmax.f32 %v3667, %v3668
        %v3670 = vrot.slane %v3032, 4
        %v3671 = vmax.f32 %v3032, %v3670
        %v3672 = vrot.slane %v3671, 2
        %v3673 = vmax.f32 %v3671, %v3672
        %v3674 = vrot.slane %v3673, 1
        %v3675 = vmax.f32 %v3673, %v3674
        %v3676 = vrot.slane %v3033, 4
        %v3677 = vmax.f32 %v3033, %v3676
        %v3678 = vrot.slane %v3677, 2
        %v3679 = vmax.f32 %v3677, %v3678
        %v3680 = vrot.slane %v3679, 1
        %v3681 = vmax.f32 %v3679, %v3680
        %v3682 = vrot.slane %v3034, 4
        %v3683 = vmax.f32 %v3034, %v3682
        %v3684 = vrot.slane %v3683, 2
        %v3685 = vmax.f32 %v3683, %v3684
        %v3686 = vrot.slane %v3685, 1
        %v3687 = vmax.f32 %v3685, %v3686
        %v3688 = vrot.slane %v3035, 4
        %v3689 = vmax.f32 %v3035, %v3688
        %v3690 = vrot.slane %v3689, 2
        %v3691 = vmax.f32 %v3689, %v3690
        %v3692 = vrot.slane %v3691, 1
        %v3693 = vmax.f32 %v3691, %v3692
        %v3694 = vrot.slane %v3036, 4
        %v3695 = vmax.f32 %v3036, %v3694
        %v3696 = vrot.slane %v3695, 2
        %v3697 = vmax.f32 %v3695, %v3696
        %v3698 = vrot.slane %v3697, 1
        %v3699 = vmax.f32 %v3697, %v3698
        %v3700 = vrot.slane %v3037, 4
        %v3701 = vmax.f32 %v3037, %v3700
        %v3702 = vrot.slane %v3701, 2
        %v3703 = vmax.f32 %v3701, %v3702
        %v3704 = vrot.slane %v3703, 1
        %v3705 = vmax.f32 %v3703, %v3704
        %v3706 = vrot.slane %v3038, 4
        %v3707 = vmax.f32 %v3038, %v3706
        %v3708 = vrot.slane %v3707, 2
        %v3709 = vmax.f32 %v3707, %v3708
        %v3710 = vrot.slane %v3709, 1
        %v3711 = vmax.f32 %v3709, %v3710
        %v3712 = vrot.slane %v3039, 4
        %v3713 = vmax.f32 %v3039, %v3712
        %v3714 = vrot.slane %v3713, 2
        %v3715 = vmax.f32 %v3713, %v3714
        %v3716 = vrot.slane %v3715, 1
        %v3717 = vmax.f32 %v3715, %v3716
        %v3718 = vrot.slane %v3040, 4
        %v3719 = vmax.f32 %v3040, %v3718
        %v3720 = vrot.slane %v3719, 2
        %v3721 = vmax.f32 %v3719, %v3720
        %v3722 = vrot.slane %v3721, 1
        %v3723 = vmax.f32 %v3721, %v3722
        %v3724 = vrot.slane %v3041, 4
        %v3725 = vmax.f32 %v3041, %v3724
        %v3726 = vrot.slane %v3725, 2
        %v3727 = vmax.f32 %v3725, %v3726
        %v3728 = vrot.slane %v3727, 1
        %v3729 = vmax.f32 %v3727, %v3728
        %v3730 = vrot.slane %v3042, 4
        %v3731 = vmax.f32 %v3042, %v3730
        %v3732 = vrot.slane %v3731, 2
        %v3733 = vmax.f32 %v3731, %v3732
        %v3734 = vrot.slane %v3733, 1
        %v3735 = vmax.f32 %v3733, %v3734
        %v3736 = vrot.slane %v3043, 4
        %v3737 = vmax.f32 %v3043, %v3736
        %v3738 = vrot.slane %v3737, 2
        %v3739 = vmax.f32 %v3737, %v3738
        %v3740 = vrot.slane %v3739, 1
        %v3741 = vmax.f32 %v3739, %v3740
        %v3742 = vrot.slane %v3044, 4
        %v3743 = vmax.f32 %v3044, %v3742
        %v3744 = vrot.slane %v3743, 2
        %v3745 = vmax.f32 %v3743, %v3744
        %v3746 = vrot.slane %v3745, 1
        %v3747 = vmax.f32 %v3745, %v3746
        %v3748 = vrot.slane %v3045, 4
        %v3749 = vmax.f32 %v3045, %v3748
        %v3750 = vrot.slane %v3749, 2
        %v3751 = vmax.f32 %v3749, %v3750
        %v3752 = vrot.slane %v3751, 1
        %v3753 = vmax.f32 %v3751, %v3752
        %v3754 = vrot.slane %v3046, 4
        %v3755 = vmax.f32 %v3046, %v3754
        %v3756 = vrot.slane %v3755, 2
        %v3757 = vmax.f32 %v3755, %v3756
        %v3758 = vrot.slane %v3757, 1
        %v3759 = vmax.f32 %v3757, %v3758
        %v3760 = vrot.slane %v3047, 4
        %v3761 = vmax.f32 %v3047, %v3760
        %v3762 = vrot.slane %v3761, 2
        %v3763 = vmax.f32 %v3761, %v3762
        %v3764 = vrot.slane %v3763, 1
        %v3765 = vmax.f32 %v3763, %v3764
        %v3766 = vrot.slane %v3048, 4
        %v3767 = vmax.f32 %v3048, %v3766
        %v3768 = vrot.slane %v3767, 2
        %v3769 = vmax.f32 %v3767, %v3768
        %v3770 = vrot.slane %v3769, 1
        %v3771 = vmax.f32 %v3769, %v3770
        %v3772 = vrot.slane %v3049, 4
        %v3773 = vmax.f32 %v3049, %v3772
        %v3774 = vrot.slane %v3773, 2
        %v3775 = vmax.f32 %v3773, %v3774
        %v3776 = vrot.slane %v3775, 1
        %v3777 = vmax.f32 %v3775, %v3776
        %v3778 = vrot.slane %v3050, 4
        %v3779 = vmax.f32 %v3050, %v3778
        %v3780 = vrot.slane %v3779, 2
        %v3781 = vmax.f32 %v3779, %v3780
        %v3782 = vrot.slane %v3781, 1
        %v3783 = vmax.f32 %v3781, %v3782
        %v3784 = vrot.slane %v3051, 4
        %v3785 = vmax.f32 %v3051, %v3784
        %v3786 = vrot.slane %v3785, 2
        %v3787 = vmax.f32 %v3785, %v3786
        %v3788 = vrot.slane %v3787, 1
        %v3789 = vmax.f32 %v3787, %v3788
        %v3790 = vrot.slane %v3052, 4
        %v3791 = vmax.f32 %v3052, %v3790
        %v3792 = vrot.slane %v3791, 2
        %v3793 = vmax.f32 %v3791, %v3792
        %v3794 = vrot.slane %v3793, 1
        %v3795 = vmax.f32 %v3793, %v3794
        %v3796 = vrot.slane %v3053, 4
        %v3797 = vmax.f32 %v3053, %v3796
        %v3798 = vrot.slane %v3797, 2
        %v3799 = vmax.f32 %v3797, %v3798
        %v3800 = vrot.slane %v3799, 1
        %v3801 = vmax.f32 %v3799, %v3800
        %v3802 = vrot.slane %v3054, 4
        %v3803 = vmax.f32 %v3054, %v3802
        %v3804 = vrot.slane %v3803, 2
        %v3805 = vmax.f32 %v3803, %v3804
        %v3806 = vrot.slane %v3805, 1
        %v3807 = vmax.f32 %v3805, %v3806
        %v3808 = vrot.slane %v3055, 4
        %v3809 = vmax.f32 %v3055, %v3808
        %v3810 = vrot.slane %v3809, 2
        %v3811 = vmax.f32 %v3809, %v3810
        %v3812 = vrot.slane %v3811, 1
        %v3813 = vmax.f32 %v3811, %v3812
        %v3814 = vrot.slane %v3056, 4
        %v3815 = vmax.f32 %v3056, %v3814
        %v3816 = vrot.slane %v3815, 2
        %v3817 = vmax.f32 %v3815, %v3816
        %v3818 = vrot.slane %v3817, 1
        %v3819 = vmax.f32 %v3817, %v3818
        %v3820 = vrot.slane %v3057, 4
        %v3821 = vmax.f32 %v3057, %v3820
        %v3822 = vrot.slane %v3821, 2
        %v3823 = vmax.f32 %v3821, %v3822
        %v3824 = vrot.slane %v3823, 1
        %v3825 = vmax.f32 %v3823, %v3824
        %v3826 = vsub.f32 %v2930, %v3063
        %v3827 = vsub.f32 %v2931, %v3069
        %v3828 = vsub.f32 %v2932, %v3075
        %v3829 = vsub.f32 %v2933, %v3081
        %v3830 = vsub.f32 %v2934, %v3087
        %v3831 = vsub.f32 %v2935, %v3093
        %v3832 = vsub.f32 %v2936, %v3099
        %v3833 = vsub.f32 %v2937, %v3105
        %v3834 = vsub.f32 %v2938, %v3111
        %v3835 = vsub.f32 %v2939, %v3117
        %v3836 = vsub.f32 %v2940, %v3123
        %v3837 = vsub.f32 %v2941, %v3129
        %v3838 = vsub.f32 %v2942, %v3135
        %v3839 = vsub.f32 %v2943, %v3141
        %v3840 = vsub.f32 %v2944, %v3147
        %v3841 = vsub.f32 %v2945, %v3153
        %v3842 = vsub.f32 %v2946, %v3159
        %v3843 = vsub.f32 %v2947, %v3165
        %v3844 = vsub.f32 %v2948, %v3171
        %v3845 = vsub.f32 %v2949, %v3177
        %v3846 = vsub.f32 %v2950, %v3183
        %v3847 = vsub.f32 %v2951, %v3189
        %v3848 = vsub.f32 %v2952, %v3195
        %v3849 = vsub.f32 %v2953, %v3201
        %v3850 = vsub.f32 %v2954, %v3207
        %v3851 = vsub.f32 %v2955, %v3213
        %v3852 = vsub.f32 %v2956, %v3219
        %v3853 = vsub.f32 %v2957, %v3225
        %v3854 = vsub.f32 %v2958, %v3231
        %v3855 = vsub.f32 %v2959, %v3237
        %v3856 = vsub.f32 %v2960, %v3243
        %v3857 = vsub.f32 %v2961, %v3249
        %v3858 = vsub.f32 %v2962, %v3255
        %v3859 = vsub.f32 %v2963, %v3261
        %v3860 = vsub.f32 %v2964, %v3267
        %v3861 = vsub.f32 %v2965, %v3273
        %v3862 = vsub.f32 %v2966, %v3279
        %v3863 = vsub.f32 %v2967, %v3285
        %v3864 = vsub.f32 %v2968, %v3291
        %v3865 = vsub.f32 %v2969, %v3297
        %v3866 = vsub.f32 %v2970, %v3303
        %v3867 = vsub.f32 %v2971, %v3309
        %v3868 = vsub.f32 %v2972, %v3315
        %v3869 = vsub.f32 %v2973, %v3321
        %v3870 = vsub.f32 %v2974, %v3327
        %v3871 = vsub.f32 %v2975, %v3333
        %v3872 = vsub.f32 %v2976, %v3339
        %v3873 = vsub.f32 %v2977, %v3345
        %v3874 = vsub.f32 %v2978, %v3351
        %v3875 = vsub.f32 %v2979, %v3357
        %v3876 = vsub.f32 %v2980, %v3363
        %v3877 = vsub.f32 %v2981, %v3369
        %v3878 = vsub.f32 %v2982, %v3375
        %v3879 = vsub.f32 %v2983, %v3381
        %v3880 = vsub.f32 %v2984, %v3387
        %v3881 = vsub.f32 %v2985, %v3393
        %v3882 = vsub.f32 %v2986, %v3399
        %v3883 = vsub.f32 %v2987, %v3405
        %v3884 = vsub.f32 %v2988, %v3411
        %v3885 = vsub.f32 %v2989, %v3417
        %v3886 = vsub.f32 %v2990, %v3423
        %v3887 = vsub.f32 %v2991, %v3429
        %v3888 = vsub.f32 %v2992, %v3435
        %v3889 = vsub.f32 %v2993, %v3441
        %v3890 = vsub.f32 %v2994, %v3447
        %v3891 = vsub.f32 %v2995, %v3453
        %v3892 = vsub.f32 %v2996, %v3459
        %v3893 = vsub.f32 %v2997, %v3465
        %v3894 = vsub.f32 %v2998, %v3471
        %v3895 = vsub.f32 %v2999, %v3477
        %v3896 = vsub.f32 %v3000, %v3483
        %v3897 = vsub.f32 %v3001, %v3489
        %v3898 = vsub.f32 %v3002, %v3495
        %v3899 = vsub.f32 %v3003, %v3501
        %v3900 = vsub.f32 %v3004, %v3507
        %v3901 = vsub.f32 %v3005, %v3513
        %v3902 = vsub.f32 %v3006, %v3519
        %v3903 = vsub.f32 %v3007, %v3525
        %v3904 = vsub.f32 %v3008, %v3531
        %v3905 = vsub.f32 %v3009, %v3537
        %v3906 = vsub.f32 %v3010, %v3543
        %v3907 = vsub.f32 %v3011, %v3549
        %v3908 = vsub.f32 %v3012, %v3555
        %v3909 = vsub.f32 %v3013, %v3561
        %v3910 = vsub.f32 %v3014, %v3567
        %v3911 = vsub.f32 %v3015, %v3573
        %v3912 = vsub.f32 %v3016, %v3579
        %v3913 = vsub.f32 %v3017, %v3585
        %v3914 = vsub.f32 %v3018, %v3591
        %v3915 = vsub.f32 %v3019, %v3597
        %v3916 = vsub.f32 %v3020, %v3603
        %v3917 = vsub.f32 %v3021, %v3609
        %v3918 = vsub.f32 %v3022, %v3615
        %v3919 = vsub.f32 %v3023, %v3621
        %v3920 = vsub.f32 %v3024, %v3627
        %v3921 = vsub.f32 %v3025, %v3633
        %v3922 = vsub.f32 %v3026, %v3639
        %v3923 = vsub.f32 %v3027, %v3645
        %v3924 = vsub.f32 %v3028, %v3651
        %v3925 = vsub.f32 %v3029, %v3657
        %v3926 = vsub.f32 %v3030, %v3663
        %v3927 = vsub.f32 %v3031, %v3669
        %v3928 = vsub.f32 %v3032, %v3675
        %v3929 = vsub.f32 %v3033, %v3681
        %v3930 = vsub.f32 %v3034, %v3687
        %v3931 = vsub.f32 %v3035, %v3693
        %v3932 = vsub.f32 %v3036, %v3699
        %v3933 = vsub.f32 %v3037, %v3705
        %v3934 = vsub.f32 %v3038, %v3711
        %v3935 = vsub.f32 %v3039, %v3717
        %v3936 = vsub.f32 %v3040, %v3723
        %v3937 = vsub.f32 %v3041, %v3729
        %v3938 = vsub.f32 %v3042, %v3735
        %v3939 = vsub.f32 %v3043, %v3741
        %v3940 = vsub.f32 %v3044, %v3747
        %v3941 = vsub.f32 %v3045, %v3753
        %v3942 = vsub.f32 %v3046, %v3759
        %v3943 = vsub.f32 %v3047, %v3765
        %v3944 = vsub.f32 %v3048, %v3771
        %v3945 = vsub.f32 %v3049, %v3777
        %v3946 = vsub.f32 %v3050, %v3783
        %v3947 = vsub.f32 %v3051, %v3789
        %v3948 = vsub.f32 %v3052, %v3795
        %v3949 = vsub.f32 %v3053, %v3801
        %v3950 = vsub.f32 %v3054, %v3807
        %v3951 = vsub.f32 %v3055, %v3813
        %v3952 = vsub.f32 %v3056, %v3819
        %v3953 = vsub.f32 %v3057, %v3825
        %v3954 = vmul.f32 %v3826, 1.442695
        %v3955 = vpow.pop %v3954
        %v3956 = vmul.f32 %v3827, 1.442695
        %v3957 = vpow.pop %v3956
        %v3958 = vmul.f32 %v3828, 1.442695
        %v3959 = vpow.pop %v3958
        %v3960 = vmul.f32 %v3829, 1.442695
        %v3961 = vpow.pop %v3960
        %v3962 = vmul.f32 %v3830, 1.442695
        %v3963 = vpow.pop %v3962
        %v3964 = vmul.f32 %v3831, 1.442695
        %v3965 = vpow.pop %v3964
        %v3966 = vmul.f32 %v3832, 1.442695
        %v3967 = vpow.pop %v3966
        %v3968 = vmul.f32 %v3833, 1.442695
        %v3969 = vpow.pop %v3968
        %v3970 = vmul.f32 %v3834, 1.442695
        %v3971 = vpow.pop %v3970
        %v3972 = vmul.f32 %v3835, 1.442695
        %v3973 = vpow.pop %v3972
        %v3974 = vmul.f32 %v3836, 1.442695
        %v3975 = vpow.pop %v3974
        %v3976 = vmul.f32 %v3837, 1.442695
        %v3977 = vpow.pop %v3976
        %v3978 = vmul.f32 %v3838, 1.442695
        %v3979 = vpow.pop %v3978
        %v3980 = vmul.f32 %v3839, 1.442695
        %v3981 = vpow.pop %v3980
        %v3982 = vmul.f32 %v3840, 1.442695
        %v3983 = vpow.pop %v3982
        %v3984 = vmul.f32 %v3841, 1.442695
        %v3985 = vpow.pop %v3984
        %v3986 = vmul.f32 %v3842, 1.442695
        %v3987 = vpow.pop %v3986
        %v3988 = vmul.f32 %v3843, 1.442695
        %v3989 = vpow.pop %v3988
        %v3990 = vmul.f32 %v3844, 1.442695
        %v3991 = vpow.pop %v3990
        %v3992 = vmul.f32 %v3845, 1.442695
        %v3993 = vpow.pop %v3992
        %v3994 = vmul.f32 %v3846, 1.442695
        %v3995 = vpow.pop %v3994
        %v3996 = vmul.f32 %v3847, 1.442695
        %v3997 = vpow.pop %v3996
        %v3998 = vmul.f32 %v3848, 1.442695
        %v3999 = vpow.pop %v3998
        %v4000 = vmul.f32 %v3849, 1.442695
        %v4001 = vpow.pop %v4000
        %v4002 = vmul.f32 %v3850, 1.442695
        %v4003 = vpow.pop %v4002
        %v4004 = vmul.f32 %v3851, 1.442695
        %v4005 = vpow.pop %v4004
        %v4006 = vmul.f32 %v3852, 1.442695
        %v4007 = vpow.pop %v4006
        %v4008 = vmul.f32 %v3853, 1.442695
        %v4009 = vpow.pop %v4008
        %v4010 = vmul.f32 %v3854, 1.442695
        %v4011 = vpow.pop %v4010
        %v4012 = vmul.f32 %v3855, 1.442695
        %v4013 = vpow.pop %v4012
        %v4014 = vmul.f32 %v3856, 1.442695
        %v4015 = vpow.pop %v4014
        %v4016 = vmul.f32 %v3857, 1.442695
        %v4017 = vpow.pop %v4016
        %v4018 = vmul.f32 %v3858, 1.442695
        %v4019 = vpow.pop %v4018
        %v4020 = vmul.f32 %v3859, 1.442695
        %v4021 = vpow.pop %v4020
        %v4022 = vmul.f32 %v3860, 1.442695
        %v4023 = vpow.pop %v4022
        %v4024 = vmul.f32 %v3861, 1.442695
        %v4025 = vpow.pop %v4024
        %v4026 = vmul.f32 %v3862, 1.442695
        %v4027 = vpow.pop %v4026
        %v4028 = vmul.f32 %v3863, 1.442695
        %v4029 = vpow.pop %v4028
        %v4030 = vmul.f32 %v3864, 1.442695
        %v4031 = vpow.pop %v4030
        %v4032 = vmul.f32 %v3865, 1.442695
        %v4033 = vpow.pop %v4032
        %v4034 = vmul.f32 %v3866, 1.442695
        %v4035 = vpow.pop %v4034
        %v4036 = vmul.f32 %v3867, 1.442695
        %v4037 = vpow.pop %v4036
        %v4038 = vmul.f32 %v3868, 1.442695
        %v4039 = vpow.pop %v4038
        %v4040 = vmul.f32 %v3869, 1.442695
        %v4041 = vpow.pop %v4040
        %v4042 = vmul.f32 %v3870, 1.442695
        %v4043 = vpow.pop %v4042
        %v4044 = vmul.f32 %v3871, 1.442695
        %v4045 = vpow.pop %v4044
        %v4046 = vmul.f32 %v3872, 1.442695
        %v4047 = vpow.pop %v4046
        %v4048 = vmul.f32 %v3873, 1.442695
        %v4049 = vpow.pop %v4048
        %v4050 = vmul.f32 %v3874, 1.442695
        %v4051 = vpow.pop %v4050
        %v4052 = vmul.f32 %v3875, 1.442695
        %v4053 = vpow.pop %v4052
        %v4054 = vmul.f32 %v3876, 1.442695
        %v4055 = vpow.pop %v4054
        %v4056 = vmul.f32 %v3877, 1.442695
        %v4057 = vpow.pop %v4056
        %v4058 = vmul.f32 %v3878, 1.442695
        %v4059 = vpow.pop %v4058
        %v4060 = vmul.f32 %v3879, 1.442695
        %v4061 = vpow.pop %v4060
        %v4062 = vmul.f32 %v3880, 1.442695
        %v4063 = vpow.pop %v4062
        %v4064 = vmul.f32 %v3881, 1.442695
        %v4065 = vpow.pop %v4064
        %v4066 = vmul.f32 %v3882, 1.442695
        %v4067 = vpow.pop %v4066
        %v4068 = vmul.f32 %v3883, 1.442695
        %v4069 = vpow.pop %v4068
        %v4070 = vmul.f32 %v3884, 1.442695
        %v4071 = vpow.pop %v4070
        %v4072 = vmul.f32 %v3885, 1.442695
        %v4073 = vpow.pop %v4072
        %v4074 = vmul.f32 %v3886, 1.442695
        %v4075 = vpow.pop %v4074
        %v4076 = vmul.f32 %v3887, 1.442695
        %v4077 = vpow.pop %v4076
        %v4078 = vmul.f32 %v3888, 1.442695
        %v4079 = vpow.pop %v4078
        %v4080 = vmul.f32 %v3889, 1.442695
        %v4081 = vpow.pop %v4080
        %v4082 = vmul.f32 %v3890, 1.442695
        %v4083 = vpow.pop %v4082
        %v4084 = vmul.f32 %v3891, 1.442695
        %v4085 = vpow.pop %v4084
        %v4086 = vmul.f32 %v3892, 1.442695
        %v4087 = vpow.pop %v4086
        %v4088 = vmul.f32 %v3893, 1.442695
        %v4089 = vpow.pop %v4088
        %v4090 = vmul.f32 %v3894, 1.442695
        %v4091 = vpow.pop %v4090
        %v4092 = vmul.f32 %v3895, 1.442695
        %v4093 = vpow.pop %v4092
        %v4094 = vmul.f32 %v3896, 1.442695
        %v4095 = vpow.pop %v4094
        %v4096 = vmul.f32 %v3897, 1.442695
        %v4097 = vpow.pop %v4096
        %v4098 = vmul.f32 %v3898, 1.442695
        %v4099 = vpow.pop %v4098
        %v4100 = vmul.f32 %v3899, 1.442695
        %v4101 = vpow.pop %v4100
        %v4102 = vmul.f32 %v3900, 1.442695
        %v4103 = vpow.pop %v4102
        %v4104 = vmul.f32 %v3901, 1.442695
        %v4105 = vpow.pop %v4104
        %v4106 = vmul.f32 %v3902, 1.442695
        %v4107 = vpow.pop %v4106
        %v4108 = vmul.f32 %v3903, 1.442695
        %v4109 = vpow.pop %v4108
        %v4110 = vmul.f32 %v3904, 1.442695
        %v4111 = vpow.pop %v4110
        %v4112 = vmul.f32 %v3905, 1.442695
        %v4113 = vpow.pop %v4112
        %v4114 = vmul.f32 %v3906, 1.442695
        %v4115 = vpow.pop %v4114
        %v4116 = vmul.f32 %v3907, 1.442695
        %v4117 = vpow.pop %v4116
        %v4118 = vmul.f32 %v3908, 1.442695
        %v4119 = vpow.pop %v4118
        %v4120 = vmul.f32 %v3909, 1.442695
        %v4121 = vpow.pop %v4120
        %v4122 = vmul.f32 %v3910, 1.442695
        %v4123 = vpow.pop %v4122
        %v4124 = vmul.f32 %v3911, 1.442695
        %v4125 = vpow.pop %v4124
        %v4126 = vmul.f32 %v3912, 1.442695
        %v4127 = vpow.pop %v4126
        %v4128 = vmul.f32 %v3913, 1.442695
        %v4129 = vpow.pop %v4128
        %v4130 = vmul.f32 %v3914, 1.442695
        %v4131 = vpow.pop %v4130
        %v4132 = vmul.f32 %v3915, 1.442695
        %v4133 = vpow.pop %v4132
        %v4134 = vmul.f32 %v3916, 1.442695
        %v4135 = vpow.pop %v4134
        %v4136 = vmul.f32 %v3917, 1.442695
        %v4137 = vpow.pop %v4136
        %v4138 = vmul.f32 %v3918, 1.442695
        %v4139 = vpow.pop %v4138
        %v4140 = vmul.f32 %v3919, 1.442695
        %v4141 = vpow.pop %v4140
        %v4142 = vmul.f32 %v3920, 1.442695
        %v4143 = vpow.pop %v4142
        %v4144 = vmul.f32 %v3921, 1.442695
        %v4145 = vpow.pop %v4144
        %v4146 = vmul.f32 %v3922, 1.442695
        %v4147 = vpow.pop %v4146
        %v4148 = vmul.f32 %v3923, 1.442695
        %v4149 = vpow.pop %v4148
        %v4150 = vmul.f32 %v3924, 1.442695
        %v4151 = vpow.pop %v4150
        %v4152 = vmul.f32 %v3925, 1.442695
        %v4153 = vpow.pop %v4152
        %v4154 = vmul.f32 %v3926, 1.442695
        %v4155 = vpow.pop %v4154
        %v4156 = vmul.f32 %v3927, 1.442695
        %v4157 = vpow.pop %v4156
        %v4158 = vmul.f32 %v3928, 1.442695
        %v4159 = vpow.pop %v4158
        %v4160 = vmul.f32 %v3929, 1.442695
        %v4161 = vpow.pop %v4160
        %v4162 = vmul.f32 %v3930, 1.442695
        %v4163 = vpow.pop %v4162
        %v4164 = vmul.f32 %v3931, 1.442695
        %v4165 = vpow.pop %v4164
        %v4166 = vmul.f32 %v3932, 1.442695
        %v4167 = vpow.pop %v4166
        %v4168 = vmul.f32 %v3933, 1.442695
        %v4169 = vpow.pop %v4168
        %v4170 = vmul.f32 %v3934, 1.442695
        %v4171 = vpow.pop %v4170
        %v4172 = vmul.f32 %v3935, 1.442695
        %v4173 = vpow.pop %v4172
        %v4174 = vmul.f32 %v3936, 1.442695
        %v4175 = vpow.pop %v4174
        %v4176 = vmul.f32 %v3937, 1.442695
        %v4177 = vpow.pop %v4176
        %v4178 = vmul.f32 %v3938, 1.442695
        %v4179 = vpow.pop %v4178
        %v4180 = vmul.f32 %v3939, 1.442695
        %v4181 = vpow.pop %v4180
        %v4182 = vmul.f32 %v3940, 1.442695
        %v4183 = vpow.pop %v4182
        %v4184 = vmul.f32 %v3941, 1.442695
        %v4185 = vpow.pop %v4184
        %v4186 = vmul.f32 %v3942, 1.442695
        %v4187 = vpow.pop %v4186
        %v4188 = vmul.f32 %v3943, 1.442695
        %v4189 = vpow.pop %v4188
        %v4190 = vmul.f32 %v3944, 1.442695
        %v4191 = vpow.pop %v4190
        %v4192 = vmul.f32 %v3945, 1.442695
        %v4193 = vpow.pop %v4192
        %v4194 = vmul.f32 %v3946, 1.442695
        %v4195 = vpow.pop %v4194
        %v4196 = vmul.f32 %v3947, 1.442695
        %v4197 = vpow.pop %v4196
        %v4198 = vmul.f32 %v3948, 1.442695
        %v4199 = vpow.pop %v4198
        %v4200 = vmul.f32 %v3949, 1.442695
        %v4201 = vpow.pop %v4200
        %v4202 = vmul.f32 %v3950, 1.442695
        %v4203 = vpow.pop %v4202
        %v4204 = vmul.f32 %v3951, 1.442695
        %v4205 = vpow.pop %v4204
        %v4206 = vmul.f32 %v3952, 1.442695
        %v4207 = vpow.pop %v4206
        %v4208 = vmul.f32 %v3953, 1.442695
        %v4209 = vpow.pop %v4208
        %v4210 = vrot.slane %v3955, 4
        %v4211 = vadd.f32 %v3955, %v4210
        %v4212 = vrot.slane %v4211, 2
        %v4213 = vadd.f32 %v4211, %v4212
        %v4214 = vrot.slane %v4213, 1
        %v4215 = vadd.f32 %v4213, %v4214
        %v4216 = vrot.slane %v3957, 4
        %v4217 = vadd.f32 %v3957, %v4216
        %v4218 = vrot.slane %v4217, 2
        %v4219 = vadd.f32 %v4217, %v4218
        %v4220 = vrot.slane %v4219, 1
        %v4221 = vadd.f32 %v4219, %v4220
        %v4222 = vrot.slane %v3959, 4
        %v4223 = vadd.f32 %v3959, %v4222
        %v4224 = vrot.slane %v4223, 2
        %v4225 = vadd.f32 %v4223, %v4224
        %v4226 = vrot.slane %v4225, 1
        %v4227 = vadd.f32 %v4225, %v4226
        %v4228 = vrot.slane %v3961, 4
        %v4229 = vadd.f32 %v3961, %v4228
        %v4230 = vrot.slane %v4229, 2
        %v4231 = vadd.f32 %v4229, %v4230
        %v4232 = vrot.slane %v4231, 1
        %v4233 = vadd.f32 %v4231, %v4232
        %v4234 = vrot.slane %v3963, 4
        %v4235 = vadd.f32 %v3963, %v4234
        %v4236 = vrot.slane %v4235, 2
        %v4237 = vadd.f32 %v4235, %v4236
        %v4238 = vrot.slane %v4237, 1
        %v4239 = vadd.f32 %v4237, %v4238
        %v4240 = vrot.slane %v3965, 4
        %v4241 = vadd.f32 %v3965, %v4240
        %v4242 = vrot.slane %v4241, 2
        %v4243 = vadd.f32 %v4241, %v4242
        %v4244 = vrot.slane %v4243, 1
        %v4245 = vadd.f32 %v4243, %v4244
        %v4246 = vrot.slane %v3967, 4
        %v4247 = vadd.f32 %v3967, %v4246
        %v4248 = vrot.slane %v4247, 2
        %v4249 = vadd.f32 %v4247, %v4248
        %v4250 = vrot.slane %v4249, 1
        %v4251 = vadd.f32 %v4249, %v4250
        %v4252 = vrot.slane %v3969, 4
        %v4253 = vadd.f32 %v3969, %v4252
        %v4254 = vrot.slane %v4253, 2
        %v4255 = vadd.f32 %v4253, %v4254
        %v4256 = vrot.slane %v4255, 1
        %v4257 = vadd.f32 %v4255, %v4256
        %v4258 = vrot.slane %v3971, 4
        %v4259 = vadd.f32 %v3971, %v4258
        %v4260 = vrot.slane %v4259, 2
        %v4261 = vadd.f32 %v4259, %v4260
        %v4262 = vrot.slane %v4261, 1
        %v4263 = vadd.f32 %v4261, %v4262
        %v4264 = vrot.slane %v3973, 4
        %v4265 = vadd.f32 %v3973, %v4264
        %v4266 = vrot.slane %v4265, 2
        %v4267 = vadd.f32 %v4265, %v4266
        %v4268 = vrot.slane %v4267, 1
        %v4269 = vadd.f32 %v4267, %v4268
        %v4270 = vrot.slane %v3975, 4
        %v4271 = vadd.f32 %v3975, %v4270
        %v4272 = vrot.slane %v4271, 2
        %v4273 = vadd.f32 %v4271, %v4272
        %v4274 = vrot.slane %v4273, 1
        %v4275 = vadd.f32 %v4273, %v4274
        %v4276 = vrot.slane %v3977, 4
        %v4277 = vadd.f32 %v3977, %v4276
        %v4278 = vrot.slane %v4277, 2
        %v4279 = vadd.f32 %v4277, %v4278
        %v4280 = vrot.slane %v4279, 1
        %v4281 = vadd.f32 %v4279, %v4280
        %v4282 = vrot.slane %v3979, 4
        %v4283 = vadd.f32 %v3979, %v4282
        %v4284 = vrot.slane %v4283, 2
        %v4285 = vadd.f32 %v4283, %v4284
        %v4286 = vrot.slane %v4285, 1
        %v4287 = vadd.f32 %v4285, %v4286
        %v4288 = vrot.slane %v3981, 4
        %v4289 = vadd.f32 %v3981, %v4288
        %v4290 = vrot.slane %v4289, 2
        %v4291 = vadd.f32 %v4289, %v4290
        %v4292 = vrot.slane %v4291, 1
        %v4293 = vadd.f32 %v4291, %v4292
        %v4294 = vrot.slane %v3983, 4
        %v4295 = vadd.f32 %v3983, %v4294
        %v4296 = vrot.slane %v4295, 2
        %v4297 = vadd.f32 %v4295, %v4296
        %v4298 = vrot.slane %v4297, 1
        %v4299 = vadd.f32 %v4297, %v4298
        %v4300 = vrot.slane %v3985, 4
        %v4301 = vadd.f32 %v3985, %v4300
        %v4302 = vrot.slane %v4301, 2
        %v4303 = vadd.f32 %v4301, %v4302
        %v4304 = vrot.slane %v4303, 1
        %v4305 = vadd.f32 %v4303, %v4304
        %v4306 = vrot.slane %v3987, 4
        %v4307 = vadd.f32 %v3987, %v4306
        %v4308 = vrot.slane %v4307, 2
        %v4309 = vadd.f32 %v4307, %v4308
        %v4310 = vrot.slane %v4309, 1
        %v4311 = vadd.f32 %v4309, %v4310
        %v4312 = vrot.slane %v3989, 4
        %v4313 = vadd.f32 %v3989, %v4312
        %v4314 = vrot.slane %v4313, 2
        %v4315 = vadd.f32 %v4313, %v4314
        %v4316 = vrot.slane %v4315, 1
        %v4317 = vadd.f32 %v4315, %v4316
        %v4318 = vrot.slane %v3991, 4
        %v4319 = vadd.f32 %v3991, %v4318
        %v4320 = vrot.slane %v4319, 2
        %v4321 = vadd.f32 %v4319, %v4320
        %v4322 = vrot.slane %v4321, 1
        %v4323 = vadd.f32 %v4321, %v4322
        %v4324 = vrot.slane %v3993, 4
        %v4325 = vadd.f32 %v3993, %v4324
        %v4326 = vrot.slane %v4325, 2
        %v4327 = vadd.f32 %v4325, %v4326
        %v4328 = vrot.slane %v4327, 1
        %v4329 = vadd.f32 %v4327, %v4328
        %v4330 = vrot.slane %v3995, 4
        %v4331 = vadd.f32 %v3995, %v4330
        %v4332 = vrot.slane %v4331, 2
        %v4333 = vadd.f32 %v4331, %v4332
        %v4334 = vrot.slane %v4333, 1
        %v4335 = vadd.f32 %v4333, %v4334
        %v4336 = vrot.slane %v3997, 4
        %v4337 = vadd.f32 %v3997, %v4336
        %v4338 = vrot.slane %v4337, 2
        %v4339 = vadd.f32 %v4337, %v4338
        %v4340 = vrot.slane %v4339, 1
        %v4341 = vadd.f32 %v4339, %v4340
        %v4342 = vrot.slane %v3999, 4
        %v4343 = vadd.f32 %v3999, %v4342
        %v4344 = vrot.slane %v4343, 2
        %v4345 = vadd.f32 %v4343, %v4344
        %v4346 = vrot.slane %v4345, 1
        %v4347 = vadd.f32 %v4345, %v4346
        %v4348 = vrot.slane %v4001, 4
        %v4349 = vadd.f32 %v4001, %v4348
        %v4350 = vrot.slane %v4349, 2
        %v4351 = vadd.f32 %v4349, %v4350
        %v4352 = vrot.slane %v4351, 1
        %v4353 = vadd.f32 %v4351, %v4352
        %v4354 = vrot.slane %v4003, 4
        %v4355 = vadd.f32 %v4003, %v4354
        %v4356 = vrot.slane %v4355, 2
        %v4357 = vadd.f32 %v4355, %v4356
        %v4358 = vrot.slane %v4357, 1
        %v4359 = vadd.f32 %v4357, %v4358
        %v4360 = vrot.slane %v4005, 4
        %v4361 = vadd.f32 %v4005, %v4360
        %v4362 = vrot.slane %v4361, 2
        %v4363 = vadd.f32 %v4361, %v4362
        %v4364 = vrot.slane %v4363, 1
        %v4365 = vadd.f32 %v4363, %v4364
        %v4366 = vrot.slane %v4007, 4
        %v4367 = vadd.f32 %v4007, %v4366
        %v4368 = vrot.slane %v4367, 2
        %v4369 = vadd.f32 %v4367, %v4368
        %v4370 = vrot.slane %v4369, 1
        %v4371 = vadd.f32 %v4369, %v4370
        %v4372 = vrot.slane %v4009, 4
        %v4373 = vadd.f32 %v4009, %v4372
        %v4374 = vrot.slane %v4373, 2
        %v4375 = vadd.f32 %v4373, %v4374
        %v4376 = vrot.slane %v4375, 1
        %v4377 = vadd.f32 %v4375, %v4376
        %v4378 = vrot.slane %v4011, 4
        %v4379 = vadd.f32 %v4011, %v4378
        %v4380 = vrot.slane %v4379, 2
        %v4381 = vadd.f32 %v4379, %v4380
        %v4382 = vrot.slane %v4381, 1
        %v4383 = vadd.f32 %v4381, %v4382
        %v4384 = vrot.slane %v4013, 4
        %v4385 = vadd.f32 %v4013, %v4384
        %v4386 = vrot.slane %v4385, 2
        %v4387 = vadd.f32 %v4385, %v4386
        %v4388 = vrot.slane %v4387, 1
        %v4389 = vadd.f32 %v4387, %v4388
        %v4390 = vrot.slane %v4015, 4
        %v4391 = vadd.f32 %v4015, %v4390
        %v4392 = vrot.slane %v4391, 2
        %v4393 = vadd.f32 %v4391, %v4392
        %v4394 = vrot.slane %v4393, 1
        %v4395 = vadd.f32 %v4393, %v4394
        %v4396 = vrot.slane %v4017, 4
        %v4397 = vadd.f32 %v4017, %v4396
        %v4398 = vrot.slane %v4397, 2
        %v4399 = vadd.f32 %v4397, %v4398
        %v4400 = vrot.slane %v4399, 1
        %v4401 = vadd.f32 %v4399, %v4400
        %v4402 = vrot.slane %v4019, 4
        %v4403 = vadd.f32 %v4019, %v4402
        %v4404 = vrot.slane %v4403, 2
        %v4405 = vadd.f32 %v4403, %v4404
        %v4406 = vrot.slane %v4405, 1
        %v4407 = vadd.f32 %v4405, %v4406
        %v4408 = vrot.slane %v4021, 4
        %v4409 = vadd.f32 %v4021, %v4408
        %v4410 = vrot.slane %v4409, 2
        %v4411 = vadd.f32 %v4409, %v4410
        %v4412 = vrot.slane %v4411, 1
        %v4413 = vadd.f32 %v4411, %v4412
        %v4414 = vrot.slane %v4023, 4
        %v4415 = vadd.f32 %v4023, %v4414
        %v4416 = vrot.slane %v4415, 2
        %v4417 = vadd.f32 %v4415, %v4416
        %v4418 = vrot.slane %v4417, 1
        %v4419 = vadd.f32 %v4417, %v4418
        %v4420 = vrot.slane %v4025, 4
        %v4421 = vadd.f32 %v4025, %v4420
        %v4422 = vrot.slane %v4421, 2
        %v4423 = vadd.f32 %v4421, %v4422
        %v4424 = vrot.slane %v4423, 1
        %v4425 = vadd.f32 %v4423, %v4424
        %v4426 = vrot.slane %v4027, 4
        %v4427 = vadd.f32 %v4027, %v4426
        %v4428 = vrot.slane %v4427, 2
        %v4429 = vadd.f32 %v4427, %v4428
        %v4430 = vrot.slane %v4429, 1
        %v4431 = vadd.f32 %v4429, %v4430
        %v4432 = vrot.slane %v4029, 4
        %v4433 = vadd.f32 %v4029, %v4432
        %v4434 = vrot.slane %v4433, 2
        %v4435 = vadd.f32 %v4433, %v4434
        %v4436 = vrot.slane %v4435, 1
        %v4437 = vadd.f32 %v4435, %v4436
        %v4438 = vrot.slane %v4031, 4
        %v4439 = vadd.f32 %v4031, %v4438
        %v4440 = vrot.slane %v4439, 2
        %v4441 = vadd.f32 %v4439, %v4440
        %v4442 = vrot.slane %v4441, 1
        %v4443 = vadd.f32 %v4441, %v4442
        %v4444 = vrot.slane %v4033, 4
        %v4445 = vadd.f32 %v4033, %v4444
        %v4446 = vrot.slane %v4445, 2
        %v4447 = vadd.f32 %v4445, %v4446
        %v4448 = vrot.slane %v4447, 1
        %v4449 = vadd.f32 %v4447, %v4448
        %v4450 = vrot.slane %v4035, 4
        %v4451 = vadd.f32 %v4035, %v4450
        %v4452 = vrot.slane %v4451, 2
        %v4453 = vadd.f32 %v4451, %v4452
        %v4454 = vrot.slane %v4453, 1
        %v4455 = vadd.f32 %v4453, %v4454
        %v4456 = vrot.slane %v4037, 4
        %v4457 = vadd.f32 %v4037, %v4456
        %v4458 = vrot.slane %v4457, 2
        %v4459 = vadd.f32 %v4457, %v4458
        %v4460 = vrot.slane %v4459, 1
        %v4461 = vadd.f32 %v4459, %v4460
        %v4462 = vrot.slane %v4039, 4
        %v4463 = vadd.f32 %v4039, %v4462
        %v4464 = vrot.slane %v4463, 2
        %v4465 = vadd.f32 %v4463, %v4464
        %v4466 = vrot.slane %v4465, 1
        %v4467 = vadd.f32 %v4465, %v4466
        %v4468 = vrot.slane %v4041, 4
        %v4469 = vadd.f32 %v4041, %v4468
        %v4470 = vrot.slane %v4469, 2
        %v4471 = vadd.f32 %v4469, %v4470
        %v4472 = vrot.slane %v4471, 1
        %v4473 = vadd.f32 %v4471, %v4472
        %v4474 = vrot.slane %v4043, 4
        %v4475 = vadd.f32 %v4043, %v4474
        %v4476 = vrot.slane %v4475, 2
        %v4477 = vadd.f32 %v4475, %v4476
        %v4478 = vrot.slane %v4477, 1
        %v4479 = vadd.f32 %v4477, %v4478
        %v4480 = vrot.slane %v4045, 4
        %v4481 = vadd.f32 %v4045, %v4480
        %v4482 = vrot.slane %v4481, 2
        %v4483 = vadd.f32 %v4481, %v4482
        %v4484 = vrot.slane %v4483, 1
        %v4485 = vadd.f32 %v4483, %v4484
        %v4486 = vrot.slane %v4047, 4
        %v4487 = vadd.f32 %v4047, %v4486
        %v4488 = vrot.slane %v4487, 2
        %v4489 = vadd.f32 %v4487, %v4488
        %v4490 = vrot.slane %v4489, 1
        %v4491 = vadd.f32 %v4489, %v4490
        %v4492 = vrot.slane %v4049, 4
        %v4493 = vadd.f32 %v4049, %v4492
        %v4494 = vrot.slane %v4493, 2
        %v4495 = vadd.f32 %v4493, %v4494
        %v4496 = vrot.slane %v4495, 1
        %v4497 = vadd.f32 %v4495, %v4496
        %v4498 = vrot.slane %v4051, 4
        %v4499 = vadd.f32 %v4051, %v4498
        %v4500 = vrot.slane %v4499, 2
        %v4501 = vadd.f32 %v4499, %v4500
        %v4502 = vrot.slane %v4501, 1
        %v4503 = vadd.f32 %v4501, %v4502
        %v4504 = vrot.slane %v4053, 4
        %v4505 = vadd.f32 %v4053, %v4504
        %v4506 = vrot.slane %v4505, 2
        %v4507 = vadd.f32 %v4505, %v4506
        %v4508 = vrot.slane %v4507, 1
        %v4509 = vadd.f32 %v4507, %v4508
        %v4510 = vrot.slane %v4055, 4
        %v4511 = vadd.f32 %v4055, %v4510
        %v4512 = vrot.slane %v4511, 2
        %v4513 = vadd.f32 %v4511, %v4512
        %v4514 = vrot.slane %v4513, 1
        %v4515 = vadd.f32 %v4513, %v4514
        %v4516 = vrot.slane %v4057, 4
        %v4517 = vadd.f32 %v4057, %v4516
        %v4518 = vrot.slane %v4517, 2
        %v4519 = vadd.f32 %v4517, %v4518
        %v4520 = vrot.slane %v4519, 1
        %v4521 = vadd.f32 %v4519, %v4520
        %v4522 = vrot.slane %v4059, 4
        %v4523 = vadd.f32 %v4059, %v4522
        %v4524 = vrot.slane %v4523, 2
        %v4525 = vadd.f32 %v4523, %v4524
        %v4526 = vrot.slane %v4525, 1
        %v4527 = vadd.f32 %v4525, %v4526
        %v4528 = vrot.slane %v4061, 4
        %v4529 = vadd.f32 %v4061, %v4528
        %v4530 = vrot.slane %v4529, 2
        %v4531 = vadd.f32 %v4529, %v4530
        %v4532 = vrot.slane %v4531, 1
        %v4533 = vadd.f32 %v4531, %v4532
        %v4534 = vrot.slane %v4063, 4
        %v4535 = vadd.f32 %v4063, %v4534
        %v4536 = vrot.slane %v4535, 2
        %v4537 = vadd.f32 %v4535, %v4536
        %v4538 = vrot.slane %v4537, 1
        %v4539 = vadd.f32 %v4537, %v4538
        %v4540 = vrot.slane %v4065, 4
        %v4541 = vadd.f32 %v4065, %v4540
        %v4542 = vrot.slane %v4541, 2
        %v4543 = vadd.f32 %v4541, %v4542
        %v4544 = vrot.slane %v4543, 1
        %v4545 = vadd.f32 %v4543, %v4544
        %v4546 = vrot.slane %v4067, 4
        %v4547 = vadd.f32 %v4067, %v4546
        %v4548 = vrot.slane %v4547, 2
        %v4549 = vadd.f32 %v4547, %v4548
        %v4550 = vrot.slane %v4549, 1
        %v4551 = vadd.f32 %v4549, %v4550
        %v4552 = vrot.slane %v4069, 4
        %v4553 = vadd.f32 %v4069, %v4552
        %v4554 = vrot.slane %v4553, 2
        %v4555 = vadd.f32 %v4553, %v4554
        %v4556 = vrot.slane %v4555, 1
        %v4557 = vadd.f32 %v4555, %v4556
        %v4558 = vrot.slane %v4071, 4
        %v4559 = vadd.f32 %v4071, %v4558
        %v4560 = vrot.slane %v4559, 2
        %v4561 = vadd.f32 %v4559, %v4560
        %v4562 = vrot.slane %v4561, 1
        %v4563 = vadd.f32 %v4561, %v4562
        %v4564 = vrot.slane %v4073, 4
        %v4565 = vadd.f32 %v4073, %v4564
        %v4566 = vrot.slane %v4565, 2
        %v4567 = vadd.f32 %v4565, %v4566
        %v4568 = vrot.slane %v4567, 1
        %v4569 = vadd.f32 %v4567, %v4568
        %v4570 = vrot.slane %v4075, 4
        %v4571 = vadd.f32 %v4075, %v4570
        %v4572 = vrot.slane %v4571, 2
        %v4573 = vadd.f32 %v4571, %v4572
        %v4574 = vrot.slane %v4573, 1
        %v4575 = vadd.f32 %v4573, %v4574
        %v4576 = vrot.slane %v4077, 4
        %v4577 = vadd.f32 %v4077, %v4576
        %v4578 = vrot.slane %v4577, 2
        %v4579 = vadd.f32 %v4577, %v4578
        %v4580 = vrot.slane %v4579, 1
        %v4581 = vadd.f32 %v4579, %v4580
        %v4582 = vrot.slane %v4079, 4
        %v4583 = vadd.f32 %v4079, %v4582
        %v4584 = vrot.slane %v4583, 2
        %v4585 = vadd.f32 %v4583, %v4584
        %v4586 = vrot.slane %v4585, 1
        %v4587 = vadd.f32 %v4585, %v4586
        %v4588 = vrot.slane %v4081, 4
        %v4589 = vadd.f32 %v4081, %v4588
        %v4590 = vrot.slane %v4589, 2
        %v4591 = vadd.f32 %v4589, %v4590
        %v4592 = vrot.slane %v4591, 1
        %v4593 = vadd.f32 %v4591, %v4592
        %v4594 = vrot.slane %v4083, 4
        %v4595 = vadd.f32 %v4083, %v4594
        %v4596 = vrot.slane %v4595, 2
        %v4597 = vadd.f32 %v4595, %v4596
        %v4598 = vrot.slane %v4597, 1
        %v4599 = vadd.f32 %v4597, %v4598
        %v4600 = vrot.slane %v4085, 4
        %v4601 = vadd.f32 %v4085, %v4600
        %v4602 = vrot.slane %v4601, 2
        %v4603 = vadd.f32 %v4601, %v4602
        %v4604 = vrot.slane %v4603, 1
        %v4605 = vadd.f32 %v4603, %v4604
        %v4606 = vrot.slane %v4087, 4
        %v4607 = vadd.f32 %v4087, %v4606
        %v4608 = vrot.slane %v4607, 2
        %v4609 = vadd.f32 %v4607, %v4608
        %v4610 = vrot.slane %v4609, 1
        %v4611 = vadd.f32 %v4609, %v4610
        %v4612 = vrot.slane %v4089, 4
        %v4613 = vadd.f32 %v4089, %v4612
        %v4614 = vrot.slane %v4613, 2
        %v4615 = vadd.f32 %v4613, %v4614
        %v4616 = vrot.slane %v4615, 1
        %v4617 = vadd.f32 %v4615, %v4616
        %v4618 = vrot.slane %v4091, 4
        %v4619 = vadd.f32 %v4091, %v4618
        %v4620 = vrot.slane %v4619, 2
        %v4621 = vadd.f32 %v4619, %v4620
        %v4622 = vrot.slane %v4621, 1
        %v4623 = vadd.f32 %v4621, %v4622
        %v4624 = vrot.slane %v4093, 4
        %v4625 = vadd.f32 %v4093, %v4624
        %v4626 = vrot.slane %v4625, 2
        %v4627 = vadd.f32 %v4625, %v4626
        %v4628 = vrot.slane %v4627, 1
        %v4629 = vadd.f32 %v4627, %v4628
        %v4630 = vrot.slane %v4095, 4
        %v4631 = vadd.f32 %v4095, %v4630
        %v4632 = vrot.slane %v4631, 2
        %v4633 = vadd.f32 %v4631, %v4632
        %v4634 = vrot.slane %v4633, 1
        %v4635 = vadd.f32 %v4633, %v4634
        %v4636 = vrot.slane %v4097, 4
        %v4637 = vadd.f32 %v4097, %v4636
        %v4638 = vrot.slane %v4637, 2
        %v4639 = vadd.f32 %v4637, %v4638
        %v4640 = vrot.slane %v4639, 1
        %v4641 = vadd.f32 %v4639, %v4640
        %v4642 = vrot.slane %v4099, 4
        %v4643 = vadd.f32 %v4099, %v4642
        %v4644 = vrot.slane %v4643, 2
        %v4645 = vadd.f32 %v4643, %v4644
        %v4646 = vrot.slane %v4645, 1
        %v4647 = vadd.f32 %v4645, %v4646
        %v4648 = vrot.slane %v4101, 4
        %v4649 = vadd.f32 %v4101, %v4648
        %v4650 = vrot.slane %v4649, 2
        %v4651 = vadd.f32 %v4649, %v4650
        %v4652 = vrot.slane %v4651, 1
        %v4653 = vadd.f32 %v4651, %v4652
        %v4654 = vrot.slane %v4103, 4
        %v4655 = vadd.f32 %v4103, %v4654
        %v4656 = vrot.slane %v4655, 2
        %v4657 = vadd.f32 %v4655, %v4656
        %v4658 = vrot.slane %v4657, 1
        %v4659 = vadd.f32 %v4657, %v4658
        %v4660 = vrot.slane %v4105, 4
        %v4661 = vadd.f32 %v4105, %v4660
        %v4662 = vrot.slane %v4661, 2
        %v4663 = vadd.f32 %v4661, %v4662
        %v4664 = vrot.slane %v4663, 1
        %v4665 = vadd.f32 %v4663, %v4664
        %v4666 = vrot.slane %v4107, 4
        %v4667 = vadd.f32 %v4107, %v4666
        %v4668 = vrot.slane %v4667, 2
        %v4669 = vadd.f32 %v4667, %v4668
        %v4670 = vrot.slane %v4669, 1
        %v4671 = vadd.f32 %v4669, %v4670
        %v4672 = vrot.slane %v4109, 4
        %v4673 = vadd.f32 %v4109, %v4672
        %v4674 = vrot.slane %v4673, 2
        %v4675 = vadd.f32 %v4673, %v4674
        %v4676 = vrot.slane %v4675, 1
        %v4677 = vadd.f32 %v4675, %v4676
        %v4678 = vrot.slane %v4111, 4
        %v4679 = vadd.f32 %v4111, %v4678
        %v4680 = vrot.slane %v4679, 2
        %v4681 = vadd.f32 %v4679, %v4680
        %v4682 = vrot.slane %v4681, 1
        %v4683 = vadd.f32 %v4681, %v4682
        %v4684 = vrot.slane %v4113, 4
        %v4685 = vadd.f32 %v4113, %v4684
        %v4686 = vrot.slane %v4685, 2
        %v4687 = vadd.f32 %v4685, %v4686
        %v4688 = vrot.slane %v4687, 1
        %v4689 = vadd.f32 %v4687, %v4688
        %v4690 = vrot.slane %v4115, 4
        %v4691 = vadd.f32 %v4115, %v4690
        %v4692 = vrot.slane %v4691, 2
        %v4693 = vadd.f32 %v4691, %v4692
        %v4694 = vrot.slane %v4693, 1
        %v4695 = vadd.f32 %v4693, %v4694
        %v4696 = vrot.slane %v4117, 4
        %v4697 = vadd.f32 %v4117, %v4696
        %v4698 = vrot.slane %v4697, 2
        %v4699 = vadd.f32 %v4697, %v4698
        %v4700 = vrot.slane %v4699, 1
        %v4701 = vadd.f32 %v4699, %v4700
        %v4702 = vrot.slane %v4119, 4
        %v4703 = vadd.f32 %v4119, %v4702
        %v4704 = vrot.slane %v4703, 2
        %v4705 = vadd.f32 %v4703, %v4704
        %v4706 = vrot.slane %v4705, 1
        %v4707 = vadd.f32 %v4705, %v4706
        %v4708 = vrot.slane %v4121, 4
        %v4709 = vadd.f32 %v4121, %v4708
        %v4710 = vrot.slane %v4709, 2
        %v4711 = vadd.f32 %v4709, %v4710
        %v4712 = vrot.slane %v4711, 1
        %v4713 = vadd.f32 %v4711, %v4712
        %v4714 = vrot.slane %v4123, 4
        %v4715 = vadd.f32 %v4123, %v4714
        %v4716 = vrot.slane %v4715, 2
        %v4717 = vadd.f32 %v4715, %v4716
        %v4718 = vrot.slane %v4717, 1
        %v4719 = vadd.f32 %v4717, %v4718
        %v4720 = vrot.slane %v4125, 4
        %v4721 = vadd.f32 %v4125, %v4720
        %v4722 = vrot.slane %v4721, 2
        %v4723 = vadd.f32 %v4721, %v4722
        %v4724 = vrot.slane %v4723, 1
        %v4725 = vadd.f32 %v4723, %v4724
        %v4726 = vrot.slane %v4127, 4
        %v4727 = vadd.f32 %v4127, %v4726
        %v4728 = vrot.slane %v4727, 2
        %v4729 = vadd.f32 %v4727, %v4728
        %v4730 = vrot.slane %v4729, 1
        %v4731 = vadd.f32 %v4729, %v4730
        %v4732 = vrot.slane %v4129, 4
        %v4733 = vadd.f32 %v4129, %v4732
        %v4734 = vrot.slane %v4733, 2
        %v4735 = vadd.f32 %v4733, %v4734
        %v4736 = vrot.slane %v4735, 1
        %v4737 = vadd.f32 %v4735, %v4736
        %v4738 = vrot.slane %v4131, 4
        %v4739 = vadd.f32 %v4131, %v4738
        %v4740 = vrot.slane %v4739, 2
        %v4741 = vadd.f32 %v4739, %v4740
        %v4742 = vrot.slane %v4741, 1
        %v4743 = vadd.f32 %v4741, %v4742
        %v4744 = vrot.slane %v4133, 4
        %v4745 = vadd.f32 %v4133, %v4744
        %v4746 = vrot.slane %v4745, 2
        %v4747 = vadd.f32 %v4745, %v4746
        %v4748 = vrot.slane %v4747, 1
        %v4749 = vadd.f32 %v4747, %v4748
        %v4750 = vrot.slane %v4135, 4
        %v4751 = vadd.f32 %v4135, %v4750
        %v4752 = vrot.slane %v4751, 2
        %v4753 = vadd.f32 %v4751, %v4752
        %v4754 = vrot.slane %v4753, 1
        %v4755 = vadd.f32 %v4753, %v4754
        %v4756 = vrot.slane %v4137, 4
        %v4757 = vadd.f32 %v4137, %v4756
        %v4758 = vrot.slane %v4757, 2
        %v4759 = vadd.f32 %v4757, %v4758
        %v4760 = vrot.slane %v4759, 1
        %v4761 = vadd.f32 %v4759, %v4760
        %v4762 = vrot.slane %v4139, 4
        %v4763 = vadd.f32 %v4139, %v4762
        %v4764 = vrot.slane %v4763, 2
        %v4765 = vadd.f32 %v4763, %v4764
        %v4766 = vrot.slane %v4765, 1
        %v4767 = vadd.f32 %v4765, %v4766
        %v4768 = vrot.slane %v4141, 4
        %v4769 = vadd.f32 %v4141, %v4768
        %v4770 = vrot.slane %v4769, 2
        %v4771 = vadd.f32 %v4769, %v4770
        %v4772 = vrot.slane %v4771, 1
        %v4773 = vadd.f32 %v4771, %v4772
        %v4774 = vrot.slane %v4143, 4
        %v4775 = vadd.f32 %v4143, %v4774
        %v4776 = vrot.slane %v4775, 2
        %v4777 = vadd.f32 %v4775, %v4776
        %v4778 = vrot.slane %v4777, 1
        %v4779 = vadd.f32 %v4777, %v4778
        %v4780 = vrot.slane %v4145, 4
        %v4781 = vadd.f32 %v4145, %v4780
        %v4782 = vrot.slane %v4781, 2
        %v4783 = vadd.f32 %v4781, %v4782
        %v4784 = vrot.slane %v4783, 1
        %v4785 = vadd.f32 %v4783, %v4784
        %v4786 = vrot.slane %v4147, 4
        %v4787 = vadd.f32 %v4147, %v4786
        %v4788 = vrot.slane %v4787, 2
        %v4789 = vadd.f32 %v4787, %v4788
        %v4790 = vrot.slane %v4789, 1
        %v4791 = vadd.f32 %v4789, %v4790
        %v4792 = vrot.slane %v4149, 4
        %v4793 = vadd.f32 %v4149, %v4792
        %v4794 = vrot.slane %v4793, 2
        %v4795 = vadd.f32 %v4793, %v4794
        %v4796 = vrot.slane %v4795, 1
        %v4797 = vadd.f32 %v4795, %v4796
        %v4798 = vrot.slane %v4151, 4
        %v4799 = vadd.f32 %v4151, %v4798
        %v4800 = vrot.slane %v4799, 2
        %v4801 = vadd.f32 %v4799, %v4800
        %v4802 = vrot.slane %v4801, 1
        %v4803 = vadd.f32 %v4801, %v4802
        %v4804 = vrot.slane %v4153, 4
        %v4805 = vadd.f32 %v4153, %v4804
        %v4806 = vrot.slane %v4805, 2
        %v4807 = vadd.f32 %v4805, %v4806
        %v4808 = vrot.slane %v4807, 1
        %v4809 = vadd.f32 %v4807, %v4808
        %v4810 = vrot.slane %v4155, 4
        %v4811 = vadd.f32 %v4155, %v4810
        %v4812 = vrot.slane %v4811, 2
        %v4813 = vadd.f32 %v4811, %v4812
        %v4814 = vrot.slane %v4813, 1
        %v4815 = vadd.f32 %v4813, %v4814
        %v4816 = vrot.slane %v4157, 4
        %v4817 = vadd.f32 %v4157, %v4816
        %v4818 = vrot.slane %v4817, 2
        %v4819 = vadd.f32 %v4817, %v4818
        %v4820 = vrot.slane %v4819, 1
        %v4821 = vadd.f32 %v4819, %v4820
        %v4822 = vrot.slane %v4159, 4
        %v4823 = vadd.f32 %v4159, %v4822
        %v4824 = vrot.slane %v4823, 2
        %v4825 = vadd.f32 %v4823, %v4824
        %v4826 = vrot.slane %v4825, 1
        %v4827 = vadd.f32 %v4825, %v4826
        %v4828 = vrot.slane %v4161, 4
        %v4829 = vadd.f32 %v4161, %v4828
        %v4830 = vrot.slane %v4829, 2
        %v4831 = vadd.f32 %v4829, %v4830
        %v4832 = vrot.slane %v4831, 1
        %v4833 = vadd.f32 %v4831, %v4832
        %v4834 = vrot.slane %v4163, 4
        %v4835 = vadd.f32 %v4163, %v4834
        %v4836 = vrot.slane %v4835, 2
        %v4837 = vadd.f32 %v4835, %v4836
        %v4838 = vrot.slane %v4837, 1
        %v4839 = vadd.f32 %v4837, %v4838
        %v4840 = vrot.slane %v4165, 4
        %v4841 = vadd.f32 %v4165, %v4840
        %v4842 = vrot.slane %v4841, 2
        %v4843 = vadd.f32 %v4841, %v4842
        %v4844 = vrot.slane %v4843, 1
        %v4845 = vadd.f32 %v4843, %v4844
        %v4846 = vrot.slane %v4167, 4
        %v4847 = vadd.f32 %v4167, %v4846
        %v4848 = vrot.slane %v4847, 2
        %v4849 = vadd.f32 %v4847, %v4848
        %v4850 = vrot.slane %v4849, 1
        %v4851 = vadd.f32 %v4849, %v4850
        %v4852 = vrot.slane %v4169, 4
        %v4853 = vadd.f32 %v4169, %v4852
        %v4854 = vrot.slane %v4853, 2
        %v4855 = vadd.f32 %v4853, %v4854
        %v4856 = vrot.slane %v4855, 1
        %v4857 = vadd.f32 %v4855, %v4856
        %v4858 = vrot.slane %v4171, 4
        %v4859 = vadd.f32 %v4171, %v4858
        %v4860 = vrot.slane %v4859, 2
        %v4861 = vadd.f32 %v4859, %v4860
        %v4862 = vrot.slane %v4861, 1
        %v4863 = vadd.f32 %v4861, %v4862
        %v4864 = vrot.slane %v4173, 4
        %v4865 = vadd.f32 %v4173, %v4864
        %v4866 = vrot.slane %v4865, 2
        %v4867 = vadd.f32 %v4865, %v4866
        %v4868 = vrot.slane %v4867, 1
        %v4869 = vadd.f32 %v4867, %v4868
        %v4870 = vrot.slane %v4175, 4
        %v4871 = vadd.f32 %v4175, %v4870
        %v4872 = vrot.slane %v4871, 2
        %v4873 = vadd.f32 %v4871, %v4872
        %v4874 = vrot.slane %v4873, 1
        %v4875 = vadd.f32 %v4873, %v4874
        %v4876 = vrot.slane %v4177, 4
        %v4877 = vadd.f32 %v4177, %v4876
        %v4878 = vrot.slane %v4877, 2
        %v4879 = vadd.f32 %v4877, %v4878
        %v4880 = vrot.slane %v4879, 1
        %v4881 = vadd.f32 %v4879, %v4880
        %v4882 = vrot.slane %v4179, 4
        %v4883 = vadd.f32 %v4179, %v4882
        %v4884 = vrot.slane %v4883, 2
        %v4885 = vadd.f32 %v4883, %v4884
        %v4886 = vrot.slane %v4885, 1
        %v4887 = vadd.f32 %v4885, %v4886
        %v4888 = vrot.slane %v4181, 4
        %v4889 = vadd.f32 %v4181, %v4888
        %v4890 = vrot.slane %v4889, 2
        %v4891 = vadd.f32 %v4889, %v4890
        %v4892 = vrot.slane %v4891, 1
        %v4893 = vadd.f32 %v4891, %v4892
        %v4894 = vrot.slane %v4183, 4
        %v4895 = vadd.f32 %v4183, %v4894
        %v4896 = vrot.slane %v4895, 2
        %v4897 = vadd.f32 %v4895, %v4896
        %v4898 = vrot.slane %v4897, 1
        %v4899 = vadd.f32 %v4897, %v4898
        %v4900 = vrot.slane %v4185, 4
        %v4901 = vadd.f32 %v4185, %v4900
        %v4902 = vrot.slane %v4901, 2
        %v4903 = vadd.f32 %v4901, %v4902
        %v4904 = vrot.slane %v4903, 1
        %v4905 = vadd.f32 %v4903, %v4904
        %v4906 = vrot.slane %v4187, 4
        %v4907 = vadd.f32 %v4187, %v4906
        %v4908 = vrot.slane %v4907, 2
        %v4909 = vadd.f32 %v4907, %v4908
        %v4910 = vrot.slane %v4909, 1
        %v4911 = vadd.f32 %v4909, %v4910
        %v4912 = vrot.slane %v4189, 4
        %v4913 = vadd.f32 %v4189, %v4912
        %v4914 = vrot.slane %v4913, 2
        %v4915 = vadd.f32 %v4913, %v4914
        %v4916 = vrot.slane %v4915, 1
        %v4917 = vadd.f32 %v4915, %v4916
        %v4918 = vrot.slane %v4191, 4
        %v4919 = vadd.f32 %v4191, %v4918
        %v4920 = vrot.slane %v4919, 2
        %v4921 = vadd.f32 %v4919, %v4920
        %v4922 = vrot.slane %v4921, 1
        %v4923 = vadd.f32 %v4921, %v4922
        %v4924 = vrot.slane %v4193, 4
        %v4925 = vadd.f32 %v4193, %v4924
        %v4926 = vrot.slane %v4925, 2
        %v4927 = vadd.f32 %v4925, %v4926
        %v4928 = vrot.slane %v4927, 1
        %v4929 = vadd.f32 %v4927, %v4928
        %v4930 = vrot.slane %v4195, 4
        %v4931 = vadd.f32 %v4195, %v4930
        %v4932 = vrot.slane %v4931, 2
        %v4933 = vadd.f32 %v4931, %v4932
        %v4934 = vrot.slane %v4933, 1
        %v4935 = vadd.f32 %v4933, %v4934
        %v4936 = vrot.slane %v4197, 4
        %v4937 = vadd.f32 %v4197, %v4936
        %v4938 = vrot.slane %v4937, 2
        %v4939 = vadd.f32 %v4937, %v4938
        %v4940 = vrot.slane %v4939, 1
        %v4941 = vadd.f32 %v4939, %v4940
        %v4942 = vrot.slane %v4199, 4
        %v4943 = vadd.f32 %v4199, %v4942
        %v4944 = vrot.slane %v4943, 2
        %v4945 = vadd.f32 %v4943, %v4944
        %v4946 = vrot.slane %v4945, 1
        %v4947 = vadd.f32 %v4945, %v4946
        %v4948 = vrot.slane %v4201, 4
        %v4949 = vadd.f32 %v4201, %v4948
        %v4950 = vrot.slane %v4949, 2
        %v4951 = vadd.f32 %v4949, %v4950
        %v4952 = vrot.slane %v4951, 1
        %v4953 = vadd.f32 %v4951, %v4952
        %v4954 = vrot.slane %v4203, 4
        %v4955 = vadd.f32 %v4203, %v4954
        %v4956 = vrot.slane %v4955, 2
        %v4957 = vadd.f32 %v4955, %v4956
        %v4958 = vrot.slane %v4957, 1
        %v4959 = vadd.f32 %v4957, %v4958
        %v4960 = vrot.slane %v4205, 4
        %v4961 = vadd.f32 %v4205, %v4960
        %v4962 = vrot.slane %v4961, 2
        %v4963 = vadd.f32 %v4961, %v4962
        %v4964 = vrot.slane %v4963, 1
        %v4965 = vadd.f32 %v4963, %v4964
        %v4966 = vrot.slane %v4207, 4
        %v4967 = vadd.f32 %v4207, %v4966
        %v4968 = vrot.slane %v4967, 2
        %v4969 = vadd.f32 %v4967, %v4968
        %v4970 = vrot.slane %v4969, 1
        %v4971 = vadd.f32 %v4969, %v4970
        %v4972 = vrot.slane %v4209, 4
        %v4973 = vadd.f32 %v4209, %v4972
        %v4974 = vrot.slane %v4973, 2
        %v4975 = vadd.f32 %v4973, %v4974
        %v4976 = vrot.slane %v4975, 1
        %v4977 = vadd.f32 %v4975, %v4976
        %v4978 = vrcp.pop %v4215
        %v4979 = vmul.f32 1.0, %v4978
        %v4980 = vrcp.pop %v4221
        %v4981 = vmul.f32 1.0, %v4980
        %v4982 = vrcp.pop %v4227
        %v4983 = vmul.f32 1.0, %v4982
        %v4984 = vrcp.pop %v4233
        %v4985 = vmul.f32 1.0, %v4984
        %v4986 = vrcp.pop %v4239
        %v4987 = vmul.f32 1.0, %v4986
        %v4988 = vrcp.pop %v4245
        %v4989 = vmul.f32 1.0, %v4988
        %v4990 = vrcp.pop %v4251
        %v4991 = vmul.f32 1.0, %v4990
        %v4992 = vrcp.pop %v4257
        %v4993 = vmul.f32 1.0, %v4992
        %v4994 = vrcp.pop %v4263
        %v4995 = vmul.f32 1.0, %v4994
        %v4996 = vrcp.pop %v4269
        %v4997 = vmul.f32 1.0, %v4996
        %v4998 = vrcp.pop %v4275
        %v4999 = vmul.f32 1.0, %v4998
        %v5000 = vrcp.pop %v4281
        %v5001 = vmul.f32 1.0, %v5000
        %v5002 = vrcp.pop %v4287
        %v5003 = vmul.f32 1.0, %v5002
        %v5004 = vrcp.pop %v4293
        %v5005 = vmul.f32 1.0, %v5004
        %v5006 = vrcp.pop %v4299
        %v5007 = vmul.f32 1.0, %v5006
        %v5008 = vrcp.pop %v4305
        %v5009 = vmul.f32 1.0, %v5008
        %v5010 = vrcp.pop %v4311
        %v5011 = vmul.f32 1.0, %v5010
        %v5012 = vrcp.pop %v4317
        %v5013 = vmul.f32 1.0, %v5012
        %v5014 = vrcp.pop %v4323
        %v5015 = vmul.f32 1.0, %v5014
        %v5016 = vrcp.pop %v4329
        %v5017 = vmul.f32 1.0, %v5016
        %v5018 = vrcp.pop %v4335
        %v5019 = vmul.f32 1.0, %v5018
        %v5020 = vrcp.pop %v4341
        %v5021 = vmul.f32 1.0, %v5020
        %v5022 = vrcp.pop %v4347
        %v5023 = vmul.f32 1.0, %v5022
        %v5024 = vrcp.pop %v4353
        %v5025 = vmul.f32 1.0, %v5024
        %v5026 = vrcp.pop %v4359
        %v5027 = vmul.f32 1.0, %v5026
        %v5028 = vrcp.pop %v4365
        %v5029 = vmul.f32 1.0, %v5028
        %v5030 = vrcp.pop %v4371
        %v5031 = vmul.f32 1.0, %v5030
        %v5032 = vrcp.pop %v4377
        %v5033 = vmul.f32 1.0, %v5032
        %v5034 = vrcp.pop %v4383
        %v5035 = vmul.f32 1.0, %v5034
        %v5036 = vrcp.pop %v4389
        %v5037 = vmul.f32 1.0, %v5036
        %v5038 = vrcp.pop %v4395
        %v5039 = vmul.f32 1.0, %v5038
        %v5040 = vrcp.pop %v4401
        %v5041 = vmul.f32 1.0, %v5040
        %v5042 = vrcp.pop %v4407
        %v5043 = vmul.f32 1.0, %v5042
        %v5044 = vrcp.pop %v4413
        %v5045 = vmul.f32 1.0, %v5044
        %v5046 = vrcp.pop %v4419
        %v5047 = vmul.f32 1.0, %v5046
        %v5048 = vrcp.pop %v4425
        %v5049 = vmul.f32 1.0, %v5048
        %v5050 = vrcp.pop %v4431
        %v5051 = vmul.f32 1.0, %v5050
        %v5052 = vrcp.pop %v4437
        %v5053 = vmul.f32 1.0, %v5052
        %v5054 = vrcp.pop %v4443
        %v5055 = vmul.f32 1.0, %v5054
        %v5056 = vrcp.pop %v4449
        %v5057 = vmul.f32 1.0, %v5056
        %v5058 = vrcp.pop %v4455
        %v5059 = vmul.f32 1.0, %v5058
        %v5060 = vrcp.pop %v4461
        %v5061 = vmul.f32 1.0, %v5060
        %v5062 = vrcp.pop %v4467
        %v5063 = vmul.f32 1.0, %v5062
        %v5064 = vrcp.pop %v4473
        %v5065 = vmul.f32 1.0, %v5064
        %v5066 = vrcp.pop %v4479
        %v5067 = vmul.f32 1.0, %v5066
        %v5068 = vrcp.pop %v4485
        %v5069 = vmul.f32 1.0, %v5068
        %v5070 = vrcp.pop %v4491
        %v5071 = vmul.f32 1.0, %v5070
        %v5072 = vrcp.pop %v4497
        %v5073 = vmul.f32 1.0, %v5072
        %v5074 = vrcp.pop %v4503
        %v5075 = vmul.f32 1.0, %v5074
        %v5076 = vrcp.pop %v4509
        %v5077 = vmul.f32 1.0, %v5076
        %v5078 = vrcp.pop %v4515
        %v5079 = vmul.f32 1.0, %v5078
        %v5080 = vrcp.pop %v4521
        %v5081 = vmul.f32 1.0, %v5080
        %v5082 = vrcp.pop %v4527
        %v5083 = vmul.f32 1.0, %v5082
        %v5084 = vrcp.pop %v4533
        %v5085 = vmul.f32 1.0, %v5084
        %v5086 = vrcp.pop %v4539
        %v5087 = vmul.f32 1.0, %v5086
        %v5088 = vrcp.pop %v4545
        %v5089 = vmul.f32 1.0, %v5088
        %v5090 = vrcp.pop %v4551
        %v5091 = vmul.f32 1.0, %v5090
        %v5092 = vrcp.pop %v4557
        %v5093 = vmul.f32 1.0, %v5092
        %v5094 = vrcp.pop %v4563
        %v5095 = vmul.f32 1.0, %v5094
        %v5096 = vrcp.pop %v4569
        %v5097 = vmul.f32 1.0, %v5096
        %v5098 = vrcp.pop %v4575
        %v5099 = vmul.f32 1.0, %v5098
        %v5100 = vrcp.pop %v4581
        %v5101 = vmul.f32 1.0, %v5100
        %v5102 = vrcp.pop %v4587
        %v5103 = vmul.f32 1.0, %v5102
        %v5104 = vrcp.pop %v4593
        %v5105 = vmul.f32 1.0, %v5104
        %v5106 = vrcp.pop %v4599
        %v5107 = vmul.f32 1.0, %v5106
        %v5108 = vrcp.pop %v4605
        %v5109 = vmul.f32 1.0, %v5108
        %v5110 = vrcp.pop %v4611
        %v5111 = vmul.f32 1.0, %v5110
        %v5112 = vrcp.pop %v4617
        %v5113 = vmul.f32 1.0, %v5112
        %v5114 = vrcp.pop %v4623
        %v5115 = vmul.f32 1.0, %v5114
        %v5116 = vrcp.pop %v4629
        %v5117 = vmul.f32 1.0, %v5116
        %v5118 = vrcp.pop %v4635
        %v5119 = vmul.f32 1.0, %v5118
        %v5120 = vrcp.pop %v4641
        %v5121 = vmul.f32 1.0, %v5120
        %v5122 = vrcp.pop %v4647
        %v5123 = vmul.f32 1.0, %v5122
        %v5124 = vrcp.pop %v4653
        %v5125 = vmul.f32 1.0, %v5124
        %v5126 = vrcp.pop %v4659
        %v5127 = vmul.f32 1.0, %v5126
        %v5128 = vrcp.pop %v4665
        %v5129 = vmul.f32 1.0, %v5128
        %v5130 = vrcp.pop %v4671
        %v5131 = vmul.f32 1.0, %v5130
        %v5132 = vrcp.pop %v4677
        %v5133 = vmul.f32 1.0, %v5132
        %v5134 = vrcp.pop %v4683
        %v5135 = vmul.f32 1.0, %v5134
        %v5136 = vrcp.pop %v4689
        %v5137 = vmul.f32 1.0, %v5136
        %v5138 = vrcp.pop %v4695
        %v5139 = vmul.f32 1.0, %v5138
        %v5140 = vrcp.pop %v4701
        %v5141 = vmul.f32 1.0, %v5140
        %v5142 = vrcp.pop %v4707
        %v5143 = vmul.f32 1.0, %v5142
        %v5144 = vrcp.pop %v4713
        %v5145 = vmul.f32 1.0, %v5144
        %v5146 = vrcp.pop %v4719
        %v5147 = vmul.f32 1.0, %v5146
        %v5148 = vrcp.pop %v4725
        %v5149 = vmul.f32 1.0, %v5148
        %v5150 = vrcp.pop %v4731
        %v5151 = vmul.f32 1.0, %v5150
        %v5152 = vrcp.pop %v4737
        %v5153 = vmul.f32 1.0, %v5152
        %v5154 = vrcp.pop %v4743
        %v5155 = vmul.f32 1.0, %v5154
        %v5156 = vrcp.pop %v4749
        %v5157 = vmul.f32 1.0, %v5156
        %v5158 = vrcp.pop %v4755
        %v5159 = vmul.f32 1.0, %v5158
        %v5160 = vrcp.pop %v4761
        %v5161 = vmul.f32 1.0, %v5160
        %v5162 = vrcp.pop %v4767
        %v5163 = vmul.f32 1.0, %v5162
        %v5164 = vrcp.pop %v4773
        %v5165 = vmul.f32 1.0, %v5164
        %v5166 = vrcp.pop %v4779
        %v5167 = vmul.f32 1.0, %v5166
        %v5168 = vrcp.pop %v4785
        %v5169 = vmul.f32 1.0, %v5168
        %v5170 = vrcp.pop %v4791
        %v5171 = vmul.f32 1.0, %v5170
        %v5172 = vrcp.pop %v4797
        %v5173 = vmul.f32 1.0, %v5172
        %v5174 = vrcp.pop %v4803
        %v5175 = vmul.f32 1.0, %v5174
        %v5176 = vrcp.pop %v4809
        %v5177 = vmul.f32 1.0, %v5176
        %v5178 = vrcp.pop %v4815
        %v5179 = vmul.f32 1.0, %v5178
        %v5180 = vrcp.pop %v4821
        %v5181 = vmul.f32 1.0, %v5180
        %v5182 = vrcp.pop %v4827
        %v5183 = vmul.f32 1.0, %v5182
        %v5184 = vrcp.pop %v4833
        %v5185 = vmul.f32 1.0, %v5184
        %v5186 = vrcp.pop %v4839
        %v5187 = vmul.f32 1.0, %v5186
        %v5188 = vrcp.pop %v4845
        %v5189 = vmul.f32 1.0, %v5188
        %v5190 = vrcp.pop %v4851
        %v5191 = vmul.f32 1.0, %v5190
        %v5192 = vrcp.pop %v4857
        %v5193 = vmul.f32 1.0, %v5192
        %v5194 = vrcp.pop %v4863
        %v5195 = vmul.f32 1.0, %v5194
        %v5196 = vrcp.pop %v4869
        %v5197 = vmul.f32 1.0, %v5196
        %v5198 = vrcp.pop %v4875
        %v5199 = vmul.f32 1.0, %v5198
        %v5200 = vrcp.pop %v4881
        %v5201 = vmul.f32 1.0, %v5200
        %v5202 = vrcp.pop %v4887
        %v5203 = vmul.f32 1.0, %v5202
        %v5204 = vrcp.pop %v4893
        %v5205 = vmul.f32 1.0, %v5204
        %v5206 = vrcp.pop %v4899
        %v5207 = vmul.f32 1.0, %v5206
        %v5208 = vrcp.pop %v4905
        %v5209 = vmul.f32 1.0, %v5208
        %v5210 = vrcp.pop %v4911
        %v5211 = vmul.f32 1.0, %v5210
        %v5212 = vrcp.pop %v4917
        %v5213 = vmul.f32 1.0, %v5212
        %v5214 = vrcp.pop %v4923
        %v5215 = vmul.f32 1.0, %v5214
        %v5216 = vrcp.pop %v4929
        %v5217 = vmul.f32 1.0, %v5216
        %v5218 = vrcp.pop %v4935
        %v5219 = vmul.f32 1.0, %v5218
        %v5220 = vrcp.pop %v4941
        %v5221 = vmul.f32 1.0, %v5220
        %v5222 = vrcp.pop %v4947
        %v5223 = vmul.f32 1.0, %v5222
        %v5224 = vrcp.pop %v4953
        %v5225 = vmul.f32 1.0, %v5224
        %v5226 = vrcp.pop %v4959
        %v5227 = vmul.f32 1.0, %v5226
        %v5228 = vrcp.pop %v4965
        %v5229 = vmul.f32 1.0, %v5228
        %v5230 = vrcp.pop %v4971
        %v5231 = vmul.f32 1.0, %v5230
        %v5232 = vrcp.pop %v4977
        %v5233 = vmul.f32 1.0, %v5232
        %v5234 = vmul.f32 %v3955, %v4979
        %v5235 = vmul.f32 %v3957, %v4981
        %v5236 = vmul.f32 %v3959, %v4983
        %v5237 = vmul.f32 %v3961, %v4985
        %v5238 = vmul.f32 %v3963, %v4987
        %v5239 = vmul.f32 %v3965, %v4989
        %v5240 = vmul.f32 %v3967, %v4991
        %v5241 = vmul.f32 %v3969, %v4993
        %v5242 = vmul.f32 %v3971, %v4995
        %v5243 = vmul.f32 %v3973, %v4997
        %v5244 = vmul.f32 %v3975, %v4999
        %v5245 = vmul.f32 %v3977, %v5001
        %v5246 = vmul.f32 %v3979, %v5003
        %v5247 = vmul.f32 %v3981, %v5005
        %v5248 = vmul.f32 %v3983, %v5007
        %v5249 = vmul.f32 %v3985, %v5009
        %v5250 = vmul.f32 %v3987, %v5011
        %v5251 = vmul.f32 %v3989, %v5013
        %v5252 = vmul.f32 %v3991, %v5015
        %v5253 = vmul.f32 %v3993, %v5017
        %v5254 = vmul.f32 %v3995, %v5019
        %v5255 = vmul.f32 %v3997, %v5021
        %v5256 = vmul.f32 %v3999, %v5023
        %v5257 = vmul.f32 %v4001, %v5025
        %v5258 = vmul.f32 %v4003, %v5027
        %v5259 = vmul.f32 %v4005, %v5029
        %v5260 = vmul.f32 %v4007, %v5031
        %v5261 = vmul.f32 %v4009, %v5033
        %v5262 = vmul.f32 %v4011, %v5035
        %v5263 = vmul.f32 %v4013, %v5037
        %v5264 = vmul.f32 %v4015, %v5039
        %v5265 = vmul.f32 %v4017, %v5041
        %v5266 = vmul.f32 %v4019, %v5043
        %v5267 = vmul.f32 %v4021, %v5045
        %v5268 = vmul.f32 %v4023, %v5047
        %v5269 = vmul.f32 %v4025, %v5049
        %v5270 = vmul.f32 %v4027, %v5051
        %v5271 = vmul.f32 %v4029, %v5053
        %v5272 = vmul.f32 %v4031, %v5055
        %v5273 = vmul.f32 %v4033, %v5057
        %v5274 = vmul.f32 %v4035, %v5059
        %v5275 = vmul.f32 %v4037, %v5061
        %v5276 = vmul.f32 %v4039, %v5063
        %v5277 = vmul.f32 %v4041, %v5065
        %v5278 = vmul.f32 %v4043, %v5067
        %v5279 = vmul.f32 %v4045, %v5069
        %v5280 = vmul.f32 %v4047, %v5071
        %v5281 = vmul.f32 %v4049, %v5073
        %v5282 = vmul.f32 %v4051, %v5075
        %v5283 = vmul.f32 %v4053, %v5077
        %v5284 = vmul.f32 %v4055, %v5079
        %v5285 = vmul.f32 %v4057, %v5081
        %v5286 = vmul.f32 %v4059, %v5083
        %v5287 = vmul.f32 %v4061, %v5085
        %v5288 = vmul.f32 %v4063, %v5087
        %v5289 = vmul.f32 %v4065, %v5089
        %v5290 = vmul.f32 %v4067, %v5091
        %v5291 = vmul.f32 %v4069, %v5093
        %v5292 = vmul.f32 %v4071, %v5095
        %v5293 = vmul.f32 %v4073, %v5097
        %v5294 = vmul.f32 %v4075, %v5099
        %v5295 = vmul.f32 %v4077, %v5101
        %v5296 = vmul.f32 %v4079, %v5103
        %v5297 = vmul.f32 %v4081, %v5105
        %v5298 = vmul.f32 %v4083, %v5107
        %v5299 = vmul.f32 %v4085, %v5109
        %v5300 = vmul.f32 %v4087, %v5111
        %v5301 = vmul.f32 %v4089, %v5113
        %v5302 = vmul.f32 %v4091, %v5115
        %v5303 = vmul.f32 %v4093, %v5117
        %v5304 = vmul.f32 %v4095, %v5119
        %v5305 = vmul.f32 %v4097, %v5121
        %v5306 = vmul.f32 %v4099, %v5123
        %v5307 = vmul.f32 %v4101, %v5125
        %v5308 = vmul.f32 %v4103, %v5127
        %v5309 = vmul.f32 %v4105, %v5129
        %v5310 = vmul.f32 %v4107, %v5131
        %v5311 = vmul.f32 %v4109, %v5133
        %v5312 = vmul.f32 %v4111, %v5135
        %v5313 = vmul.f32 %v4113, %v5137
        %v5314 = vmul.f32 %v4115, %v5139
        %v5315 = vmul.f32 %v4117, %v5141
        %v5316 = vmul.f32 %v4119, %v5143
        %v5317 = vmul.f32 %v4121, %v5145
        %v5318 = vmul.f32 %v4123, %v5147
        %v5319 = vmul.f32 %v4125, %v5149
        %v5320 = vmul.f32 %v4127, %v5151
        %v5321 = vmul.f32 %v4129, %v5153
        %v5322 = vmul.f32 %v4131, %v5155
        %v5323 = vmul.f32 %v4133, %v5157
        %v5324 = vmul.f32 %v4135, %v5159
        %v5325 = vmul.f32 %v4137, %v5161
        %v5326 = vmul.f32 %v4139, %v5163
        %v5327 = vmul.f32 %v4141, %v5165
        %v5328 = vmul.f32 %v4143, %v5167
        %v5329 = vmul.f32 %v4145, %v5169
        %v5330 = vmul.f32 %v4147, %v5171
        %v5331 = vmul.f32 %v4149, %v5173
        %v5332 = vmul.f32 %v4151, %v5175
        %v5333 = vmul.f32 %v4153, %v5177
        %v5334 = vmul.f32 %v4155, %v5179
        %v5335 = vmul.f32 %v4157, %v5181
        %v5336 = vmul.f32 %v4159, %v5183
        %v5337 = vmul.f32 %v4161, %v5185
        %v5338 = vmul.f32 %v4163, %v5187
        %v5339 = vmul.f32 %v4165, %v5189
        %v5340 = vmul.f32 %v4167, %v5191
        %v5341 = vmul.f32 %v4169, %v5193
        %v5342 = vmul.f32 %v4171, %v5195
        %v5343 = vmul.f32 %v4173, %v5197
        %v5344 = vmul.f32 %v4175, %v5199
        %v5345 = vmul.f32 %v4177, %v5201
        %v5346 = vmul.f32 %v4179, %v5203
        %v5347 = vmul.f32 %v4181, %v5205
        %v5348 = vmul.f32 %v4183, %v5207
        %v5349 = vmul.f32 %v4185, %v5209
        %v5350 = vmul.f32 %v4187, %v5211
        %v5351 = vmul.f32 %v4189, %v5213
        %v5352 = vmul.f32 %v4191, %v5215
        %v5353 = vmul.f32 %v4193, %v5217
        %v5354 = vmul.f32 %v4195, %v5219
        %v5355 = vmul.f32 %v4197, %v5221
        %v5356 = vmul.f32 %v4199, %v5223
        %v5357 = vmul.f32 %v4201, %v5225
        %v5358 = vmul.f32 %v4203, %v5227
        %v5359 = vmul.f32 %v4205, %v5229
        %v5360 = vmul.f32 %v4207, %v5231
        %v5361 = vmul.f32 %v4209, %v5233
        %v5362 = vld [vmem:[%s3] sm:$0xf]
        %v5363 = vld [vmem:[%s3 + $0x4] sm:$0xf]
        %v5364 = vld [vmem:[%s3 + $0x8] sm:$0xf]
        %v5365 = vld [vmem:[%s3 + $0xc] sm:$0xf]
        %v5366 = vld [vmem:[%s3 + $0x10] sm:$0xf]
        %v5367 = vld [vmem:[%s3 + $0x14] sm:$0xf]
        %v5368 = vld [vmem:[%s3 + $0x18] sm:$0xf]
        %v5369 = vld [vmem:[%s3 + $0x1c] sm:$0xf]
        %v5370 = vld [vmem:[%s3 + $0x20] sm:$0xf]
        %v5371 = vld [vmem:[%s3 + $0x24] sm:$0xf]
        %v5372 = vld [vmem:[%s3 + $0x28] sm:$0xf]
        %v5373 = vld [vmem:[%s3 + $0x2c] sm:$0xf]
        %v5374 = vld [vmem:[%s3 + $0x30] sm:$0xf]
        %v5375 = vld [vmem:[%s3 + $0x34] sm:$0xf]
        %v5376 = vld [vmem:[%s3 + $0x38] sm:$0xf]
        %v5377 = vld [vmem:[%s3 + $0x3c] sm:$0xf]
        %v5378 = vpack.c.bf16 %v5235, %v5234
        %v5379 = vpack.c.bf16 %v5237, %v5236
        %v5380 = vpack.c.bf16 %v5239, %v5238
        %v5381 = vpack.c.bf16 %v5241, %v5240
        %v5382 = vpack.c.bf16 %v5243, %v5242
        %v5383 = vpack.c.bf16 %v5245, %v5244
        %v5384 = vpack.c.bf16 %v5247, %v5246
        %v5385 = vpack.c.bf16 %v5249, %v5248
        %v5386 = vpack.c.bf16 %v5251, %v5250
        %v5387 = vpack.c.bf16 %v5253, %v5252
        %v5388 = vpack.c.bf16 %v5255, %v5254
        %v5389 = vpack.c.bf16 %v5257, %v5256
        %v5390 = vpack.c.bf16 %v5259, %v5258
        %v5391 = vpack.c.bf16 %v5261, %v5260
        %v5392 = vpack.c.bf16 %v5263, %v5262
        %v5393 = vpack.c.bf16 %v5265, %v5264
        %v5394 = vpack.c.bf16 %v5267, %v5266
        %v5395 = vpack.c.bf16 %v5269, %v5268
        %v5396 = vpack.c.bf16 %v5271, %v5270
        %v5397 = vpack.c.bf16 %v5273, %v5272
        %v5398 = vpack.c.bf16 %v5275, %v5274
        %v5399 = vpack.c.bf16 %v5277, %v5276
        %v5400 = vpack.c.bf16 %v5279, %v5278
        %v5401 = vpack.c.bf16 %v5281, %v5280
        %v5402 = vpack.c.bf16 %v5283, %v5282
        %v5403 = vpack.c.bf16 %v5285, %v5284
        %v5404 = vpack.c.bf16 %v5287, %v5286
        %v5405 = vpack.c.bf16 %v5289, %v5288
        %v5406 = vpack.c.bf16 %v5291, %v5290
        %v5407 = vpack.c.bf16 %v5293, %v5292
        %v5408 = vpack.c.bf16 %v5295, %v5294
        %v5409 = vpack.c.bf16 %v5297, %v5296
        %v5410 = vpack.c.bf16 %v5299, %v5298
        %v5411 = vpack.c.bf16 %v5301, %v5300
        %v5412 = vpack.c.bf16 %v5303, %v5302
        %v5413 = vpack.c.bf16 %v5305, %v5304
        %v5414 = vpack.c.bf16 %v5307, %v5306
        %v5415 = vpack.c.bf16 %v5309, %v5308
        %v5416 = vpack.c.bf16 %v5311, %v5310
        %v5417 = vpack.c.bf16 %v5313, %v5312
        %v5418 = vpack.c.bf16 %v5315, %v5314
        %v5419 = vpack.c.bf16 %v5317, %v5316
        %v5420 = vpack.c.bf16 %v5319, %v5318
        %v5421 = vpack.c.bf16 %v5321, %v5320
        %v5422 = vpack.c.bf16 %v5323, %v5322
        %v5423 = vpack.c.bf16 %v5325, %v5324
        %v5424 = vpack.c.bf16 %v5327, %v5326
        %v5425 = vpack.c.bf16 %v5329, %v5328
        %v5426 = vpack.c.bf16 %v5331, %v5330
        %v5427 = vpack.c.bf16 %v5333, %v5332
        %v5428 = vpack.c.bf16 %v5335, %v5334
        %v5429 = vpack.c.bf16 %v5337, %v5336
        %v5430 = vpack.c.bf16 %v5339, %v5338
        %v5431 = vpack.c.bf16 %v5341, %v5340
        %v5432 = vpack.c.bf16 %v5343, %v5342
        %v5433 = vpack.c.bf16 %v5345, %v5344
        %v5434 = vpack.c.bf16 %v5347, %v5346
        %v5435 = vpack.c.bf16 %v5349, %v5348
        %v5436 = vpack.c.bf16 %v5351, %v5350
        %v5437 = vpack.c.bf16 %v5353, %v5352
        %v5438 = vpack.c.bf16 %v5355, %v5354
        %v5439 = vpack.c.bf16 %v5357, %v5356
        %v5440 = vpack.c.bf16 %v5359, %v5358
        %v5441 = vpack.c.bf16 %v5361, %v5360
        %v5458 = vunpack.c.l.b16 %v5362
        %v5459 = vunpack.c.l.b16 %v5363
        %v5460 = vunpack.c.l.b16 %v5364
        %v5461 = vunpack.c.l.b16 %v5365
        %v5462 = vunpack.c.l.b16 %v5366
        %v5463 = vunpack.c.l.b16 %v5367
        %v5464 = vunpack.c.l.b16 %v5368
        %v5465 = vunpack.c.l.b16 %v5369
        %v5466 = vunpack.c.l.b16 %v5370
        %v5467 = vunpack.c.l.b16 %v5371
        %v5468 = vunpack.c.l.b16 %v5372
        %v5469 = vunpack.c.l.b16 %v5373
        %v5470 = vunpack.c.l.b16 %v5374
        %v5471 = vunpack.c.l.b16 %v5375
        %v5472 = vunpack.c.l.b16 %v5376
        %v5473 = vunpack.c.l.b16 %v5377
        %v5474 = vpack.c.b16 %v5459, %v5458
        %v5475 = vpack.c.b16 %v5461, %v5460
        %v5476 = vpack.c.b16 %v5463, %v5462
        %v5477 = vpack.c.b16 %v5465, %v5464
        %v5478 = vpack.c.b16 %v5467, %v5466
        %v5479 = vpack.c.b16 %v5469, %v5468
        %v5480 = vpack.c.b16 %v5471, %v5470
        %v5481 = vpack.c.b16 %v5473, %v5472
        %5490 = vmatprep.subr.bf16.mxu0 0
        %5491 = vmatpush1.bf16.msra.mxu0 %v5481
        %5492 = vmatprep.subr.bf16.mxu0 0
        %5493 = vmatpush1.bf16.msra.mxu0 %v5480
        %5494 = vmatprep.subr.bf16.mxu0 0
        %5495 = vmatpush1.bf16.msra.mxu0 %v5479
        %5496 = vmatprep.subr.bf16.mxu0 0
        %5497 = vmatpush1.bf16.msra.mxu0 %v5478
        %5498 = vmatprep.subr.bf16.mxu0 0
        %5499 = vmatpush1.bf16.msra.mxu0 %v5477
        %5500 = vmatprep.subr.bf16.mxu0 0
        %5501 = vmatpush1.bf16.msra.mxu0 %v5476
        %5502 = vmatprep.subr.bf16.mxu0 0
        %5503 = vmatpush1.bf16.msra.mxu0 %v5475
        %5504 = vmatprep.subr.bf16.mxu0 0
        %5505 = vmatpush1.bf16.msra.mxu0 %v5474
        %5506 = vmatprep.subr.bf16.mxu0 0
        %5507 = vmatpush2.bf16.msra.mxu0 0
        %5508 = vmatprep.subr.bf16.mxu0 0
        %5509 = vmatpush2.bf16.msra.mxu0 0
        %5510 = vmatprep.subr.bf16.mxu0 0
        %5511 = vmatpush2.bf16.msra.mxu0 0
        %5512 = vmatprep.subr.bf16.mxu0 0
        %5513 = vmatpush2.bf16.msra.mxu0 0
        %5514 = vmatprep.subr.bf16.mxu0 0
        %5515 = vmatpush2.bf16.msra.mxu0 0
        %5516 = vmatprep.subr.bf16.mxu0 0
        %5517 = vmatpush2.bf16.msra.mxu0 0
        %5518 = vmatprep.subr.bf16.mxu0 0
        %5519 = vmatpush2.bf16.msra.mxu0 0
        %5520 = vmatprep.subr.bf16.mxu0 0
        %5521 = vmatpush2.bf16.msra.mxu0 0
        %5522 = vmatprep.mubr.bf16.mxu0 0
        %5523 = vmatmul.mubr.bf16.gmra.mxu0 %v5378
        %v5524 = vpop.f32.mrf.mxu0
        %v5525 = vadd.f32 0.0, %v5524
        %v5526 = vpop.f32.mrf.mxu0
        %v5527 = vpop.f32.mrf.mxu0
        %v5528 = vadd.f32 0.0, %v5527
        %v5529 = vpop.f32.mrf.mxu0
        %5530 = vmatprep.mubr.bf16.mxu0 0
        %5531 = vmatmul.mubr.bf16.gmra.mxu0 %v5379
        %v5532 = vpop.f32.mrf.mxu0
        %v5533 = vadd.f32 0.0, %v5532
        %v5534 = vpop.f32.mrf.mxu0
        %v5535 = vpop.f32.mrf.mxu0
        %v5536 = vadd.f32 0.0, %v5535
        %v5537 = vpop.f32.mrf.mxu0
        %5538 = vmatprep.mubr.bf16.mxu0 0
        %5539 = vmatmul.mubr.bf16.gmra.mxu0 %v5380
        %v5540 = vpop.f32.mrf.mxu0
        %v5541 = vadd.f32 0.0, %v5540
        %v5542 = vpop.f32.mrf.mxu0
        %v5543 = vpop.f32.mrf.mxu0
        %v5544 = vadd.f32 0.0, %v5543
        %v5545 = vpop.f32.mrf.mxu0
        %5546 = vmatprep.mubr.bf16.mxu0 0
        %5547 = vmatmul.mubr.bf16.gmra.mxu0 %v5381
        %v5548 = vpop.f32.mrf.mxu0
        %v5549 = vadd.f32 0.0, %v5548
        %v5550 = vpop.f32.mrf.mxu0
        %v5551 = vpop.f32.mrf.mxu0
        %v5552 = vadd.f32 0.0, %v5551
        %v5553 = vpop.f32.mrf.mxu0
        %5554 = vmatprep.mubr.bf16.mxu0 0
        %5555 = vmatmul.mubr.bf16.gmra.mxu0 %v5382
        %v5556 = vpop.f32.mrf.mxu0
        %v5557 = vadd.f32 0.0, %v5556
        %v5558 = vpop.f32.mrf.mxu0
        %v5559 = vpop.f32.mrf.mxu0
        %v5560 = vadd.f32 0.0, %v5559
        %v5561 = vpop.f32.mrf.mxu0
        %5562 = vmatprep.mubr.bf16.mxu0 0
        %5563 = vmatmul.mubr.bf16.gmra.mxu0 %v5383
        %v5564 = vpop.f32.mrf.mxu0
        %v5565 = vadd.f32 0.0, %v5564
        %v5566 = vpop.f32.mrf.mxu0
        %v5567 = vpop.f32.mrf.mxu0
        %v5568 = vadd.f32 0.0, %v5567
        %v5569 = vpop.f32.mrf.mxu0
        %5570 = vmatprep.mubr.bf16.mxu0 0
        %5571 = vmatmul.mubr.bf16.gmra.mxu0 %v5384
        %v5572 = vpop.f32.mrf.mxu0
        %v5573 = vadd.f32 0.0, %v5572
        %v5574 = vpop.f32.mrf.mxu0
        %v5575 = vpop.f32.mrf.mxu0
        %v5576 = vadd.f32 0.0, %v5575
        %v5577 = vpop.f32.mrf.mxu0
        %5578 = vmatprep.mubr.bf16.mxu0 0
        %5579 = vmatmul.mubr.bf16.gmra.mxu0 %v5385
        %v5580 = vpop.f32.mrf.mxu0
        %v5581 = vadd.f32 0.0, %v5580
        %v5582 = vpop.f32.mrf.mxu0
        %v5583 = vpop.f32.mrf.mxu0
        %v5584 = vadd.f32 0.0, %v5583
        %v5585 = vpop.f32.mrf.mxu0
        %5586 = vmatprep.mubr.bf16.mxu0 0
        %5587 = vmatmul.mubr.bf16.gmra.mxu0 %v5386
        %v5588 = vpop.f32.mrf.mxu0
        %v5589 = vadd.f32 0.0, %v5588
        %v5590 = vpop.f32.mrf.mxu0
        %v5591 = vpop.f32.mrf.mxu0
        %v5592 = vadd.f32 0.0, %v5591
        %v5593 = vpop.f32.mrf.mxu0
        %5594 = vmatprep.mubr.bf16.mxu0 0
        %5595 = vmatmul.mubr.bf16.gmra.mxu0 %v5387
        %v5596 = vpop.f32.mrf.mxu0
        %v5597 = vadd.f32 0.0, %v5596
        %v5598 = vpop.f32.mrf.mxu0
        %v5599 = vpop.f32.mrf.mxu0
        %v5600 = vadd.f32 0.0, %v5599
        %v5601 = vpop.f32.mrf.mxu0
        %5602 = vmatprep.mubr.bf16.mxu0 0
        %5603 = vmatmul.mubr.bf16.gmra.mxu0 %v5388
        %v5604 = vpop.f32.mrf.mxu0
        %v5605 = vadd.f32 0.0, %v5604
        %v5606 = vpop.f32.mrf.mxu0
        %v5607 = vpop.f32.mrf.mxu0
        %v5608 = vadd.f32 0.0, %v5607
        %v5609 = vpop.f32.mrf.mxu0
        %5610 = vmatprep.mubr.bf16.mxu0 0
        %5611 = vmatmul.mubr.bf16.gmra.mxu0 %v5389
        %v5612 = vpop.f32.mrf.mxu0
        %v5613 = vadd.f32 0.0, %v5612
        %v5614 = vpop.f32.mrf.mxu0
        %v5615 = vpop.f32.mrf.mxu0
        %v5616 = vadd.f32 0.0, %v5615
        %v5617 = vpop.f32.mrf.mxu0
        %5618 = vmatprep.mubr.bf16.mxu0 0
        %5619 = vmatmul.mubr.bf16.gmra.mxu0 %v5390
        %v5620 = vpop.f32.mrf.mxu0
        %v5621 = vadd.f32 0.0, %v5620
        %v5622 = vpop.f32.mrf.mxu0
        %v5623 = vpop.f32.mrf.mxu0
        %v5624 = vadd.f32 0.0, %v5623
        %v5625 = vpop.f32.mrf.mxu0
        %5626 = vmatprep.mubr.bf16.mxu0 0
        %5627 = vmatmul.mubr.bf16.gmra.mxu0 %v5391
        %v5628 = vpop.f32.mrf.mxu0
        %v5629 = vadd.f32 0.0, %v5628
        %v5630 = vpop.f32.mrf.mxu0
        %v5631 = vpop.f32.mrf.mxu0
        %v5632 = vadd.f32 0.0, %v5631
        %v5633 = vpop.f32.mrf.mxu0
        %5634 = vmatprep.mubr.bf16.mxu0 0
        %5635 = vmatmul.mubr.bf16.gmra.mxu0 %v5392
        %v5636 = vpop.f32.mrf.mxu0
        %v5637 = vadd.f32 0.0, %v5636
        %v5638 = vpop.f32.mrf.mxu0
        %v5639 = vpop.f32.mrf.mxu0
        %v5640 = vadd.f32 0.0, %v5639
        %v5641 = vpop.f32.mrf.mxu0
        %5642 = vmatprep.mubr.bf16.mxu0 0
        %5643 = vmatmul.mubr.bf16.gmra.mxu0 %v5393
        %v5644 = vpop.f32.mrf.mxu0
        %v5645 = vadd.f32 0.0, %v5644
        %v5646 = vpop.f32.mrf.mxu0
        %v5647 = vpop.f32.mrf.mxu0
        %v5648 = vadd.f32 0.0, %v5647
        %v5649 = vpop.f32.mrf.mxu0
        %5650 = vmatprep.mubr.bf16.mxu0 0
        %5651 = vmatmul.mubr.bf16.gmra.mxu0 %v5394
        %v5652 = vpop.f32.mrf.mxu0
        %v5653 = vadd.f32 0.0, %v5652
        %v5654 = vpop.f32.mrf.mxu0
        %v5655 = vpop.f32.mrf.mxu0
        %v5656 = vadd.f32 0.0, %v5655
        %v5657 = vpop.f32.mrf.mxu0
        %5658 = vmatprep.mubr.bf16.mxu0 0
        %5659 = vmatmul.mubr.bf16.gmra.mxu0 %v5395
        %v5660 = vpop.f32.mrf.mxu0
        %v5661 = vadd.f32 0.0, %v5660
        %v5662 = vpop.f32.mrf.mxu0
        %v5663 = vpop.f32.mrf.mxu0
        %v5664 = vadd.f32 0.0, %v5663
        %v5665 = vpop.f32.mrf.mxu0
        %5666 = vmatprep.mubr.bf16.mxu0 0
        %5667 = vmatmul.mubr.bf16.gmra.mxu0 %v5396
        %v5668 = vpop.f32.mrf.mxu0
        %v5669 = vadd.f32 0.0, %v5668
        %v5670 = vpop.f32.mrf.mxu0
        %v5671 = vpop.f32.mrf.mxu0
        %v5672 = vadd.f32 0.0, %v5671
        %v5673 = vpop.f32.mrf.mxu0
        %5674 = vmatprep.mubr.bf16.mxu0 0
        %5675 = vmatmul.mubr.bf16.gmra.mxu0 %v5397
        %v5676 = vpop.f32.mrf.mxu0
        %v5677 = vadd.f32 0.0, %v5676
        %v5678 = vpop.f32.mrf.mxu0
        %v5679 = vpop.f32.mrf.mxu0
        %v5680 = vadd.f32 0.0, %v5679
        %v5681 = vpop.f32.mrf.mxu0
        %5682 = vmatprep.mubr.bf16.mxu0 0
        %5683 = vmatmul.mubr.bf16.gmra.mxu0 %v5398
        %v5684 = vpop.f32.mrf.mxu0
        %v5685 = vadd.f32 0.0, %v5684
        %v5686 = vpop.f32.mrf.mxu0
        %v5687 = vpop.f32.mrf.mxu0
        %v5688 = vadd.f32 0.0, %v5687
        %v5689 = vpop.f32.mrf.mxu0
        %5690 = vmatprep.mubr.bf16.mxu0 0
        %5691 = vmatmul.mubr.bf16.gmra.mxu0 %v5399
        %v5692 = vpop.f32.mrf.mxu0
        %v5693 = vadd.f32 0.0, %v5692
        %v5694 = vpop.f32.mrf.mxu0
        %v5695 = vpop.f32.mrf.mxu0
        %v5696 = vadd.f32 0.0, %v5695
        %v5697 = vpop.f32.mrf.mxu0
        %5698 = vmatprep.mubr.bf16.mxu0 0
        %5699 = vmatmul.mubr.bf16.gmra.mxu0 %v5400
        %v5700 = vpop.f32.mrf.mxu0
        %v5701 = vadd.f32 0.0, %v5700
        %v5702 = vpop.f32.mrf.mxu0
        %v5703 = vpop.f32.mrf.mxu0
        %v5704 = vadd.f32 0.0, %v5703
        %v5705 = vpop.f32.mrf.mxu0
        %5706 = vmatprep.mubr.bf16.mxu0 0
        %5707 = vmatmul.mubr.bf16.gmra.mxu0 %v5401
        %v5708 = vpop.f32.mrf.mxu0
        %v5709 = vadd.f32 0.0, %v5708
        %v5710 = vpop.f32.mrf.mxu0
        %v5711 = vpop.f32.mrf.mxu0
        %v5712 = vadd.f32 0.0, %v5711
        %v5713 = vpop.f32.mrf.mxu0
        %5714 = vmatprep.mubr.bf16.mxu0 0
        %5715 = vmatmul.mubr.bf16.gmra.mxu0 %v5402
        %v5716 = vpop.f32.mrf.mxu0
        %v5717 = vadd.f32 0.0, %v5716
        %v5718 = vpop.f32.mrf.mxu0
        %v5719 = vpop.f32.mrf.mxu0
        %v5720 = vadd.f32 0.0, %v5719
        %v5721 = vpop.f32.mrf.mxu0
        %5722 = vmatprep.mubr.bf16.mxu0 0
        %5723 = vmatmul.mubr.bf16.gmra.mxu0 %v5403
        %v5724 = vpop.f32.mrf.mxu0
        %v5725 = vadd.f32 0.0, %v5724
        %v5726 = vpop.f32.mrf.mxu0
        %v5727 = vpop.f32.mrf.mxu0
        %v5728 = vadd.f32 0.0, %v5727
        %v5729 = vpop.f32.mrf.mxu0
        %5730 = vmatprep.mubr.bf16.mxu0 0
        %5731 = vmatmul.mubr.bf16.gmra.mxu0 %v5404
        %v5732 = vpop.f32.mrf.mxu0
        %v5733 = vadd.f32 0.0, %v5732
        %v5734 = vpop.f32.mrf.mxu0
        %v5735 = vpop.f32.mrf.mxu0
        %v5736 = vadd.f32 0.0, %v5735
        %v5737 = vpop.f32.mrf.mxu0
        %5738 = vmatprep.mubr.bf16.mxu0 0
        %5739 = vmatmul.mubr.bf16.gmra.mxu0 %v5405
        %v5740 = vpop.f32.mrf.mxu0
        %v5741 = vadd.f32 0.0, %v5740
        %v5742 = vpop.f32.mrf.mxu0
        %v5743 = vpop.f32.mrf.mxu0
        %v5744 = vadd.f32 0.0, %v5743
        %v5745 = vpop.f32.mrf.mxu0
        %5746 = vmatprep.mubr.bf16.mxu0 0
        %5747 = vmatmul.mubr.bf16.gmra.mxu0 %v5406
        %v5748 = vpop.f32.mrf.mxu0
        %v5749 = vadd.f32 0.0, %v5748
        %v5750 = vpop.f32.mrf.mxu0
        %v5751 = vpop.f32.mrf.mxu0
        %v5752 = vadd.f32 0.0, %v5751
        %v5753 = vpop.f32.mrf.mxu0
        %5754 = vmatprep.mubr.bf16.mxu0 0
        %5755 = vmatmul.mubr.bf16.gmra.mxu0 %v5407
        %v5756 = vpop.f32.mrf.mxu0
        %v5757 = vadd.f32 0.0, %v5756
        %v5758 = vpop.f32.mrf.mxu0
        %v5759 = vpop.f32.mrf.mxu0
        %v5760 = vadd.f32 0.0, %v5759
        %v5761 = vpop.f32.mrf.mxu0
        %5762 = vmatprep.mubr.bf16.mxu0 0
        %5763 = vmatmul.mubr.bf16.gmra.mxu0 %v5408
        %v5764 = vpop.f32.mrf.mxu0
        %v5765 = vadd.f32 0.0, %v5764
        %v5766 = vpop.f32.mrf.mxu0
        %v5767 = vpop.f32.mrf.mxu0
        %v5768 = vadd.f32 0.0, %v5767
        %v5769 = vpop.f32.mrf.mxu0
        %5770 = vmatprep.mubr.bf16.mxu0 0
        %5771 = vmatmul.mubr.bf16.gmra.mxu0 %v5409
        %v5772 = vpop.f32.mrf.mxu0
        %v5773 = vadd.f32 0.0, %v5772
        %v5774 = vpop.f32.mrf.mxu0
        %v5775 = vpop.f32.mrf.mxu0
        %v5776 = vadd.f32 0.0, %v5775
        %v5777 = vpop.f32.mrf.mxu0
        %5778 = vmatprep.mubr.bf16.mxu0 0
        %5779 = vmatmul.mubr.bf16.gmra.mxu0 %v5410
        %v5780 = vpop.f32.mrf.mxu0
        %v5781 = vadd.f32 0.0, %v5780
        %v5782 = vpop.f32.mrf.mxu0
        %v5783 = vpop.f32.mrf.mxu0
        %v5784 = vadd.f32 0.0, %v5783
        %v5785 = vpop.f32.mrf.mxu0
        %5786 = vmatprep.mubr.bf16.mxu0 0
        %5787 = vmatmul.mubr.bf16.gmra.mxu0 %v5411
        %v5788 = vpop.f32.mrf.mxu0
        %v5789 = vadd.f32 0.0, %v5788
        %v5790 = vpop.f32.mrf.mxu0
        %v5791 = vpop.f32.mrf.mxu0
        %v5792 = vadd.f32 0.0, %v5791
        %v5793 = vpop.f32.mrf.mxu0
        %5794 = vmatprep.mubr.bf16.mxu0 0
        %5795 = vmatmul.mubr.bf16.gmra.mxu0 %v5412
        %v5796 = vpop.f32.mrf.mxu0
        %v5797 = vadd.f32 0.0, %v5796
        %v5798 = vpop.f32.mrf.mxu0
        %v5799 = vpop.f32.mrf.mxu0
        %v5800 = vadd.f32 0.0, %v5799
        %v5801 = vpop.f32.mrf.mxu0
        %5802 = vmatprep.mubr.bf16.mxu0 0
        %5803 = vmatmul.mubr.bf16.gmra.mxu0 %v5413
        %v5804 = vpop.f32.mrf.mxu0
        %v5805 = vadd.f32 0.0, %v5804
        %v5806 = vpop.f32.mrf.mxu0
        %v5807 = vpop.f32.mrf.mxu0
        %v5808 = vadd.f32 0.0, %v5807
        %v5809 = vpop.f32.mrf.mxu0
        %5810 = vmatprep.mubr.bf16.mxu0 0
        %5811 = vmatmul.mubr.bf16.gmra.mxu0 %v5414
        %v5812 = vpop.f32.mrf.mxu0
        %v5813 = vadd.f32 0.0, %v5812
        %v5814 = vpop.f32.mrf.mxu0
        %v5815 = vpop.f32.mrf.mxu0
        %v5816 = vadd.f32 0.0, %v5815
        %v5817 = vpop.f32.mrf.mxu0
        %5818 = vmatprep.mubr.bf16.mxu0 0
        %5819 = vmatmul.mubr.bf16.gmra.mxu0 %v5415
        %v5820 = vpop.f32.mrf.mxu0
        %v5821 = vadd.f32 0.0, %v5820
        %v5822 = vpop.f32.mrf.mxu0
        %v5823 = vpop.f32.mrf.mxu0
        %v5824 = vadd.f32 0.0, %v5823
        %v5825 = vpop.f32.mrf.mxu0
        %5826 = vmatprep.mubr.bf16.mxu0 0
        %5827 = vmatmul.mubr.bf16.gmra.mxu0 %v5416
        %v5828 = vpop.f32.mrf.mxu0
        %v5829 = vadd.f32 0.0, %v5828
        %v5830 = vpop.f32.mrf.mxu0
        %v5831 = vpop.f32.mrf.mxu0
        %v5832 = vadd.f32 0.0, %v5831
        %v5833 = vpop.f32.mrf.mxu0
        %5834 = vmatprep.mubr.bf16.mxu0 0
        %5835 = vmatmul.mubr.bf16.gmra.mxu0 %v5417
        %v5836 = vpop.f32.mrf.mxu0
        %v5837 = vadd.f32 0.0, %v5836
        %v5838 = vpop.f32.mrf.mxu0
        %v5839 = vpop.f32.mrf.mxu0
        %v5840 = vadd.f32 0.0, %v5839
        %v5841 = vpop.f32.mrf.mxu0
        %5842 = vmatprep.mubr.bf16.mxu0 0
        %5843 = vmatmul.mubr.bf16.gmra.mxu0 %v5418
        %v5844 = vpop.f32.mrf.mxu0
        %v5845 = vadd.f32 0.0, %v5844
        %v5846 = vpop.f32.mrf.mxu0
        %v5847 = vpop.f32.mrf.mxu0
        %v5848 = vadd.f32 0.0, %v5847
        %v5849 = vpop.f32.mrf.mxu0
        %5850 = vmatprep.mubr.bf16.mxu0 0
        %5851 = vmatmul.mubr.bf16.gmra.mxu0 %v5419
        %v5852 = vpop.f32.mrf.mxu0
        %v5853 = vadd.f32 0.0, %v5852
        %v5854 = vpop.f32.mrf.mxu0
        %v5855 = vpop.f32.mrf.mxu0
        %v5856 = vadd.f32 0.0, %v5855
        %v5857 = vpop.f32.mrf.mxu0
        %5858 = vmatprep.mubr.bf16.mxu0 0
        %5859 = vmatmul.mubr.bf16.gmra.mxu0 %v5420
        %v5860 = vpop.f32.mrf.mxu0
        %v5861 = vadd.f32 0.0, %v5860
        %v5862 = vpop.f32.mrf.mxu0
        %v5863 = vpop.f32.mrf.mxu0
        %v5864 = vadd.f32 0.0, %v5863
        %v5865 = vpop.f32.mrf.mxu0
        %5866 = vmatprep.mubr.bf16.mxu0 0
        %5867 = vmatmul.mubr.bf16.gmra.mxu0 %v5421
        %v5868 = vpop.f32.mrf.mxu0
        %v5869 = vadd.f32 0.0, %v5868
        %v5870 = vpop.f32.mrf.mxu0
        %v5871 = vpop.f32.mrf.mxu0
        %v5872 = vadd.f32 0.0, %v5871
        %v5873 = vpop.f32.mrf.mxu0
        %5874 = vmatprep.mubr.bf16.mxu0 0
        %5875 = vmatmul.mubr.bf16.gmra.mxu0 %v5422
        %v5876 = vpop.f32.mrf.mxu0
        %v5877 = vadd.f32 0.0, %v5876
        %v5878 = vpop.f32.mrf.mxu0
        %v5879 = vpop.f32.mrf.mxu0
        %v5880 = vadd.f32 0.0, %v5879
        %v5881 = vpop.f32.mrf.mxu0
        %5882 = vmatprep.mubr.bf16.mxu0 0
        %5883 = vmatmul.mubr.bf16.gmra.mxu0 %v5423
        %v5884 = vpop.f32.mrf.mxu0
        %v5885 = vadd.f32 0.0, %v5884
        %v5886 = vpop.f32.mrf.mxu0
        %v5887 = vpop.f32.mrf.mxu0
        %v5888 = vadd.f32 0.0, %v5887
        %v5889 = vpop.f32.mrf.mxu0
        %5890 = vmatprep.mubr.bf16.mxu0 0
        %5891 = vmatmul.mubr.bf16.gmra.mxu0 %v5424
        %v5892 = vpop.f32.mrf.mxu0
        %v5893 = vadd.f32 0.0, %v5892
        %v5894 = vpop.f32.mrf.mxu0
        %v5895 = vpop.f32.mrf.mxu0
        %v5896 = vadd.f32 0.0, %v5895
        %v5897 = vpop.f32.mrf.mxu0
        %5898 = vmatprep.mubr.bf16.mxu0 0
        %5899 = vmatmul.mubr.bf16.gmra.mxu0 %v5425
        %v5900 = vpop.f32.mrf.mxu0
        %v5901 = vadd.f32 0.0, %v5900
        %v5902 = vpop.f32.mrf.mxu0
        %v5903 = vpop.f32.mrf.mxu0
        %v5904 = vadd.f32 0.0, %v5903
        %v5905 = vpop.f32.mrf.mxu0
        %5906 = vmatprep.mubr.bf16.mxu0 0
        %5907 = vmatmul.mubr.bf16.gmra.mxu0 %v5426
        %v5908 = vpop.f32.mrf.mxu0
        %v5909 = vadd.f32 0.0, %v5908
        %v5910 = vpop.f32.mrf.mxu0
        %v5911 = vpop.f32.mrf.mxu0
        %v5912 = vadd.f32 0.0, %v5911
        %v5913 = vpop.f32.mrf.mxu0
        %5914 = vmatprep.mubr.bf16.mxu0 0
        %5915 = vmatmul.mubr.bf16.gmra.mxu0 %v5427
        %v5916 = vpop.f32.mrf.mxu0
        %v5917 = vadd.f32 0.0, %v5916
        %v5918 = vpop.f32.mrf.mxu0
        %v5919 = vpop.f32.mrf.mxu0
        %v5920 = vadd.f32 0.0, %v5919
        %v5921 = vpop.f32.mrf.mxu0
        %5922 = vmatprep.mubr.bf16.mxu0 0
        %5923 = vmatmul.mubr.bf16.gmra.mxu0 %v5428
        %v5924 = vpop.f32.mrf.mxu0
        %v5925 = vadd.f32 0.0, %v5924
        %v5926 = vpop.f32.mrf.mxu0
        %v5927 = vpop.f32.mrf.mxu0
        %v5928 = vadd.f32 0.0, %v5927
        %v5929 = vpop.f32.mrf.mxu0
        %5930 = vmatprep.mubr.bf16.mxu0 0
        %5931 = vmatmul.mubr.bf16.gmra.mxu0 %v5429
        %v5932 = vpop.f32.mrf.mxu0
        %v5933 = vadd.f32 0.0, %v5932
        %v5934 = vpop.f32.mrf.mxu0
        %v5935 = vpop.f32.mrf.mxu0
        %v5936 = vadd.f32 0.0, %v5935
        %v5937 = vpop.f32.mrf.mxu0
        %5938 = vmatprep.mubr.bf16.mxu0 0
        %5939 = vmatmul.mubr.bf16.gmra.mxu0 %v5430
        %v5940 = vpop.f32.mrf.mxu0
        %v5941 = vadd.f32 0.0, %v5940
        %v5942 = vpop.f32.mrf.mxu0
        %v5943 = vpop.f32.mrf.mxu0
        %v5944 = vadd.f32 0.0, %v5943
        %v5945 = vpop.f32.mrf.mxu0
        %5946 = vmatprep.mubr.bf16.mxu0 0
        %5947 = vmatmul.mubr.bf16.gmra.mxu0 %v5431
        %v5948 = vpop.f32.mrf.mxu0
        %v5949 = vadd.f32 0.0, %v5948
        %v5950 = vpop.f32.mrf.mxu0
        %v5951 = vpop.f32.mrf.mxu0
        %v5952 = vadd.f32 0.0, %v5951
        %v5953 = vpop.f32.mrf.mxu0
        %5954 = vmatprep.mubr.bf16.mxu0 0
        %5955 = vmatmul.mubr.bf16.gmra.mxu0 %v5432
        %v5956 = vpop.f32.mrf.mxu0
        %v5957 = vadd.f32 0.0, %v5956
        %v5958 = vpop.f32.mrf.mxu0
        %v5959 = vpop.f32.mrf.mxu0
        %v5960 = vadd.f32 0.0, %v5959
        %v5961 = vpop.f32.mrf.mxu0
        %5962 = vmatprep.mubr.bf16.mxu0 0
        %5963 = vmatmul.mubr.bf16.gmra.mxu0 %v5433
        %v5964 = vpop.f32.mrf.mxu0
        %v5965 = vadd.f32 0.0, %v5964
        %v5966 = vpop.f32.mrf.mxu0
        %v5967 = vpop.f32.mrf.mxu0
        %v5968 = vadd.f32 0.0, %v5967
        %v5969 = vpop.f32.mrf.mxu0
        %5970 = vmatprep.mubr.bf16.mxu0 0
        %5971 = vmatmul.mubr.bf16.gmra.mxu0 %v5434
        %v5972 = vpop.f32.mrf.mxu0
        %v5973 = vadd.f32 0.0, %v5972
        %v5974 = vpop.f32.mrf.mxu0
        %v5975 = vpop.f32.mrf.mxu0
        %v5976 = vadd.f32 0.0, %v5975
        %v5977 = vpop.f32.mrf.mxu0
        %5978 = vmatprep.mubr.bf16.mxu0 0
        %5979 = vmatmul.mubr.bf16.gmra.mxu0 %v5435
        %v5980 = vpop.f32.mrf.mxu0
        %v5981 = vadd.f32 0.0, %v5980
        %v5982 = vpop.f32.mrf.mxu0
        %v5983 = vpop.f32.mrf.mxu0
        %v5984 = vadd.f32 0.0, %v5983
        %v5985 = vpop.f32.mrf.mxu0
        %5986 = vmatprep.mubr.bf16.mxu0 0
        %5987 = vmatmul.mubr.bf16.gmra.mxu0 %v5436
        %v5988 = vpop.f32.mrf.mxu0
        %v5989 = vadd.f32 0.0, %v5988
        %v5990 = vpop.f32.mrf.mxu0
        %v5991 = vpop.f32.mrf.mxu0
        %v5992 = vadd.f32 0.0, %v5991
        %v5993 = vpop.f32.mrf.mxu0
        %5994 = vmatprep.mubr.bf16.mxu0 0
        %5995 = vmatmul.mubr.bf16.gmra.mxu0 %v5437
        %v5996 = vpop.f32.mrf.mxu0
        %v5997 = vadd.f32 0.0, %v5996
        %v5998 = vpop.f32.mrf.mxu0
        %v5999 = vpop.f32.mrf.mxu0
        %v6000 = vadd.f32 0.0, %v5999
        %v6001 = vpop.f32.mrf.mxu0
        %6002 = vmatprep.mubr.bf16.mxu0 0
        %6003 = vmatmul.mubr.bf16.gmra.mxu0 %v5438
        %v6004 = vpop.f32.mrf.mxu0
        %v6005 = vadd.f32 0.0, %v6004
        %v6006 = vpop.f32.mrf.mxu0
        %v6007 = vpop.f32.mrf.mxu0
        %v6008 = vadd.f32 0.0, %v6007
        %v6009 = vpop.f32.mrf.mxu0
        %6010 = vmatprep.mubr.bf16.mxu0 0
        %6011 = vmatmul.mubr.bf16.gmra.mxu0 %v5439
        %v6012 = vpop.f32.mrf.mxu0
        %v6013 = vadd.f32 0.0, %v6012
        %v6014 = vpop.f32.mrf.mxu0
        %v6015 = vpop.f32.mrf.mxu0
        %v6016 = vadd.f32 0.0, %v6015
        %v6017 = vpop.f32.mrf.mxu0
        %6018 = vmatprep.mubr.bf16.mxu0 0
        %6019 = vmatmul.mubr.bf16.gmra.mxu0 %v5440
        %v6020 = vpop.f32.mrf.mxu0
        %v6021 = vadd.f32 0.0, %v6020
        %v6022 = vpop.f32.mrf.mxu0
        %v6023 = vpop.f32.mrf.mxu0
        %v6024 = vadd.f32 0.0, %v6023
        %v6025 = vpop.f32.mrf.mxu0
        %6026 = vmatprep.mubr.bf16.mxu0 0
        %6027 = vmatmul.mubr.bf16.gmra.mxu0 %v5441
        %v6028 = vpop.f32.mrf.mxu0
        %v6029 = vadd.f32 0.0, %v6028
        %v6030 = vpop.f32.mrf.mxu0
        %v6031 = vpop.f32.mrf.mxu0
        %v6032 = vadd.f32 0.0, %v6031
        %v6033 = vpop.f32.mrf.mxu0
        %6034 = vdwg.mxu0
        %6035 = vst [vmem:[%s191] sm:$0xff] %v5525
        %6036 = vst [vmem:[%s191 + $0x8] sm:$0xff] %v5528
        %6037 = vst [vmem:[%s191 + $0x10] sm:$0xff] %v5533
        %6038 = vst [vmem:[%s191 + $0x18] sm:$0xff] %v5536
        %6039 = vst [vmem:[%s191 + $0x20] sm:$0xff] %v5541
        %6040 = vst [vmem:[%s191 + $0x28] sm:$0xff] %v5544
        %6041 = vst [vmem:[%s191 + $0x30] sm:$0xff] %v5549
        %6042 = vst [vmem:[%s191 + $0x38] sm:$0xff] %v5552
        %6043 = vst [vmem:[%s191 + $0x40] sm:$0xff] %v5557
        %6044 = vst [vmem:[%s191 + $0x48] sm:$0xff] %v5560
        %6045 = vst [vmem:[%s191 + $0x50] sm:$0xff] %v5565
        %6046 = vst [vmem:[%s191 + $0x58] sm:$0xff] %v5568
        %6047 = vst [vmem:[%s191 + $0x60] sm:$0xff] %v5573
        %6048 = vst [vmem:[%s191 + $0x68] sm:$0xff] %v5576
        %6049 = vst [vmem:[%s191 + $0x70] sm:$0xff] %v5581
        %6050 = vst [vmem:[%s191 + $0x78] sm:$0xff] %v5584
        %6051 = vst [vmem:[%s191 + $0x80] sm:$0xff] %v5589
        %6052 = vst [vmem:[%s191 + $0x88] sm:$0xff] %v5592
        %6053 = vst [vmem:[%s191 + $0x90] sm:$0xff] %v5597
        %6054 = vst [vmem:[%s191 + $0x98] sm:$0xff] %v5600
        %6055 = vst [vmem:[%s191 + $0xa0] sm:$0xff] %v5605
        %6056 = vst [vmem:[%s191 + $0xa8] sm:$0xff] %v5608
        %6057 = vst [vmem:[%s191 + $0xb0] sm:$0xff] %v5613
        %6058 = vst [vmem:[%s191 + $0xb8] sm:$0xff] %v5616
        %6059 = vst [vmem:[%s191 + $0xc0] sm:$0xff] %v5621
        %6060 = vst [vmem:[%s191 + $0xc8] sm:$0xff] %v5624
        %6061 = vst [vmem:[%s191 + $0xd0] sm:$0xff] %v5629
        %6062 = vst [vmem:[%s191 + $0xd8] sm:$0xff] %v5632
        %6063 = vst [vmem:[%s191 + $0xe0] sm:$0xff] %v5637
        %6064 = vst [vmem:[%s191 + $0xe8] sm:$0xff] %v5640
        %6065 = vst [vmem:[%s191 + $0xf0] sm:$0xff] %v5645
        %6066 = vst [vmem:[%s191 + $0xf8] sm:$0xff] %v5648
        %6067 = vst [vmem:[%s191 + $0x100] sm:$0xff] %v5653
        %6068 = vst [vmem:[%s191 + $0x108] sm:$0xff] %v5656
        %6069 = vst [vmem:[%s191 + $0x110] sm:$0xff] %v5661
        %6070 = vst [vmem:[%s191 + $0x118] sm:$0xff] %v5664
        %6071 = vst [vmem:[%s191 + $0x120] sm:$0xff] %v5669
        %6072 = vst [vmem:[%s191 + $0x128] sm:$0xff] %v5672
        %6073 = vst [vmem:[%s191 + $0x130] sm:$0xff] %v5677
        %6074 = vst [vmem:[%s191 + $0x138] sm:$0xff] %v5680
        %6075 = vst [vmem:[%s191 + $0x140] sm:$0xff] %v5685
        %6076 = vst [vmem:[%s191 + $0x148] sm:$0xff] %v5688
        %6077 = vst [vmem:[%s191 + $0x150] sm:$0xff] %v5693
        %6078 = vst [vmem:[%s191 + $0x158] sm:$0xff] %v5696
        %6079 = vst [vmem:[%s191 + $0x160] sm:$0xff] %v5701
        %6080 = vst [vmem:[%s191 + $0x168] sm:$0xff] %v5704
        %6081 = vst [vmem:[%s191 + $0x170] sm:$0xff] %v5709
        %6082 = vst [vmem:[%s191 + $0x178] sm:$0xff] %v5712
        %6083 = vst [vmem:[%s191 + $0x180] sm:$0xff] %v5717
        %6084 = vst [vmem:[%s191 + $0x188] sm:$0xff] %v5720
        %6085 = vst [vmem:[%s191 + $0x190] sm:$0xff] %v5725
        %6086 = vst [vmem:[%s191 + $0x198] sm:$0xff] %v5728
        %6087 = vst [vmem:[%s191 + $0x1a0] sm:$0xff] %v5733
        %6088 = vst [vmem:[%s191 + $0x1a8] sm:$0xff] %v5736
        %6089 = vst [vmem:[%s191 + $0x1b0] sm:$0xff] %v5741
        %6090 = vst [vmem:[%s191 + $0x1b8] sm:$0xff] %v5744
        %6091 = vst [vmem:[%s191 + $0x1c0] sm:$0xff] %v5749
        %6092 = vst [vmem:[%s191 + $0x1c8] sm:$0xff] %v5752
        %6093 = vst [vmem:[%s191 + $0x1d0] sm:$0xff] %v5757
        %6094 = vst [vmem:[%s191 + $0x1d8] sm:$0xff] %v5760
        %6095 = vst [vmem:[%s191 + $0x1e0] sm:$0xff] %v5765
        %6096 = vst [vmem:[%s191 + $0x1e8] sm:$0xff] %v5768
        %6097 = vst [vmem:[%s191 + $0x1f0] sm:$0xff] %v5773
        %6098 = vst [vmem:[%s191 + $0x1f8] sm:$0xff] %v5776
        %6099 = vst [vmem:[%s191 + $0x200] sm:$0xff] %v5781
        %6100 = vst [vmem:[%s191 + $0x208] sm:$0xff] %v5784
        %6101 = vst [vmem:[%s191 + $0x210] sm:$0xff] %v5789
        %6102 = vst [vmem:[%s191 + $0x218] sm:$0xff] %v5792
        %6103 = vst [vmem:[%s191 + $0x220] sm:$0xff] %v5797
        %6104 = vst [vmem:[%s191 + $0x228] sm:$0xff] %v5800
        %6105 = vst [vmem:[%s191 + $0x230] sm:$0xff] %v5805
        %6106 = vst [vmem:[%s191 + $0x238] sm:$0xff] %v5808
        %6107 = vst [vmem:[%s191 + $0x240] sm:$0xff] %v5813
        %6108 = vst [vmem:[%s191 + $0x248] sm:$0xff] %v5816
        %6109 = vst [vmem:[%s191 + $0x250] sm:$0xff] %v5821
        %6110 = vst [vmem:[%s191 + $0x258] sm:$0xff] %v5824
        %6111 = vst [vmem:[%s191 + $0x260] sm:$0xff] %v5829
        %6112 = vst [vmem:[%s191 + $0x268] sm:$0xff] %v5832
        %6113 = vst [vmem:[%s191 + $0x270] sm:$0xff] %v5837
        %6114 = vst [vmem:[%s191 + $0x278] sm:$0xff] %v5840
        %6115 = vst [vmem:[%s191 + $0x280] sm:$0xff] %v5845
        %6116 = vst [vmem:[%s191 + $0x288] sm:$0xff] %v5848
        %6117 = vst [vmem:[%s191 + $0x290] sm:$0xff] %v5853
        %6118 = vst [vmem:[%s191 + $0x298] sm:$0xff] %v5856
        %6119 = vst [vmem:[%s191 + $0x2a0] sm:$0xff] %v5861
        %6120 = vst [vmem:[%s191 + $0x2a8] sm:$0xff] %v5864
        %6121 = vst [vmem:[%s191 + $0x2b0] sm:$0xff] %v5869
        %6122 = vst [vmem:[%s191 + $0x2b8] sm:$0xff] %v5872
        %6123 = vst [vmem:[%s191 + $0x2c0] sm:$0xff] %v5877
        %6124 = vst [vmem:[%s191 + $0x2c8] sm:$0xff] %v5880
        %6125 = vst [vmem:[%s191 + $0x2d0] sm:$0xff] %v5885
        %6126 = vst [vmem:[%s191 + $0x2d8] sm:$0xff] %v5888
        %6127 = vst [vmem:[%s191 + $0x2e0] sm:$0xff] %v5893
        %6128 = vst [vmem:[%s191 + $0x2e8] sm:$0xff] %v5896
        %6129 = vst [vmem:[%s191 + $0x2f0] sm:$0xff] %v5901
        %6130 = vst [vmem:[%s191 + $0x2f8] sm:$0xff] %v5904
        %6131 = vst [vmem:[%s191 + $0x300] sm:$0xff] %v5909
        %6132 = vst [vmem:[%s191 + $0x308] sm:$0xff] %v5912
        %6133 = vst [vmem:[%s191 + $0x310] sm:$0xff] %v5917
        %6134 = vst [vmem:[%s191 + $0x318] sm:$0xff] %v5920
        %6135 = vst [vmem:[%s191 + $0x320] sm:$0xff] %v5925
        %6136 = vst [vmem:[%s191 + $0x328] sm:$0xff] %v5928
        %6137 = vst [vmem:[%s191 + $0x330] sm:$0xff] %v5933
        %6138 = vst [vmem:[%s191 + $0x338] sm:$0xff] %v5936
        %6139 = vst [vmem:[%s191 + $0x340] sm:$0xff] %v5941
        %6140 = vst [vmem:[%s191 + $0x348] sm:$0xff] %v5944
        %6141 = vst [vmem:[%s191 + $0x350] sm:$0xff] %v5949
        %6142 = vst [vmem:[%s191 + $0x358] sm:$0xff] %v5952
        %6143 = vst [vmem:[%s191 + $0x360] sm:$0xff] %v5957
        %6144 = vst [vmem:[%s191 + $0x368] sm:$0xff] %v5960
        %6145 = vst [vmem:[%s191 + $0x370] sm:$0xff] %v5965
        %6146 = vst [vmem:[%s191 + $0x378] sm:$0xff] %v5968
        %6147 = vst [vmem:[%s191 + $0x380] sm:$0xff] %v5973
        %6148 = vst [vmem:[%s191 + $0x388] sm:$0xff] %v5976
        %6149 = vst [vmem:[%s191 + $0x390] sm:$0xff] %v5981
        %6150 = vst [vmem:[%s191 + $0x398] sm:$0xff] %v5984
        %6151 = vst [vmem:[%s191 + $0x3a0] sm:$0xff] %v5989
        %6152 = vst [vmem:[%s191 + $0x3a8] sm:$0xff] %v5992
        %6153 = vst [vmem:[%s191 + $0x3b0] sm:$0xff] %v5997
        %6154 = vst [vmem:[%s191 + $0x3b8] sm:$0xff] %v6000
        %6155 = vst [vmem:[%s191 + $0x3c0] sm:$0xff] %v6005
        %6156 = vst [vmem:[%s191 + $0x3c8] sm:$0xff] %v6008
        %6157 = vst [vmem:[%s191 + $0x3d0] sm:$0xff] %v6013
        %6158 = vst [vmem:[%s191 + $0x3d8] sm:$0xff] %v6016
        %6159 = vst [vmem:[%s191 + $0x3e0] sm:$0xff] %v6021
        %6160 = vst [vmem:[%s191 + $0x3e8] sm:$0xff] %v6024
        %6161 = vst [vmem:[%s191 + $0x3f0] sm:$0xff] %v6029
        %6162 = vst [vmem:[%s191 + $0x3f8] sm:$0xff] %v6032
        %s6163 = sand.u32 %s115, 1
        %s6164 = scalar_lea.sflag [#allocation3], %s6163
        %s6165 = sand.u32 %s115, 1
        %s6166 = smul.addr %s6165, 1024
        %s6167 = scalar_lea.vmem [#allocation2], %s6166
        // Predicated region
        $region37: #{tpu_custom_call.1} parent=35 // pred_check
          %p6168 = pneg %p125
        $region38: #{tpu_custom_call.1} parent=35 // pred_check_branch
          %6170 = sbr.rel (%p6168) target = $region40
        $region39: #{tpu_custom_call.1} parent=35 // pred_region
          %s6171 = smul.u32 128, %s18
          %s6173 = ssub.s32 16384, 16384
          %6174 = vsyncadd %s6164, %s6173
          %s6175 = smul.addr %s6171, 128
          %s6176 = scalar_lea.hbm %s4, %s6175
          %s6177 = sshll.u32 %s6167, 4
          %s6178 = int_to_ptr.vmem [resolvable:$true] %s6177
          %6183 = dma.vmem_to_hbm [thread:$0]  %s6178, 16384, %s6176, %s6164, 128, 128, 8
        $region40: #{tpu_custom_call.1} parent=35 // pred_fallthru
          _
      $region36: #{tpu_custom_call.1} parent=5 // pred_fallthru
        _
      %p6184 = scmp.le.s32.totalorder 2, %s13
      // Predicated region
      $region41: #{tpu_custom_call.1} parent=5 // pred_check
        %p6185 = pneg %p6184
      $region42: #{tpu_custom_call.1} parent=5 // pred_check_branch
        %6187 = sbr.rel (%p6185) target = $region44
      $region43: #{tpu_custom_call.1} parent=5 // pred_region
        %s6188 = ssub.s32 %s13, 2
        // Predicated region
        $region45: #{tpu_custom_call.1} parent=43 // pred_check
          %p6189 = pneg %p131
        $region46: #{tpu_custom_call.1} parent=43 // pred_check_branch
          %6191 = sbr.rel (%p6189) target = $region48
        $region47: #{tpu_custom_call.1} parent=43 // pred_region
          %s6192 = sand.u32 %s116, 1
          %s6193 = scalar_lea.sflag [#allocation3], %s6192
          %s6194 = sand.u32 %s116, 1
          %s6195 = smul.addr %s6194, 1024
          %s6196 = scalar_lea.vmem [#allocation2], %s6195
          %6197 = dma.done %s6193, 16384
        $region48: #{tpu_custom_call.1} parent=43 // pred_fallthru
          _
      $region44: #{tpu_custom_call.1} parent=5 // pred_fallthru
        _
    $region6: #{tpu_custom_call.1} parent=1 // loop_footer
      %s17 = sadd.s32 1, %s13
    $region7: #{tpu_custom_call.1} parent=1 // loop_footer_branch
      %12 = sbr.rel target = $region3
    $region8: #{tpu_custom_call.1} parent=1 // loop_exit
      _
    %6198 = vsyncpa [#allocation3], 1
    %s6199 = scalar_lea.sflag [#allocation3], 1
    %6200 = vsyncpa %s6199, 1

</llo_original>
